<compile_context>
chip_gen: v7x
topology: tpu7x:2x2x1
jax: 0.10.0
libtpu: 0.0.40
codegen_flags: <defaults>
</compile_context>

<pallas_src>
import jax
import jax.numpy as jnp
from jax.experimental import pallas as pl
from jax.experimental.pallas import tpu as pltpu


def _fused_conv1x1_kernel(x_ref, y_ref, z_ref,
                          wx_ref, wy_ref, wz_ref,
                          bx_ref, by_ref, bz_ref,
                          ox_ref, oy_ref, oz_ref):
    """Three independent (Cout,Cin) @ (Cin,tn) MXU matmuls + bias (one per layer)."""
    ox_ref[...] = (
        jnp.dot(wx_ref[...], x_ref[...], preferred_element_type=jnp.float32)
        + bx_ref[...]
    ).astype(ox_ref.dtype)
    oy_ref[...] = (
        jnp.dot(wy_ref[...], y_ref[...], preferred_element_type=jnp.float32)
        + by_ref[...]
    ).astype(oy_ref.dtype)
    oz_ref[...] = (
        jnp.dot(wz_ref[...], z_ref[...], preferred_element_type=jnp.float32)
        + bz_ref[...]
    ).astype(oz_ref.dtype)


def _pick_lane_tile(n_lanes, other_steps):
    """Lane tile: lane-dense (128-multiple), VMEM-safe cap, >=2 grid steps."""
    if n_lanes <= 128:
        return n_lanes                              # full extent (tiny shapes)
    tn = min(n_lanes, 1024)                         # generation-safe VMEM cap
    tn = max(128, (tn // 128) * 128)
    # Don't let a big tile collapse the whole grid to one step (idles one TC
    # on v7x): split the spatial axis if it is the only source of steps.
    if other_steps * pl.cdiv(n_lanes, tn) < 2 and n_lanes >= 256:
        tn = max(128, (pl.cdiv(n_lanes, 2) // 128) * 128)
    return tn


@jax.jit
def fused_change_channels(x, y, z, w9, b9, w10, b10, w11, b11):
    """Apply the three 1x1 convs (layer9/10/11) in a single Pallas launch.

    x, y, z : [B, Cin, H, W]   (NCHW, same shapes)
    w*      : [Cout, Cin]      (PyTorch conv weight squeezed over the 1x1 kernel)
    b*      : [Cout]
    returns three [B, Cout, H, W] arrays (same dtype as the inputs).
    """
    B, Cin, H, W = x.shape
    Cout = w9.shape[0]
    HW = H * W
    out_dtype = x.dtype
    cdt = jnp.bfloat16                      # compute dtype: halves HBM traffic
    out_bytes = jnp.dtype(out_dtype).itemsize

    weights = [w.astype(cdt) for w in (w9, w10, w11)]
    biases = [b.astype(jnp.float32).reshape(Cout, 1) for b in (b9, b10, b11)]

    small_spatial = HW < 128

    if small_spatial:
        # Pack batch into the lane axis: (B, Cin, HW) -> (Cin, B*HW).
        # Transpose cost is negligible at these sizes; gains lane density.
        N = B * HW
        acts = [
            jnp.transpose(a.reshape(B, Cin, HW), (1, 0, 2)).reshape(Cin, N).astype(cdt)
            for a in (x, y, z)
        ]
        tn = _pick_lane_tile(N, 1)
        grid = (pl.cdiv(N, tn),)
        act_spec = pl.BlockSpec((Cin, tn), lambda j: (0, j))
        out_spec = pl.BlockSpec((Cout, tn), lambda j: (0, j))
        w_spec = pl.BlockSpec((Cout, Cin), lambda j: (0, 0),
                              pipeline_mode=pl.Buffered(1))
        bias_spec = pl.BlockSpec((Cout, 1), lambda j: (0, 0),
                                 pipeline_mode=pl.Buffered(1))
        out_sds = jax.ShapeDtypeStruct((Cout, N), out_dtype)
        dims = ("parallel",)
    else:
        # Metadata-only reshape: merge contiguous trailing dims.
        acts = [a.reshape(B, Cin, HW).astype(cdt) for a in (x, y, z)]
        tn = _pick_lane_tile(HW, B)
        grid = (B, pl.cdiv(HW, tn))
        act_spec = pl.BlockSpec((None, Cin, tn), lambda b, j: (b, 0, j))
        out_spec = pl.BlockSpec((None, Cout, tn), lambda b, j: (b, 0, j))
        w_spec = pl.BlockSpec((Cout, Cin), lambda b, j: (0, 0),
                              pipeline_mode=pl.Buffered(1))
        bias_spec = pl.BlockSpec((Cout, 1), lambda b, j: (0, 0),
                                 pipeline_mode=pl.Buffered(1))
        out_sds = jax.ShapeDtypeStruct((B, Cout, HW), out_dtype)
        dims = ("parallel", "parallel")

    cost = pl.CostEstimate(
        flops=3 * 2 * B * HW * Cin * Cout,
        transcendentals=0,
        bytes_accessed=3 * (B * Cin * HW * 2          # bf16 activations
                            + Cout * Cin * 2          # bf16 weights
                            + B * Cout * HW * out_bytes
                            + Cout * 4),              # f32 biases
    )

    ox, oy, oz = pl.pallas_call(
        _fused_conv1x1_kernel,
        out_shape=(out_sds, out_sds, out_sds),
        grid_spec=pltpu.PrefetchScalarGridSpec(
            num_scalar_prefetch=0,
            grid=grid,
            in_specs=[act_spec, act_spec, act_spec,
                      w_spec, w_spec, w_spec,
                      bias_spec, bias_spec, bias_spec],
            out_specs=[out_spec, out_spec, out_spec],
        ),
        compiler_params=pltpu.CompilerParams(
            dimension_semantics=dims,
            vmem_limit_bytes=40 * 1024 * 1024,
        ),
        cost_estimate=cost,
    )(*acts, *weights, *biases)

    if small_spatial:
        def unpack(o):
            return jnp.transpose(o.reshape(Cout, B, HW), (1, 0, 2)).reshape(B, Cout, H, W)
        return unpack(ox), unpack(oy), unpack(oz)

    return (ox.reshape(B, Cout, H, W),
            oy.reshape(B, Cout, H, W),
            oz.reshape(B, Cout, H, W))


class ChangeChannels:
    """JAX/Pallas equivalent of the PyTorch Change_channels module."""

    IN_CH = 1024
    OUT_CH = 256

    def __init__(self, key):
        keys = jax.random.split(key, 6)
        # Deterministic synthetic init (PyTorch-like uniform fan-in bound).
        bound = 1.0 / jnp.sqrt(float(self.IN_CH))

        def mk_layer(kw, kb):
            w = jax.random.uniform(
                kw, (self.OUT_CH, self.IN_CH), jnp.float32, -bound, bound
            )
            b = jax.random.uniform(
                kb, (self.OUT_CH,), jnp.float32, -bound, bound
            )
            return w, b

        self.w9, self.b9 = mk_layer(keys[0], keys[1])
        self.w10, self.b10 = mk_layer(keys[2], keys[3])
        self.w11, self.b11 = mk_layer(keys[4], keys[5])

    def __call__(self, x, y, z):
        return fused_change_channels(
            x, y, z,
            self.w9, self.b9,
            self.w10, self.b10,
            self.w11, self.b11,
        )


if __name__ == "__main__":
    key = jax.random.PRNGKey(0)
    k_params, kx, ky, kz = jax.random.split(key, 4)

    # Small spatial dims; channel counts fixed at 1024->256 by the module.
    B, C, H, W = 2, 1024, 4, 4
    x = jax.random.normal(kx, (B, C, H, W), jnp.float32)
    y = jax.random.normal(ky, (B, C, H, W), jnp.float32)
    z = jax.random.normal(kz, (B, C, H, W), jnp.float32)

    model = ChangeChannels(k_params)
    ox, oy, oz = model(x, y, z)
    jax.block_until_ready((ox, oy, oz))

    # Reference with the same bf16 rounding of activations/weights (the kernel
    # accumulates in f32), so the comparison is tight.
    def ref(inp, w, b):
        a = inp.astype(jnp.bfloat16).astype(jnp.float32)
        wq = w.astype(jnp.bfloat16).astype(jnp.float32)
        r = jnp.einsum("bchw,oc->bohw", a, wq,
                       precision=jax.lax.Precision.HIGHEST)
        return r + b[None, :, None, None]

    assert ox.shape == (B, 256, H, W)
    assert oy.shape == (B, 256, H, W)
    assert oz.shape == (B, 256, H, W)
    assert jnp.allclose(ox, ref(x, model.w9, model.b9), atol=1e-3)
    assert jnp.allclose(oy, ref(y, model.w10, model.b10), atol=1e-3)
    assert jnp.allclose(oz, ref(z, model.w11, model.b11), atol=1e-3)

    print("KERNEL_OK")
</pallas_src>

<mosaic_0001>
module attributes {stable_mosaic.version = 11 : i64} {
  func.func @_fused_conv1x1_kernel(%arg0: i32, %arg1: memref<1024x32xbf16, #tpu.memory_space<vmem>>, %arg2: memref<1024x32xbf16, #tpu.memory_space<vmem>>, %arg3: memref<1024x32xbf16, #tpu.memory_space<vmem>>, %arg4: memref<256x1024xbf16, #tpu.memory_space<vmem>>, %arg5: memref<256x1024xbf16, #tpu.memory_space<vmem>>, %arg6: memref<256x1024xbf16, #tpu.memory_space<vmem>>, %arg7: memref<256x1xf32, #tpu.memory_space<vmem>>, %arg8: memref<256x1xf32, #tpu.memory_space<vmem>>, %arg9: memref<256x1xf32, #tpu.memory_space<vmem>>, %arg10: memref<256x32xf32, #tpu.memory_space<vmem>>, %arg11: memref<256x32xf32, #tpu.memory_space<vmem>>, %arg12: memref<256x32xf32, #tpu.memory_space<vmem>>) attributes {dimension_semantics = [#tpu.dimension_semantics<parallel>], iteration_bounds = array<i64: 1>, scalar_prefetch = 0 : i64, scratch_operands = 0 : i64, tpu.core_type = #tpu.core_type<tc>, window_params = [{transform_indices = @transform_0, window_bounds = array<i64: 1024, 32>}, {transform_indices = @transform_1, window_bounds = array<i64: 1024, 32>}, {transform_indices = @transform_2, window_bounds = array<i64: 1024, 32>}, {pipeline_mode = #tpu.pipeline_mode<synchronous>, transform_indices = @transform_3, window_bounds = array<i64: 256, 1024>}, {pipeline_mode = #tpu.pipeline_mode<synchronous>, transform_indices = @transform_4, window_bounds = array<i64: 256, 1024>}, {pipeline_mode = #tpu.pipeline_mode<synchronous>, transform_indices = @transform_5, window_bounds = array<i64: 256, 1024>}, {pipeline_mode = #tpu.pipeline_mode<synchronous>, transform_indices = @transform_6, window_bounds = array<i64: 256, 1>}, {pipeline_mode = #tpu.pipeline_mode<synchronous>, transform_indices = @transform_7, window_bounds = array<i64: 256, 1>}, {pipeline_mode = #tpu.pipeline_mode<synchronous>, transform_indices = @transform_8, window_bounds = array<i64: 256, 1>}, {transform_indices = @transform_9, window_bounds = array<i64: 256, 32>}, {transform_indices = @transform_10, window_bounds = array<i64: 256, 32>}, {transform_indices = @transform_11, window_bounds = array<i64: 256, 32>}]} {
    %c0 = arith.constant 0 : index
    %c0_0 = arith.constant 0 : index
    %0 = vector.load %arg4[%c0, %c0_0] : memref<256x1024xbf16, #tpu.memory_space<vmem>>, vector<256x1024xbf16>
    %c0_1 = arith.constant 0 : index
    %c0_2 = arith.constant 0 : index
    %1 = vector.load %arg1[%c0_1, %c0_2] : memref<1024x32xbf16, #tpu.memory_space<vmem>>, vector<1024x32xbf16>
    %cst = arith.constant dense<0.000000e+00> : vector<256x32xf32>
    %2 = tpu.matmul %0, %1, %cst {dimension_numbers = #tpu.dot_dimension_numbers<[1], [0], [0], [1], [0, 0, 1, 1], [], []>} : vector<256x1024xbf16>, vector<1024x32xbf16>, vector<256x32xf32> -> vector<256x32xf32>
    %c0_3 = arith.constant 0 : index
    %c0_4 = arith.constant 0 : index
    %3 = vector.load %arg7[%c0_3, %c0_4] : memref<256x1xf32, #tpu.memory_space<vmem>>, vector<256x1xf32>
    %4 = vector.broadcast %3 : vector<256x1xf32> to vector<256x32xf32>
    %5 = arith.addf %2, %4 : vector<256x32xf32>
    %c0_5 = arith.constant 0 : index
    %c0_6 = arith.constant 0 : index
    %6 = vector.load %arg10[%c0_5, %c0_6] : memref<256x32xf32, #tpu.memory_space<vmem>>, vector<256x32xf32>
    tpu.vector_store %arg10[%c0_5, %c0_6], %5 {strides = array<i32>} : memref<256x32xf32, #tpu.memory_space<vmem>>, vector<256x32xf32>,
    %c0_7 = arith.constant 0 : index
    %c0_8 = arith.constant 0 : index
    %7 = vector.load %arg5[%c0_7, %c0_8] : memref<256x1024xbf16, #tpu.memory_space<vmem>>, vector<256x1024xbf16>
    %c0_9 = arith.constant 0 : index
    %c0_10 = arith.constant 0 : index
    %8 = vector.load %arg2[%c0_9, %c0_10] : memref<1024x32xbf16, #tpu.memory_space<vmem>>, vector<1024x32xbf16>
    %cst_11 = arith.constant dense<0.000000e+00> : vector<256x32xf32>
    %9 = tpu.matmul %7, %8, %cst_11 {dimension_numbers = #tpu.dot_dimension_numbers<[1], [0], [0], [1], [0, 0, 1, 1], [], []>} : vector<256x1024xbf16>, vector<1024x32xbf16>, vector<256x32xf32> -> vector<256x32xf32>
    %c0_12 = arith.constant 0 : index
    %c0_13 = arith.constant 0 : index
    %10 = vector.load %arg8[%c0_12, %c0_13] : memref<256x1xf32, #tpu.memory_space<vmem>>, vector<256x1xf32>
    %11 = vector.broadcast %10 : vector<256x1xf32> to vector<256x32xf32>
    %12 = arith.addf %9, %11 : vector<256x32xf32>
    %c0_14 = arith.constant 0 : index
    %c0_15 = arith.constant 0 : index
    %13 = vector.load %arg11[%c0_14, %c0_15] : memref<256x32xf32, #tpu.memory_space<vmem>>, vector<256x32xf32>
    tpu.vector_store %arg11[%c0_14, %c0_15], %12 {strides = array<i32>} : memref<256x32xf32, #tpu.memory_space<vmem>>, vector<256x32xf32>,
    %c0_16 = arith.constant 0 : index
    %c0_17 = arith.constant 0 : index
    %14 = vector.load %arg6[%c0_16, %c0_17] : memref<256x1024xbf16, #tpu.memory_space<vmem>>, vector<256x1024xbf16>
    %c0_18 = arith.constant 0 : index
    %c0_19 = arith.constant 0 : index
    %15 = vector.load %arg3[%c0_18, %c0_19] : memref<1024x32xbf16, #tpu.memory_space<vmem>>, vector<1024x32xbf16>
    %cst_20 = arith.constant dense<0.000000e+00> : vector<256x32xf32>
    %16 = tpu.matmul %14, %15, %cst_20 {dimension_numbers = #tpu.dot_dimension_numbers<[1], [0], [0], [1], [0, 0, 1, 1], [], []>} : vector<256x1024xbf16>, vector<1024x32xbf16>, vector<256x32xf32> -> vector<256x32xf32>
    %c0_21 = arith.constant 0 : index
    %c0_22 = arith.constant 0 : index
    %17 = vector.load %arg9[%c0_21, %c0_22] : memref<256x1xf32, #tpu.memory_space<vmem>>, vector<256x1xf32>
    %18 = vector.broadcast %17 : vector<256x1xf32> to vector<256x32xf32>
    %19 = arith.addf %16, %18 : vector<256x32xf32>
    %c0_23 = arith.constant 0 : index
    %c0_24 = arith.constant 0 : index
    %20 = vector.load %arg12[%c0_23, %c0_24] : memref<256x32xf32, #tpu.memory_space<vmem>>, vector<256x32xf32>
    tpu.vector_store %arg12[%c0_23, %c0_24], %19 {strides = array<i32>} : memref<256x32xf32, #tpu.memory_space<vmem>>, vector<256x32xf32>,
    return
  }
  func.func @transform_0(%arg0: i32) -> (i32, i32) {
    %c0_i32 = arith.constant 0 : i32
    %c0_i32_0 = arith.constant 0 : i32
    return %c0_i32, %arg0 : i32, i32
  }
  func.func @transform_1(%arg0: i32) -> (i32, i32) {
    %c0_i32 = arith.constant 0 : i32
    %c0_i32_0 = arith.constant 0 : i32
    return %c0_i32, %arg0 : i32, i32
  }
  func.func @transform_2(%arg0: i32) -> (i32, i32) {
    %c0_i32 = arith.constant 0 : i32
    %c0_i32_0 = arith.constant 0 : i32
    return %c0_i32, %arg0 : i32, i32
  }
  func.func @transform_3(%arg0: i32) -> (i32, i32) {
    %c0_i32 = arith.constant 0 : i32
    %c0_i32_0 = arith.constant 0 : i32
    %c0_i32_1 = arith.constant 0 : i32
    return %c0_i32, %c0_i32_0 : i32, i32
  }
  func.func @transform_4(%arg0: i32) -> (i32, i32) {
    %c0_i32 = arith.constant 0 : i32
    %c0_i32_0 = arith.constant 0 : i32
    %c0_i32_1 = arith.constant 0 : i32
    return %c0_i32, %c0_i32_0 : i32, i32
  }
  func.func @transform_5(%arg0: i32) -> (i32, i32) {
    %c0_i32 = arith.constant 0 : i32
    %c0_i32_0 = arith.constant 0 : i32
    %c0_i32_1 = arith.constant 0 : i32
    return %c0_i32, %c0_i32_0 : i32, i32
  }
  func.func @transform_6(%arg0: i32) -> (i32, i32) {
    %c0_i32 = arith.constant 0 : i32
    %c0_i32_0 = arith.constant 0 : i32
    %c0_i32_1 = arith.constant 0 : i32
    return %c0_i32, %c0_i32_0 : i32, i32
  }
  func.func @transform_7(%arg0: i32) -> (i32, i32) {
    %c0_i32 = arith.constant 0 : i32
    %c0_i32_0 = arith.constant 0 : i32
    %c0_i32_1 = arith.constant 0 : i32
    return %c0_i32, %c0_i32_0 : i32, i32
  }
  func.func @transform_8(%arg0: i32) -> (i32, i32) {
    %c0_i32 = arith.constant 0 : i32
    %c0_i32_0 = arith.constant 0 : i32
    %c0_i32_1 = arith.constant 0 : i32
    return %c0_i32, %c0_i32_0 : i32, i32
  }
  func.func @transform_9(%arg0: i32) -> (i32, i32) {
    %c0_i32 = arith.constant 0 : i32
    %c0_i32_0 = arith.constant 0 : i32
    return %c0_i32, %arg0 : i32, i32
  }
  func.func @transform_10(%arg0: i32) -> (i32, i32) {
    %c0_i32 = arith.constant 0 : i32
    %c0_i32_0 = arith.constant 0 : i32
    return %c0_i32, %arg0 : i32, i32
  }
  func.func @transform_11(%arg0: i32) -> (i32, i32) {
    %c0_i32 = arith.constant 0 : i32
    %c0_i32_0 = arith.constant 0 : i32
    return %c0_i32, %arg0 : i32, i32
  }
}

</mosaic_0001>

<llo_original>
// kernel: fused_change_channels.1
$region0: #{fused_change_channels.1}
  #allocation0 [shape = 'u32[]', space=smem, size = 0x4, offset = 0x4, fixed_abs, tag = 'smem constant byte address 0x4 - core index']
  #allocation1 [shape = 'u32[144,128]{1,0:T(1,128)}', space=vmem, size = 0x12000, scoped, tag = 'internal scratch']
  %s0 = inlined_call_operand.vmem [shape: bf16[1024,32], index: 0, kind: input, shape index: {}]
  %s1 = inlined_call_operand.vmem [shape: bf16[1024,32], index: 1, kind: input, shape index: {}]
  %s2 = inlined_call_operand.vmem [shape: bf16[1024,32], index: 2, kind: input, shape index: {}]
  %s3 = inlined_call_operand.vmem [shape: bf16[256,1024], index: 3, kind: input, shape index: {}]
  %s4 = inlined_call_operand.vmem [shape: bf16[256,1024], index: 4, kind: input, shape index: {}]
  %s5 = inlined_call_operand.vmem [shape: bf16[256,1024], index: 5, kind: input, shape index: {}]
  %s6 = inlined_call_operand.vmem [shape: f32[256,1], index: 6, kind: input, shape index: {}]
  %s7 = inlined_call_operand.vmem [shape: f32[256,1], index: 7, kind: input, shape index: {}]
  %s8 = inlined_call_operand.vmem [shape: f32[256,1], index: 8, kind: input, shape index: {}]
  %s9 = inlined_call_operand.vmem [shape: f32[256,32], index: 9, kind: output, shape index: {0}]
  %s10 = inlined_call_operand.vmem [shape: f32[256,32], index: 10, kind: output, shape index: {1}]
  %s11 = inlined_call_operand.vmem [shape: f32[256,32], index: 11, kind: output, shape index: {2}]
  %12 = xla_tuple %s9, %s10, %s11
  %s13 = sld [smem:[#allocation0]]
  $region62: #{fused_change_channels.1} parent=0
    _
  %s15 = ssub.s32 1, %s13
  %s16 = scalar_select 0, %s15, %s13
  // Predicated region
  $region2: #{fused_change_channels.1} parent=0 // pred_check
    _
  $region3: #{fused_change_channels.1} parent=0 // pred_check_branch
    %18 = sbr.rel (0) target = $region5
  $region4: #{fused_change_channels.1} parent=0 // pred_region
    _
  $region5: #{fused_change_channels.1} parent=0 // pred_fallthru
    _
  // Predicated region
  $region6: #{fused_change_channels.1} parent=0 // pred_check
    _
  $region7: #{fused_change_channels.1} parent=0 // pred_check_branch
    %20 = sbr.rel (0) target = $region9
  $region8: #{fused_change_channels.1} parent=0 // pred_region
    _
  $region9: #{fused_change_channels.1} parent=0 // pred_fallthru
    _
  // Predicated region
  $region10: #{fused_change_channels.1} parent=0 // pred_check
    _
  $region11: #{fused_change_channels.1} parent=0 // pred_check_branch
    %22 = sbr.rel (0) target = $region13
  $region12: #{fused_change_channels.1} parent=0 // pred_region
    _
  $region13: #{fused_change_channels.1} parent=0 // pred_fallthru
    _
  // Predicated region
  $region14: #{fused_change_channels.1} parent=0 // pred_check
    _
  $region15: #{fused_change_channels.1} parent=0 // pred_check_branch
    %24 = sbr.rel (0) target = $region17
  $region16: #{fused_change_channels.1} parent=0 // pred_region
    _
  $region17: #{fused_change_channels.1} parent=0 // pred_fallthru
    _
  // Predicated region
  $region18: #{fused_change_channels.1} parent=0 // pred_check
    _
  $region19: #{fused_change_channels.1} parent=0 // pred_check_branch
    %26 = sbr.rel (0) target = $region21
  $region20: #{fused_change_channels.1} parent=0 // pred_region
    _
  $region21: #{fused_change_channels.1} parent=0 // pred_fallthru
    _
  // Predicated region
  $region22: #{fused_change_channels.1} parent=0 // pred_check
    _
  $region23: #{fused_change_channels.1} parent=0 // pred_check_branch
    %28 = sbr.rel (0) target = $region25
  $region24: #{fused_change_channels.1} parent=0 // pred_region
    _
  $region25: #{fused_change_channels.1} parent=0 // pred_fallthru
    _
  // Predicated region
  $region26: #{fused_change_channels.1} parent=0 // pred_check
    _
  $region27: #{fused_change_channels.1} parent=0 // pred_check_branch
    %30 = sbr.rel (0) target = $region29
  $region28: #{fused_change_channels.1} parent=0 // pred_region
    _
  $region29: #{fused_change_channels.1} parent=0 // pred_fallthru
    _
  // Predicated region
  $region30: #{fused_change_channels.1} parent=0 // pred_check
    _
  $region31: #{fused_change_channels.1} parent=0 // pred_check_branch
    %32 = sbr.rel (0) target = $region33
  $region32: #{fused_change_channels.1} parent=0 // pred_region
    _
  $region33: #{fused_change_channels.1} parent=0 // pred_fallthru
    _
  // Predicated region
  $region34: #{fused_change_channels.1} parent=0 // pred_check
    _
  $region35: #{fused_change_channels.1} parent=0 // pred_check_branch
    %34 = sbr.rel (0) target = $region37
  $region36: #{fused_change_channels.1} parent=0 // pred_region
    _
  $region37: #{fused_change_channels.1} parent=0 // pred_fallthru
    _
  %v36 = vld [vmem:[%s3] sm:$0xff]
  %v37 = vld [vmem:[%s3 + $0x8] sm:$0xff]
  %v38 = vld [vmem:[%s3 + $0x10] sm:$0xff]
  %v39 = vld [vmem:[%s3 + $0x18] sm:$0xff]
  %v40 = vld [vmem:[%s3 + $0x20] sm:$0xff]
  %v41 = vld [vmem:[%s3 + $0x28] sm:$0xff]
  %v42 = vld [vmem:[%s3 + $0x30] sm:$0xff]
  %v43 = vld [vmem:[%s3 + $0x38] sm:$0xff]
  %v44 = vld [vmem:[%s3 + $0x40] sm:$0xff]
  %v45 = vld [vmem:[%s3 + $0x48] sm:$0xff]
  %v46 = vld [vmem:[%s3 + $0x50] sm:$0xff]
  %v47 = vld [vmem:[%s3 + $0x58] sm:$0xff]
  %v48 = vld [vmem:[%s3 + $0x60] sm:$0xff]
  %v49 = vld [vmem:[%s3 + $0x68] sm:$0xff]
  %v50 = vld [vmem:[%s3 + $0x70] sm:$0xff]
  %v51 = vld [vmem:[%s3 + $0x78] sm:$0xff]
  %v52 = vld [vmem:[%s3 + $0x80] sm:$0xff]
  %v53 = vld [vmem:[%s3 + $0x88] sm:$0xff]
  %v54 = vld [vmem:[%s3 + $0x90] sm:$0xff]
  %v55 = vld [vmem:[%s3 + $0x98] sm:$0xff]
  %v56 = vld [vmem:[%s3 + $0xa0] sm:$0xff]
  %v57 = vld [vmem:[%s3 + $0xa8] sm:$0xff]
  %v58 = vld [vmem:[%s3 + $0xb0] sm:$0xff]
  %v59 = vld [vmem:[%s3 + $0xb8] sm:$0xff]
  %v60 = vld [vmem:[%s3 + $0xc0] sm:$0xff]
  %v61 = vld [vmem:[%s3 + $0xc8] sm:$0xff]
  %v62 = vld [vmem:[%s3 + $0xd0] sm:$0xff]
  %v63 = vld [vmem:[%s3 + $0xd8] sm:$0xff]
  %v64 = vld [vmem:[%s3 + $0xe0] sm:$0xff]
  %v65 = vld [vmem:[%s3 + $0xe8] sm:$0xff]
  %v66 = vld [vmem:[%s3 + $0xf0] sm:$0xff]
  %v67 = vld [vmem:[%s3 + $0xf8] sm:$0xff]
  %v68 = vld [vmem:[%s3 + $0x100] sm:$0xff]
  %v69 = vld [vmem:[%s3 + $0x108] sm:$0xff]
  %v70 = vld [vmem:[%s3 + $0x110] sm:$0xff]
  %v71 = vld [vmem:[%s3 + $0x118] sm:$0xff]
  %v72 = vld [vmem:[%s3 + $0x120] sm:$0xff]
  %v73 = vld [vmem:[%s3 + $0x128] sm:$0xff]
  %v74 = vld [vmem:[%s3 + $0x130] sm:$0xff]
  %v75 = vld [vmem:[%s3 + $0x138] sm:$0xff]
  %v76 = vld [vmem:[%s3 + $0x140] sm:$0xff]
  %v77 = vld [vmem:[%s3 + $0x148] sm:$0xff]
  %v78 = vld [vmem:[%s3 + $0x150] sm:$0xff]
  %v79 = vld [vmem:[%s3 + $0x158] sm:$0xff]
  %v80 = vld [vmem:[%s3 + $0x160] sm:$0xff]
  %v81 = vld [vmem:[%s3 + $0x168] sm:$0xff]
  %v82 = vld [vmem:[%s3 + $0x170] sm:$0xff]
  %v83 = vld [vmem:[%s3 + $0x178] sm:$0xff]
  %v84 = vld [vmem:[%s3 + $0x180] sm:$0xff]
  %v85 = vld [vmem:[%s3 + $0x188] sm:$0xff]
  %v86 = vld [vmem:[%s3 + $0x190] sm:$0xff]
  %v87 = vld [vmem:[%s3 + $0x198] sm:$0xff]
  %v88 = vld [vmem:[%s3 + $0x1a0] sm:$0xff]
  %v89 = vld [vmem:[%s3 + $0x1a8] sm:$0xff]
  %v90 = vld [vmem:[%s3 + $0x1b0] sm:$0xff]
  %v91 = vld [vmem:[%s3 + $0x1b8] sm:$0xff]
  %v92 = vld [vmem:[%s3 + $0x1c0] sm:$0xff]
  %v93 = vld [vmem:[%s3 + $0x1c8] sm:$0xff]
  %v94 = vld [vmem:[%s3 + $0x1d0] sm:$0xff]
  %v95 = vld [vmem:[%s3 + $0x1d8] sm:$0xff]
  %v96 = vld [vmem:[%s3 + $0x1e0] sm:$0xff]
  %v97 = vld [vmem:[%s3 + $0x1e8] sm:$0xff]
  %v98 = vld [vmem:[%s3 + $0x1f0] sm:$0xff]
  %v99 = vld [vmem:[%s3 + $0x1f8] sm:$0xff]
  %v100 = vld [vmem:[%s3 + $0x200] sm:$0xff]
  %v101 = vld [vmem:[%s3 + $0x208] sm:$0xff]
  %v102 = vld [vmem:[%s3 + $0x210] sm:$0xff]
  %v103 = vld [vmem:[%s3 + $0x218] sm:$0xff]
  %v104 = vld [vmem:[%s3 + $0x220] sm:$0xff]
  %v105 = vld [vmem:[%s3 + $0x228] sm:$0xff]
  %v106 = vld [vmem:[%s3 + $0x230] sm:$0xff]
  %v107 = vld [vmem:[%s3 + $0x238] sm:$0xff]
  %v108 = vld [vmem:[%s3 + $0x240] sm:$0xff]
  %v109 = vld [vmem:[%s3 + $0x248] sm:$0xff]
  %v110 = vld [vmem:[%s3 + $0x250] sm:$0xff]
  %v111 = vld [vmem:[%s3 + $0x258] sm:$0xff]
  %v112 = vld [vmem:[%s3 + $0x260] sm:$0xff]
  %v113 = vld [vmem:[%s3 + $0x268] sm:$0xff]
  %v114 = vld [vmem:[%s3 + $0x270] sm:$0xff]
  %v115 = vld [vmem:[%s3 + $0x278] sm:$0xff]
  %v116 = vld [vmem:[%s3 + $0x280] sm:$0xff]
  %v117 = vld [vmem:[%s3 + $0x288] sm:$0xff]
  %v118 = vld [vmem:[%s3 + $0x290] sm:$0xff]
  %v119 = vld [vmem:[%s3 + $0x298] sm:$0xff]
  %v120 = vld [vmem:[%s3 + $0x2a0] sm:$0xff]
  %v121 = vld [vmem:[%s3 + $0x2a8] sm:$0xff]
  %v122 = vld [vmem:[%s3 + $0x2b0] sm:$0xff]
  %v123 = vld [vmem:[%s3 + $0x2b8] sm:$0xff]
  %v124 = vld [vmem:[%s3 + $0x2c0] sm:$0xff]
  %v125 = vld [vmem:[%s3 + $0x2c8] sm:$0xff]
  %v126 = vld [vmem:[%s3 + $0x2d0] sm:$0xff]
  %v127 = vld [vmem:[%s3 + $0x2d8] sm:$0xff]
  %v128 = vld [vmem:[%s3 + $0x2e0] sm:$0xff]
  %v129 = vld [vmem:[%s3 + $0x2e8] sm:$0xff]
  %v130 = vld [vmem:[%s3 + $0x2f0] sm:$0xff]
  %v131 = vld [vmem:[%s3 + $0x2f8] sm:$0xff]
  %v132 = vld [vmem:[%s3 + $0x300] sm:$0xff]
  %v133 = vld [vmem:[%s3 + $0x308] sm:$0xff]
  %v134 = vld [vmem:[%s3 + $0x310] sm:$0xff]
  %v135 = vld [vmem:[%s3 + $0x318] sm:$0xff]
  %v136 = vld [vmem:[%s3 + $0x320] sm:$0xff]
  %v137 = vld [vmem:[%s3 + $0x328] sm:$0xff]
  %v138 = vld [vmem:[%s3 + $0x330] sm:$0xff]
  %v139 = vld [vmem:[%s3 + $0x338] sm:$0xff]
  %v140 = vld [vmem:[%s3 + $0x340] sm:$0xff]
  %v141 = vld [vmem:[%s3 + $0x348] sm:$0xff]
  %v142 = vld [vmem:[%s3 + $0x350] sm:$0xff]
  %v143 = vld [vmem:[%s3 + $0x358] sm:$0xff]
  %v144 = vld [vmem:[%s3 + $0x360] sm:$0xff]
  %v145 = vld [vmem:[%s3 + $0x368] sm:$0xff]
  %v146 = vld [vmem:[%s3 + $0x370] sm:$0xff]
  %v147 = vld [vmem:[%s3 + $0x378] sm:$0xff]
  %v148 = vld [vmem:[%s3 + $0x380] sm:$0xff]
  %v149 = vld [vmem:[%s3 + $0x388] sm:$0xff]
  %v150 = vld [vmem:[%s3 + $0x390] sm:$0xff]
  %v151 = vld [vmem:[%s3 + $0x398] sm:$0xff]
  %v152 = vld [vmem:[%s3 + $0x3a0] sm:$0xff]
  %v153 = vld [vmem:[%s3 + $0x3a8] sm:$0xff]
  %v154 = vld [vmem:[%s3 + $0x3b0] sm:$0xff]
  %v155 = vld [vmem:[%s3 + $0x3b8] sm:$0xff]
  %v156 = vld [vmem:[%s3 + $0x3c0] sm:$0xff]
  %v157 = vld [vmem:[%s3 + $0x3c8] sm:$0xff]
  %v158 = vld [vmem:[%s3 + $0x3d0] sm:$0xff]
  %v159 = vld [vmem:[%s3 + $0x3d8] sm:$0xff]
  %v160 = vld [vmem:[%s3 + $0x3e0] sm:$0xff]
  %v161 = vld [vmem:[%s3 + $0x3e8] sm:$0xff]
  %v162 = vld [vmem:[%s3 + $0x3f0] sm:$0xff]
  %v163 = vld [vmem:[%s3 + $0x3f8] sm:$0xff]
  %v164 = vld [vmem:[%s0] sm:$0xf]
  %v165 = vld [vmem:[%s0 + $0x4] sm:$0xf]
  %v166 = vld [vmem:[%s0 + $0x8] sm:$0xf]
  %v167 = vld [vmem:[%s0 + $0xc] sm:$0xf]
  %v168 = vld [vmem:[%s0 + $0x10] sm:$0xf]
  %v169 = vld [vmem:[%s0 + $0x14] sm:$0xf]
  %v170 = vld [vmem:[%s0 + $0x18] sm:$0xf]
  %v171 = vld [vmem:[%s0 + $0x1c] sm:$0xf]
  %v172 = vld [vmem:[%s0 + $0x20] sm:$0xf]
  %v173 = vld [vmem:[%s0 + $0x24] sm:$0xf]
  %v174 = vld [vmem:[%s0 + $0x28] sm:$0xf]
  %v175 = vld [vmem:[%s0 + $0x2c] sm:$0xf]
  %v176 = vld [vmem:[%s0 + $0x30] sm:$0xf]
  %v177 = vld [vmem:[%s0 + $0x34] sm:$0xf]
  %v178 = vld [vmem:[%s0 + $0x38] sm:$0xf]
  %v179 = vld [vmem:[%s0 + $0x3c] sm:$0xf]
  %v180 = vld [vmem:[%s0 + $0x40] sm:$0xf]
  %v181 = vld [vmem:[%s0 + $0x44] sm:$0xf]
  %v182 = vld [vmem:[%s0 + $0x48] sm:$0xf]
  %v183 = vld [vmem:[%s0 + $0x4c] sm:$0xf]
  %v184 = vld [vmem:[%s0 + $0x50] sm:$0xf]
  %v185 = vld [vmem:[%s0 + $0x54] sm:$0xf]
  %v186 = vld [vmem:[%s0 + $0x58] sm:$0xf]
  %v187 = vld [vmem:[%s0 + $0x5c] sm:$0xf]
  %v188 = vld [vmem:[%s0 + $0x60] sm:$0xf]
  %v189 = vld [vmem:[%s0 + $0x64] sm:$0xf]
  %v190 = vld [vmem:[%s0 + $0x68] sm:$0xf]
  %v191 = vld [vmem:[%s0 + $0x6c] sm:$0xf]
  %v192 = vld [vmem:[%s0 + $0x70] sm:$0xf]
  %v193 = vld [vmem:[%s0 + $0x74] sm:$0xf]
  %v194 = vld [vmem:[%s0 + $0x78] sm:$0xf]
  %v195 = vld [vmem:[%s0 + $0x7c] sm:$0xf]
  %v196 = vld [vmem:[%s0 + $0x80] sm:$0xf]
  %v197 = vld [vmem:[%s0 + $0x84] sm:$0xf]
  %v198 = vld [vmem:[%s0 + $0x88] sm:$0xf]
  %v199 = vld [vmem:[%s0 + $0x8c] sm:$0xf]
  %v200 = vld [vmem:[%s0 + $0x90] sm:$0xf]
  %v201 = vld [vmem:[%s0 + $0x94] sm:$0xf]
  %v202 = vld [vmem:[%s0 + $0x98] sm:$0xf]
  %v203 = vld [vmem:[%s0 + $0x9c] sm:$0xf]
  %v204 = vld [vmem:[%s0 + $0xa0] sm:$0xf]
  %v205 = vld [vmem:[%s0 + $0xa4] sm:$0xf]
  %v206 = vld [vmem:[%s0 + $0xa8] sm:$0xf]
  %v207 = vld [vmem:[%s0 + $0xac] sm:$0xf]
  %v208 = vld [vmem:[%s0 + $0xb0] sm:$0xf]
  %v209 = vld [vmem:[%s0 + $0xb4] sm:$0xf]
  %v210 = vld [vmem:[%s0 + $0xb8] sm:$0xf]
  %v211 = vld [vmem:[%s0 + $0xbc] sm:$0xf]
  %v212 = vld [vmem:[%s0 + $0xc0] sm:$0xf]
  %v213 = vld [vmem:[%s0 + $0xc4] sm:$0xf]
  %v214 = vld [vmem:[%s0 + $0xc8] sm:$0xf]
  %v215 = vld [vmem:[%s0 + $0xcc] sm:$0xf]
  %v216 = vld [vmem:[%s0 + $0xd0] sm:$0xf]
  %v217 = vld [vmem:[%s0 + $0xd4] sm:$0xf]
  %v218 = vld [vmem:[%s0 + $0xd8] sm:$0xf]
  %v219 = vld [vmem:[%s0 + $0xdc] sm:$0xf]
  %v220 = vld [vmem:[%s0 + $0xe0] sm:$0xf]
  %v221 = vld [vmem:[%s0 + $0xe4] sm:$0xf]
  %v222 = vld [vmem:[%s0 + $0xe8] sm:$0xf]
  %v223 = vld [vmem:[%s0 + $0xec] sm:$0xf]
  %v224 = vld [vmem:[%s0 + $0xf0] sm:$0xf]
  %v225 = vld [vmem:[%s0 + $0xf4] sm:$0xf]
  %v226 = vld [vmem:[%s0 + $0xf8] sm:$0xf]
  %v227 = vld [vmem:[%s0 + $0xfc] sm:$0xf]
  %v228 = vld [vmem:[%s0 + $0x100] sm:$0xf]
  %v229 = vld [vmem:[%s0 + $0x104] sm:$0xf]
  %v230 = vld [vmem:[%s0 + $0x108] sm:$0xf]
  %v231 = vld [vmem:[%s0 + $0x10c] sm:$0xf]
  %v232 = vld [vmem:[%s0 + $0x110] sm:$0xf]
  %v233 = vld [vmem:[%s0 + $0x114] sm:$0xf]
  %v234 = vld [vmem:[%s0 + $0x118] sm:$0xf]
  %v235 = vld [vmem:[%s0 + $0x11c] sm:$0xf]
  %v236 = vld [vmem:[%s0 + $0x120] sm:$0xf]
  %v237 = vld [vmem:[%s0 + $0x124] sm:$0xf]
  %v238 = vld [vmem:[%s0 + $0x128] sm:$0xf]
  %v239 = vld [vmem:[%s0 + $0x12c] sm:$0xf]
  %v240 = vld [vmem:[%s0 + $0x130] sm:$0xf]
  %v241 = vld [vmem:[%s0 + $0x134] sm:$0xf]
  %v242 = vld [vmem:[%s0 + $0x138] sm:$0xf]
  %v243 = vld [vmem:[%s0 + $0x13c] sm:$0xf]
  %v244 = vld [vmem:[%s0 + $0x140] sm:$0xf]
  %v245 = vld [vmem:[%s0 + $0x144] sm:$0xf]
  %v246 = vld [vmem:[%s0 + $0x148] sm:$0xf]
  %v247 = vld [vmem:[%s0 + $0x14c] sm:$0xf]
  %v248 = vld [vmem:[%s0 + $0x150] sm:$0xf]
  %v249 = vld [vmem:[%s0 + $0x154] sm:$0xf]
  %v250 = vld [vmem:[%s0 + $0x158] sm:$0xf]
  %v251 = vld [vmem:[%s0 + $0x15c] sm:$0xf]
  %v252 = vld [vmem:[%s0 + $0x160] sm:$0xf]
  %v253 = vld [vmem:[%s0 + $0x164] sm:$0xf]
  %v254 = vld [vmem:[%s0 + $0x168] sm:$0xf]
  %v255 = vld [vmem:[%s0 + $0x16c] sm:$0xf]
  %v256 = vld [vmem:[%s0 + $0x170] sm:$0xf]
  %v257 = vld [vmem:[%s0 + $0x174] sm:$0xf]
  %v258 = vld [vmem:[%s0 + $0x178] sm:$0xf]
  %v259 = vld [vmem:[%s0 + $0x17c] sm:$0xf]
  %v260 = vld [vmem:[%s0 + $0x180] sm:$0xf]
  %v261 = vld [vmem:[%s0 + $0x184] sm:$0xf]
  %v262 = vld [vmem:[%s0 + $0x188] sm:$0xf]
  %v263 = vld [vmem:[%s0 + $0x18c] sm:$0xf]
  %v264 = vld [vmem:[%s0 + $0x190] sm:$0xf]
  %v265 = vld [vmem:[%s0 + $0x194] sm:$0xf]
  %v266 = vld [vmem:[%s0 + $0x198] sm:$0xf]
  %v267 = vld [vmem:[%s0 + $0x19c] sm:$0xf]
  %v268 = vld [vmem:[%s0 + $0x1a0] sm:$0xf]
  %v269 = vld [vmem:[%s0 + $0x1a4] sm:$0xf]
  %v270 = vld [vmem:[%s0 + $0x1a8] sm:$0xf]
  %v271 = vld [vmem:[%s0 + $0x1ac] sm:$0xf]
  %v272 = vld [vmem:[%s0 + $0x1b0] sm:$0xf]
  %v273 = vld [vmem:[%s0 + $0x1b4] sm:$0xf]
  %v274 = vld [vmem:[%s0 + $0x1b8] sm:$0xf]
  %v275 = vld [vmem:[%s0 + $0x1bc] sm:$0xf]
  %v276 = vld [vmem:[%s0 + $0x1c0] sm:$0xf]
  %v277 = vld [vmem:[%s0 + $0x1c4] sm:$0xf]
  %v278 = vld [vmem:[%s0 + $0x1c8] sm:$0xf]
  %v279 = vld [vmem:[%s0 + $0x1cc] sm:$0xf]
  %v280 = vld [vmem:[%s0 + $0x1d0] sm:$0xf]
  %v281 = vld [vmem:[%s0 + $0x1d4] sm:$0xf]
  %v282 = vld [vmem:[%s0 + $0x1d8] sm:$0xf]
  %v283 = vld [vmem:[%s0 + $0x1dc] sm:$0xf]
  %v284 = vld [vmem:[%s0 + $0x1e0] sm:$0xf]
  %v285 = vld [vmem:[%s0 + $0x1e4] sm:$0xf]
  %v286 = vld [vmem:[%s0 + $0x1e8] sm:$0xf]
  %v287 = vld [vmem:[%s0 + $0x1ec] sm:$0xf]
  %v288 = vld [vmem:[%s0 + $0x1f0] sm:$0xf]
  %v289 = vld [vmem:[%s0 + $0x1f4] sm:$0xf]
  %v290 = vld [vmem:[%s0 + $0x1f8] sm:$0xf]
  %v291 = vld [vmem:[%s0 + $0x1fc] sm:$0xf]
  %v292 = vld [vmem:[%s6] sm:$0xff]
  %v293 = vld [vmem:[%s6 + $0x8] sm:$0xff]
  %v294 = vld [vmem:[%s6 + $0x10] sm:$0xff]
  %v295 = vld [vmem:[%s6 + $0x18] sm:$0xff]
  %v296 = vld [vmem:[%s6 + $0x20] sm:$0xff]
  %v297 = vld [vmem:[%s6 + $0x28] sm:$0xff]
  %v298 = vld [vmem:[%s6 + $0x30] sm:$0xff]
  %v299 = vld [vmem:[%s6 + $0x38] sm:$0xff]
  %v300 = vld [vmem:[%s6 + $0x40] sm:$0xff]
  %v301 = vld [vmem:[%s6 + $0x48] sm:$0xff]
  %v302 = vld [vmem:[%s6 + $0x50] sm:$0xff]
  %v303 = vld [vmem:[%s6 + $0x58] sm:$0xff]
  %v304 = vld [vmem:[%s6 + $0x60] sm:$0xff]
  %v305 = vld [vmem:[%s6 + $0x68] sm:$0xff]
  %v306 = vld [vmem:[%s6 + $0x70] sm:$0xff]
  %v307 = vld [vmem:[%s6 + $0x78] sm:$0xff]
  %v308 = vld [vmem:[%s6 + $0x80] sm:$0xff]
  %v309 = vld [vmem:[%s6 + $0x88] sm:$0xff]
  %v310 = vld [vmem:[%s6 + $0x90] sm:$0xff]
  %v311 = vld [vmem:[%s6 + $0x98] sm:$0xff]
  %v312 = vld [vmem:[%s6 + $0xa0] sm:$0xff]
  %v313 = vld [vmem:[%s6 + $0xa8] sm:$0xff]
  %v314 = vld [vmem:[%s6 + $0xb0] sm:$0xff]
  %v315 = vld [vmem:[%s6 + $0xb8] sm:$0xff]
  %v316 = vld [vmem:[%s6 + $0xc0] sm:$0xff]
  %v317 = vld [vmem:[%s6 + $0xc8] sm:$0xff]
  %v318 = vld [vmem:[%s6 + $0xd0] sm:$0xff]
  %v319 = vld [vmem:[%s6 + $0xd8] sm:$0xff]
  %v320 = vld [vmem:[%s6 + $0xe0] sm:$0xff]
  %v321 = vld [vmem:[%s6 + $0xe8] sm:$0xff]
  %v322 = vld [vmem:[%s6 + $0xf0] sm:$0xff]
  %v323 = vld [vmem:[%s6 + $0xf8] sm:$0xff]
  %325 = vset.pattern.permute.xlu0 0
  %326 = vperm.xlu0 %325, %v292
  %v327 = vpop.permute.xlu0 %326
  %330 = vset.pattern.permute.xlu0 0
  %331 = vperm.xlu0 %330, %v293
  %v332 = vpop.permute.xlu0 %331
  %335 = vset.pattern.permute.xlu0 0
  %336 = vperm.xlu0 %335, %v294
  %v337 = vpop.permute.xlu0 %336
  %340 = vset.pattern.permute.xlu0 0
  %341 = vperm.xlu0 %340, %v295
  %v342 = vpop.permute.xlu0 %341
  %345 = vset.pattern.permute.xlu0 0
  %346 = vperm.xlu0 %345, %v296
  %v347 = vpop.permute.xlu0 %346
  %350 = vset.pattern.permute.xlu0 0
  %351 = vperm.xlu0 %350, %v297
  %v352 = vpop.permute.xlu0 %351
  %355 = vset.pattern.permute.xlu0 0
  %356 = vperm.xlu0 %355, %v298
  %v357 = vpop.permute.xlu0 %356
  %360 = vset.pattern.permute.xlu0 0
  %361 = vperm.xlu0 %360, %v299
  %v362 = vpop.permute.xlu0 %361
  %365 = vset.pattern.permute.xlu0 0
  %366 = vperm.xlu0 %365, %v300
  %v367 = vpop.permute.xlu0 %366
  %370 = vset.pattern.permute.xlu0 0
  %371 = vperm.xlu0 %370, %v301
  %v372 = vpop.permute.xlu0 %371
  %375 = vset.pattern.permute.xlu0 0
  %376 = vperm.xlu0 %375, %v302
  %v377 = vpop.permute.xlu0 %376
  %380 = vset.pattern.permute.xlu0 0
  %381 = vperm.xlu0 %380, %v303
  %v382 = vpop.permute.xlu0 %381
  %385 = vset.pattern.permute.xlu0 0
  %386 = vperm.xlu0 %385, %v304
  %v387 = vpop.permute.xlu0 %386
  %390 = vset.pattern.permute.xlu0 0
  %391 = vperm.xlu0 %390, %v305
  %v392 = vpop.permute.xlu0 %391
  %395 = vset.pattern.permute.xlu0 0
  %396 = vperm.xlu0 %395, %v306
  %v397 = vpop.permute.xlu0 %396
  %400 = vset.pattern.permute.xlu0 0
  %401 = vperm.xlu0 %400, %v307
  %v402 = vpop.permute.xlu0 %401
  %405 = vset.pattern.permute.xlu0 0
  %406 = vperm.xlu0 %405, %v308
  %v407 = vpop.permute.xlu0 %406
  %410 = vset.pattern.permute.xlu0 0
  %411 = vperm.xlu0 %410, %v309
  %v412 = vpop.permute.xlu0 %411
  %415 = vset.pattern.permute.xlu0 0
  %416 = vperm.xlu0 %415, %v310
  %v417 = vpop.permute.xlu0 %416
  %420 = vset.pattern.permute.xlu0 0
  %421 = vperm.xlu0 %420, %v311
  %v422 = vpop.permute.xlu0 %421
  %425 = vset.pattern.permute.xlu0 0
  %426 = vperm.xlu0 %425, %v312
  %v427 = vpop.permute.xlu0 %426
  %430 = vset.pattern.permute.xlu0 0
  %431 = vperm.xlu0 %430, %v313
  %v432 = vpop.permute.xlu0 %431
  %435 = vset.pattern.permute.xlu0 0
  %436 = vperm.xlu0 %435, %v314
  %v437 = vpop.permute.xlu0 %436
  %440 = vset.pattern.permute.xlu0 0
  %441 = vperm.xlu0 %440, %v315
  %v442 = vpop.permute.xlu0 %441
  %445 = vset.pattern.permute.xlu0 0
  %446 = vperm.xlu0 %445, %v316
  %v447 = vpop.permute.xlu0 %446
  %450 = vset.pattern.permute.xlu0 0
  %451 = vperm.xlu0 %450, %v317
  %v452 = vpop.permute.xlu0 %451
  %455 = vset.pattern.permute.xlu0 0
  %456 = vperm.xlu0 %455, %v318
  %v457 = vpop.permute.xlu0 %456
  %460 = vset.pattern.permute.xlu0 0
  %461 = vperm.xlu0 %460, %v319
  %v462 = vpop.permute.xlu0 %461
  %465 = vset.pattern.permute.xlu0 0
  %466 = vperm.xlu0 %465, %v320
  %v467 = vpop.permute.xlu0 %466
  %470 = vset.pattern.permute.xlu0 0
  %471 = vperm.xlu0 %470, %v321
  %v472 = vpop.permute.xlu0 %471
  %475 = vset.pattern.permute.xlu0 0
  %476 = vperm.xlu0 %475, %v322
  %v477 = vpop.permute.xlu0 %476
  %480 = vset.pattern.permute.xlu0 0
  %481 = vperm.xlu0 %480, %v323
  %v482 = vpop.permute.xlu0 %481
  %v612 = vunpack.c.l.b16 %v36
  %v613 = vunpack.c.h.b16 %v36
  %v614 = vunpack.c.l.b16 %v37
  %v615 = vunpack.c.h.b16 %v37
  %v616 = vunpack.c.l.b16 %v38
  %v617 = vunpack.c.h.b16 %v38
  %v618 = vunpack.c.l.b16 %v39
  %v619 = vunpack.c.h.b16 %v39
  %v620 = vunpack.c.l.b16 %v40
  %v621 = vunpack.c.h.b16 %v40
  %v622 = vunpack.c.l.b16 %v41
  %v623 = vunpack.c.h.b16 %v41
  %v624 = vunpack.c.l.b16 %v42
  %v625 = vunpack.c.h.b16 %v42
  %v626 = vunpack.c.l.b16 %v43
  %v627 = vunpack.c.h.b16 %v43
  %v628 = vunpack.c.l.b16 %v44
  %v629 = vunpack.c.h.b16 %v44
  %v630 = vunpack.c.l.b16 %v45
  %v631 = vunpack.c.h.b16 %v45
  %v632 = vunpack.c.l.b16 %v46
  %v633 = vunpack.c.h.b16 %v46
  %v634 = vunpack.c.l.b16 %v47
  %v635 = vunpack.c.h.b16 %v47
  %v636 = vunpack.c.l.b16 %v48
  %v637 = vunpack.c.h.b16 %v48
  %v638 = vunpack.c.l.b16 %v49
  %v639 = vunpack.c.h.b16 %v49
  %v640 = vunpack.c.l.b16 %v50
  %v641 = vunpack.c.h.b16 %v50
  %v642 = vunpack.c.l.b16 %v51
  %v643 = vunpack.c.h.b16 %v51
  %v644 = vunpack.c.l.b16 %v52
  %v645 = vunpack.c.h.b16 %v52
  %v646 = vunpack.c.l.b16 %v53
  %v647 = vunpack.c.h.b16 %v53
  %v648 = vunpack.c.l.b16 %v54
  %v649 = vunpack.c.h.b16 %v54
  %v650 = vunpack.c.l.b16 %v55
  %v651 = vunpack.c.h.b16 %v55
  %v652 = vunpack.c.l.b16 %v56
  %v653 = vunpack.c.h.b16 %v56
  %v654 = vunpack.c.l.b16 %v57
  %v655 = vunpack.c.h.b16 %v57
  %v656 = vunpack.c.l.b16 %v58
  %v657 = vunpack.c.h.b16 %v58
  %v658 = vunpack.c.l.b16 %v59
  %v659 = vunpack.c.h.b16 %v59
  %v660 = vunpack.c.l.b16 %v60
  %v661 = vunpack.c.h.b16 %v60
  %v662 = vunpack.c.l.b16 %v61
  %v663 = vunpack.c.h.b16 %v61
  %v664 = vunpack.c.l.b16 %v62
  %v665 = vunpack.c.h.b16 %v62
  %v666 = vunpack.c.l.b16 %v63
  %v667 = vunpack.c.h.b16 %v63
  %v668 = vunpack.c.l.b16 %v64
  %v669 = vunpack.c.h.b16 %v64
  %v670 = vunpack.c.l.b16 %v65
  %v671 = vunpack.c.h.b16 %v65
  %v672 = vunpack.c.l.b16 %v66
  %v673 = vunpack.c.h.b16 %v66
  %v674 = vunpack.c.l.b16 %v67
  %v675 = vunpack.c.h.b16 %v67
  %v676 = vunpack.c.l.b16 %v68
  %v677 = vunpack.c.h.b16 %v68
  %v678 = vunpack.c.l.b16 %v69
  %v679 = vunpack.c.h.b16 %v69
  %v680 = vunpack.c.l.b16 %v70
  %v681 = vunpack.c.h.b16 %v70
  %v682 = vunpack.c.l.b16 %v71
  %v683 = vunpack.c.h.b16 %v71
  %v684 = vunpack.c.l.b16 %v72
  %v685 = vunpack.c.h.b16 %v72
  %v686 = vunpack.c.l.b16 %v73
  %v687 = vunpack.c.h.b16 %v73
  %v688 = vunpack.c.l.b16 %v74
  %v689 = vunpack.c.h.b16 %v74
  %v690 = vunpack.c.l.b16 %v75
  %v691 = vunpack.c.h.b16 %v75
  %v692 = vunpack.c.l.b16 %v76
  %v693 = vunpack.c.h.b16 %v76
  %v694 = vunpack.c.l.b16 %v77
  %v695 = vunpack.c.h.b16 %v77
  %v696 = vunpack.c.l.b16 %v78
  %v697 = vunpack.c.h.b16 %v78
  %v698 = vunpack.c.l.b16 %v79
  %v699 = vunpack.c.h.b16 %v79
  %v700 = vunpack.c.l.b16 %v80
  %v701 = vunpack.c.h.b16 %v80
  %v702 = vunpack.c.l.b16 %v81
  %v703 = vunpack.c.h.b16 %v81
  %v704 = vunpack.c.l.b16 %v82
  %v705 = vunpack.c.h.b16 %v82
  %v706 = vunpack.c.l.b16 %v83
  %v707 = vunpack.c.h.b16 %v83
  %v708 = vunpack.c.l.b16 %v84
  %v709 = vunpack.c.h.b16 %v84
  %v710 = vunpack.c.l.b16 %v85
  %v711 = vunpack.c.h.b16 %v85
  %v712 = vunpack.c.l.b16 %v86
  %v713 = vunpack.c.h.b16 %v86
  %v714 = vunpack.c.l.b16 %v87
  %v715 = vunpack.c.h.b16 %v87
  %v716 = vunpack.c.l.b16 %v88
  %v717 = vunpack.c.h.b16 %v88
  %v718 = vunpack.c.l.b16 %v89
  %v719 = vunpack.c.h.b16 %v89
  %v720 = vunpack.c.l.b16 %v90
  %v721 = vunpack.c.h.b16 %v90
  %v722 = vunpack.c.l.b16 %v91
  %v723 = vunpack.c.h.b16 %v91
  %v724 = vunpack.c.l.b16 %v92
  %v725 = vunpack.c.h.b16 %v92
  %v726 = vunpack.c.l.b16 %v93
  %v727 = vunpack.c.h.b16 %v93
  %v728 = vunpack.c.l.b16 %v94
  %v729 = vunpack.c.h.b16 %v94
  %v730 = vunpack.c.l.b16 %v95
  %v731 = vunpack.c.h.b16 %v95
  %v732 = vunpack.c.l.b16 %v96
  %v733 = vunpack.c.h.b16 %v96
  %v734 = vunpack.c.l.b16 %v97
  %v735 = vunpack.c.h.b16 %v97
  %v736 = vunpack.c.l.b16 %v98
  %v737 = vunpack.c.h.b16 %v98
  %v738 = vunpack.c.l.b16 %v99
  %v739 = vunpack.c.h.b16 %v99
  %v740 = vunpack.c.l.b16 %v100
  %v741 = vunpack.c.h.b16 %v100
  %v742 = vunpack.c.l.b16 %v101
  %v743 = vunpack.c.h.b16 %v101
  %v744 = vunpack.c.l.b16 %v102
  %v745 = vunpack.c.h.b16 %v102
  %v746 = vunpack.c.l.b16 %v103
  %v747 = vunpack.c.h.b16 %v103
  %v748 = vunpack.c.l.b16 %v104
  %v749 = vunpack.c.h.b16 %v104
  %v750 = vunpack.c.l.b16 %v105
  %v751 = vunpack.c.h.b16 %v105
  %v752 = vunpack.c.l.b16 %v106
  %v753 = vunpack.c.h.b16 %v106
  %v754 = vunpack.c.l.b16 %v107
  %v755 = vunpack.c.h.b16 %v107
  %v756 = vunpack.c.l.b16 %v108
  %v757 = vunpack.c.h.b16 %v108
  %v758 = vunpack.c.l.b16 %v109
  %v759 = vunpack.c.h.b16 %v109
  %v760 = vunpack.c.l.b16 %v110
  %v761 = vunpack.c.h.b16 %v110
  %v762 = vunpack.c.l.b16 %v111
  %v763 = vunpack.c.h.b16 %v111
  %v764 = vunpack.c.l.b16 %v112
  %v765 = vunpack.c.h.b16 %v112
  %v766 = vunpack.c.l.b16 %v113
  %v767 = vunpack.c.h.b16 %v113
  %v768 = vunpack.c.l.b16 %v114
  %v769 = vunpack.c.h.b16 %v114
  %v770 = vunpack.c.l.b16 %v115
  %v771 = vunpack.c.h.b16 %v115
  %v772 = vunpack.c.l.b16 %v116
  %v773 = vunpack.c.h.b16 %v116
  %v774 = vunpack.c.l.b16 %v117
  %v775 = vunpack.c.h.b16 %v117
  %v776 = vunpack.c.l.b16 %v118
  %v777 = vunpack.c.h.b16 %v118
  %v778 = vunpack.c.l.b16 %v119
  %v779 = vunpack.c.h.b16 %v119
  %v780 = vunpack.c.l.b16 %v120
  %v781 = vunpack.c.h.b16 %v120
  %v782 = vunpack.c.l.b16 %v121
  %v783 = vunpack.c.h.b16 %v121
  %v784 = vunpack.c.l.b16 %v122
  %v785 = vunpack.c.h.b16 %v122
  %v786 = vunpack.c.l.b16 %v123
  %v787 = vunpack.c.h.b16 %v123
  %v788 = vunpack.c.l.b16 %v124
  %v789 = vunpack.c.h.b16 %v124
  %v790 = vunpack.c.l.b16 %v125
  %v791 = vunpack.c.h.b16 %v125
  %v792 = vunpack.c.l.b16 %v126
  %v793 = vunpack.c.h.b16 %v126
  %v794 = vunpack.c.l.b16 %v127
  %v795 = vunpack.c.h.b16 %v127
  %v796 = vunpack.c.l.b16 %v128
  %v797 = vunpack.c.h.b16 %v128
  %v798 = vunpack.c.l.b16 %v129
  %v799 = vunpack.c.h.b16 %v129
  %v800 = vunpack.c.l.b16 %v130
  %v801 = vunpack.c.h.b16 %v130
  %v802 = vunpack.c.l.b16 %v131
  %v803 = vunpack.c.h.b16 %v131
  %v804 = vunpack.c.l.b16 %v132
  %v805 = vunpack.c.h.b16 %v132
  %v806 = vunpack.c.l.b16 %v133
  %v807 = vunpack.c.h.b16 %v133
  %v808 = vunpack.c.l.b16 %v134
  %v809 = vunpack.c.h.b16 %v134
  %v810 = vunpack.c.l.b16 %v135
  %v811 = vunpack.c.h.b16 %v135
  %v812 = vunpack.c.l.b16 %v136
  %v813 = vunpack.c.h.b16 %v136
  %v814 = vunpack.c.l.b16 %v137
  %v815 = vunpack.c.h.b16 %v137
  %v816 = vunpack.c.l.b16 %v138
  %v817 = vunpack.c.h.b16 %v138
  %v818 = vunpack.c.l.b16 %v139
  %v819 = vunpack.c.h.b16 %v139
  %v820 = vunpack.c.l.b16 %v140
  %v821 = vunpack.c.h.b16 %v140
  %v822 = vunpack.c.l.b16 %v141
  %v823 = vunpack.c.h.b16 %v141
  %v824 = vunpack.c.l.b16 %v142
  %v825 = vunpack.c.h.b16 %v142
  %v826 = vunpack.c.l.b16 %v143
  %v827 = vunpack.c.h.b16 %v143
  %v828 = vunpack.c.l.b16 %v144
  %v829 = vunpack.c.h.b16 %v144
  %v830 = vunpack.c.l.b16 %v145
  %v831 = vunpack.c.h.b16 %v145
  %v832 = vunpack.c.l.b16 %v146
  %v833 = vunpack.c.h.b16 %v146
  %v834 = vunpack.c.l.b16 %v147
  %v835 = vunpack.c.h.b16 %v147
  %v836 = vunpack.c.l.b16 %v148
  %v837 = vunpack.c.h.b16 %v148
  %v838 = vunpack.c.l.b16 %v149
  %v839 = vunpack.c.h.b16 %v149
  %v840 = vunpack.c.l.b16 %v150
  %v841 = vunpack.c.h.b16 %v150
  %v842 = vunpack.c.l.b16 %v151
  %v843 = vunpack.c.h.b16 %v151
  %v844 = vunpack.c.l.b16 %v152
  %v845 = vunpack.c.h.b16 %v152
  %v846 = vunpack.c.l.b16 %v153
  %v847 = vunpack.c.h.b16 %v153
  %v848 = vunpack.c.l.b16 %v154
  %v849 = vunpack.c.h.b16 %v154
  %v850 = vunpack.c.l.b16 %v155
  %v851 = vunpack.c.h.b16 %v155
  %v852 = vunpack.c.l.b16 %v156
  %v853 = vunpack.c.h.b16 %v156
  %v854 = vunpack.c.l.b16 %v157
  %v855 = vunpack.c.h.b16 %v157
  %v856 = vunpack.c.l.b16 %v158
  %v857 = vunpack.c.h.b16 %v158
  %v858 = vunpack.c.l.b16 %v159
  %v859 = vunpack.c.h.b16 %v159
  %v860 = vunpack.c.l.b16 %v160
  %v861 = vunpack.c.h.b16 %v160
  %v862 = vunpack.c.l.b16 %v161
  %v863 = vunpack.c.h.b16 %v161
  %v864 = vunpack.c.l.b16 %v162
  %v865 = vunpack.c.h.b16 %v162
  %v866 = vunpack.c.l.b16 %v163
  %v867 = vunpack.c.h.b16 %v163
  %v868 = vpack.c.b16 %v620, %v612
  %v869 = vpack.c.b16 %v621, %v613
  %v870 = vpack.c.b16 %v622, %v614
  %v871 = vpack.c.b16 %v623, %v615
  %v872 = vpack.c.b16 %v624, %v616
  %v873 = vpack.c.b16 %v625, %v617
  %v874 = vpack.c.b16 %v626, %v618
  %v875 = vpack.c.b16 %v627, %v619
  %v876 = vpack.c.b16 %v636, %v628
  %v877 = vpack.c.b16 %v637, %v629
  %v878 = vpack.c.b16 %v638, %v630
  %v879 = vpack.c.b16 %v639, %v631
  %v880 = vpack.c.b16 %v640, %v632
  %v881 = vpack.c.b16 %v641, %v633
  %v882 = vpack.c.b16 %v642, %v634
  %v883 = vpack.c.b16 %v643, %v635
  %v884 = vpack.c.b16 %v652, %v644
  %v885 = vpack.c.b16 %v653, %v645
  %v886 = vpack.c.b16 %v654, %v646
  %v887 = vpack.c.b16 %v655, %v647
  %v888 = vpack.c.b16 %v656, %v648
  %v889 = vpack.c.b16 %v657, %v649
  %v890 = vpack.c.b16 %v658, %v650
  %v891 = vpack.c.b16 %v659, %v651
  %v892 = vpack.c.b16 %v668, %v660
  %v893 = vpack.c.b16 %v669, %v661
  %v894 = vpack.c.b16 %v670, %v662
  %v895 = vpack.c.b16 %v671, %v663
  %v896 = vpack.c.b16 %v672, %v664
  %v897 = vpack.c.b16 %v673, %v665
  %v898 = vpack.c.b16 %v674, %v666
  %v899 = vpack.c.b16 %v675, %v667
  %v900 = vpack.c.b16 %v684, %v676
  %v901 = vpack.c.b16 %v685, %v677
  %v902 = vpack.c.b16 %v686, %v678
  %v903 = vpack.c.b16 %v687, %v679
  %v904 = vpack.c.b16 %v688, %v680
  %v905 = vpack.c.b16 %v689, %v681
  %v906 = vpack.c.b16 %v690, %v682
  %v907 = vpack.c.b16 %v691, %v683
  %v908 = vpack.c.b16 %v700, %v692
  %v909 = vpack.c.b16 %v701, %v693
  %v910 = vpack.c.b16 %v702, %v694
  %v911 = vpack.c.b16 %v703, %v695
  %v912 = vpack.c.b16 %v704, %v696
  %v913 = vpack.c.b16 %v705, %v697
  %v914 = vpack.c.b16 %v706, %v698
  %v915 = vpack.c.b16 %v707, %v699
  %v916 = vpack.c.b16 %v716, %v708
  %v917 = vpack.c.b16 %v717, %v709
  %v918 = vpack.c.b16 %v718, %v710
  %v919 = vpack.c.b16 %v719, %v711
  %v920 = vpack.c.b16 %v720, %v712
  %v921 = vpack.c.b16 %v721, %v713
  %v922 = vpack.c.b16 %v722, %v714
  %v923 = vpack.c.b16 %v723, %v715
  %v924 = vpack.c.b16 %v732, %v724
  %v925 = vpack.c.b16 %v733, %v725
  %v926 = vpack.c.b16 %v734, %v726
  %v927 = vpack.c.b16 %v735, %v727
  %v928 = vpack.c.b16 %v736, %v728
  %v929 = vpack.c.b16 %v737, %v729
  %v930 = vpack.c.b16 %v738, %v730
  %v931 = vpack.c.b16 %v739, %v731
  %v932 = vpack.c.b16 %v748, %v740
  %v933 = vpack.c.b16 %v749, %v741
  %v934 = vpack.c.b16 %v750, %v742
  %v935 = vpack.c.b16 %v751, %v743
  %v936 = vpack.c.b16 %v752, %v744
  %v937 = vpack.c.b16 %v753, %v745
  %v938 = vpack.c.b16 %v754, %v746
  %v939 = vpack.c.b16 %v755, %v747
  %v940 = vpack.c.b16 %v764, %v756
  %v941 = vpack.c.b16 %v765, %v757
  %v942 = vpack.c.b16 %v766, %v758
  %v943 = vpack.c.b16 %v767, %v759
  %v944 = vpack.c.b16 %v768, %v760
  %v945 = vpack.c.b16 %v769, %v761
  %v946 = vpack.c.b16 %v770, %v762
  %v947 = vpack.c.b16 %v771, %v763
  %v948 = vpack.c.b16 %v780, %v772
  %v949 = vpack.c.b16 %v781, %v773
  %v950 = vpack.c.b16 %v782, %v774
  %v951 = vpack.c.b16 %v783, %v775
  %v952 = vpack.c.b16 %v784, %v776
  %v953 = vpack.c.b16 %v785, %v777
  %v954 = vpack.c.b16 %v786, %v778
  %v955 = vpack.c.b16 %v787, %v779
  %v956 = vpack.c.b16 %v796, %v788
  %v957 = vpack.c.b16 %v797, %v789
  %v958 = vpack.c.b16 %v798, %v790
  %v959 = vpack.c.b16 %v799, %v791
  %v960 = vpack.c.b16 %v800, %v792
  %v961 = vpack.c.b16 %v801, %v793
  %v962 = vpack.c.b16 %v802, %v794
  %v963 = vpack.c.b16 %v803, %v795
  %v964 = vpack.c.b16 %v812, %v804
  %v965 = vpack.c.b16 %v813, %v805
  %v966 = vpack.c.b16 %v814, %v806
  %v967 = vpack.c.b16 %v815, %v807
  %v968 = vpack.c.b16 %v816, %v808
  %v969 = vpack.c.b16 %v817, %v809
  %v970 = vpack.c.b16 %v818, %v810
  %v971 = vpack.c.b16 %v819, %v811
  %v972 = vpack.c.b16 %v828, %v820
  %v973 = vpack.c.b16 %v829, %v821
  %v974 = vpack.c.b16 %v830, %v822
  %v975 = vpack.c.b16 %v831, %v823
  %v976 = vpack.c.b16 %v832, %v824
  %v977 = vpack.c.b16 %v833, %v825
  %v978 = vpack.c.b16 %v834, %v826
  %v979 = vpack.c.b16 %v835, %v827
  %v980 = vpack.c.b16 %v844, %v836
  %v981 = vpack.c.b16 %v845, %v837
  %v982 = vpack.c.b16 %v846, %v838
  %v983 = vpack.c.b16 %v847, %v839
  %v984 = vpack.c.b16 %v848, %v840
  %v985 = vpack.c.b16 %v849, %v841
  %v986 = vpack.c.b16 %v850, %v842
  %v987 = vpack.c.b16 %v851, %v843
  %v988 = vpack.c.b16 %v860, %v852
  %v989 = vpack.c.b16 %v861, %v853
  %v990 = vpack.c.b16 %v862, %v854
  %v991 = vpack.c.b16 %v863, %v855
  %v992 = vpack.c.b16 %v864, %v856
  %v993 = vpack.c.b16 %v865, %v857
  %v994 = vpack.c.b16 %v866, %v858
  %v995 = vpack.c.b16 %v867, %v859
  %v1252 = vunpack.c.l.b16 %v164
  %v1253 = vunpack.c.l.b16 %v165
  %v1254 = vunpack.c.l.b16 %v166
  %v1255 = vunpack.c.l.b16 %v167
  %v1256 = vunpack.c.l.b16 %v168
  %v1257 = vunpack.c.l.b16 %v169
  %v1258 = vunpack.c.l.b16 %v170
  %v1259 = vunpack.c.l.b16 %v171
  %v1260 = vunpack.c.l.b16 %v172
  %v1261 = vunpack.c.l.b16 %v173
  %v1262 = vunpack.c.l.b16 %v174
  %v1263 = vunpack.c.l.b16 %v175
  %v1264 = vunpack.c.l.b16 %v176
  %v1265 = vunpack.c.l.b16 %v177
  %v1266 = vunpack.c.l.b16 %v178
  %v1267 = vunpack.c.l.b16 %v179
  %v1268 = vunpack.c.l.b16 %v180
  %v1269 = vunpack.c.l.b16 %v181
  %v1270 = vunpack.c.l.b16 %v182
  %v1271 = vunpack.c.l.b16 %v183
  %v1272 = vunpack.c.l.b16 %v184
  %v1273 = vunpack.c.l.b16 %v185
  %v1274 = vunpack.c.l.b16 %v186
  %v1275 = vunpack.c.l.b16 %v187
  %v1276 = vunpack.c.l.b16 %v188
  %v1277 = vunpack.c.l.b16 %v189
  %v1278 = vunpack.c.l.b16 %v190
  %v1279 = vunpack.c.l.b16 %v191
  %v1280 = vunpack.c.l.b16 %v192
  %v1281 = vunpack.c.l.b16 %v193
  %v1282 = vunpack.c.l.b16 %v194
  %v1283 = vunpack.c.l.b16 %v195
  %v1284 = vunpack.c.l.b16 %v196
  %v1285 = vunpack.c.l.b16 %v197
  %v1286 = vunpack.c.l.b16 %v198
  %v1287 = vunpack.c.l.b16 %v199
  %v1288 = vunpack.c.l.b16 %v200
  %v1289 = vunpack.c.l.b16 %v201
  %v1290 = vunpack.c.l.b16 %v202
  %v1291 = vunpack.c.l.b16 %v203
  %v1292 = vunpack.c.l.b16 %v204
  %v1293 = vunpack.c.l.b16 %v205
  %v1294 = vunpack.c.l.b16 %v206
  %v1295 = vunpack.c.l.b16 %v207
  %v1296 = vunpack.c.l.b16 %v208
  %v1297 = vunpack.c.l.b16 %v209
  %v1298 = vunpack.c.l.b16 %v210
  %v1299 = vunpack.c.l.b16 %v211
  %v1300 = vunpack.c.l.b16 %v212
  %v1301 = vunpack.c.l.b16 %v213
  %v1302 = vunpack.c.l.b16 %v214
  %v1303 = vunpack.c.l.b16 %v215
  %v1304 = vunpack.c.l.b16 %v216
  %v1305 = vunpack.c.l.b16 %v217
  %v1306 = vunpack.c.l.b16 %v218
  %v1307 = vunpack.c.l.b16 %v219
  %v1308 = vunpack.c.l.b16 %v220
  %v1309 = vunpack.c.l.b16 %v221
  %v1310 = vunpack.c.l.b16 %v222
  %v1311 = vunpack.c.l.b16 %v223
  %v1312 = vunpack.c.l.b16 %v224
  %v1313 = vunpack.c.l.b16 %v225
  %v1314 = vunpack.c.l.b16 %v226
  %v1315 = vunpack.c.l.b16 %v227
  %v1316 = vunpack.c.l.b16 %v228
  %v1317 = vunpack.c.l.b16 %v229
  %v1318 = vunpack.c.l.b16 %v230
  %v1319 = vunpack.c.l.b16 %v231
  %v1320 = vunpack.c.l.b16 %v232
  %v1321 = vunpack.c.l.b16 %v233
  %v1322 = vunpack.c.l.b16 %v234
  %v1323 = vunpack.c.l.b16 %v235
  %v1324 = vunpack.c.l.b16 %v236
  %v1325 = vunpack.c.l.b16 %v237
  %v1326 = vunpack.c.l.b16 %v238
  %v1327 = vunpack.c.l.b16 %v239
  %v1328 = vunpack.c.l.b16 %v240
  %v1329 = vunpack.c.l.b16 %v241
  %v1330 = vunpack.c.l.b16 %v242
  %v1331 = vunpack.c.l.b16 %v243
  %v1332 = vunpack.c.l.b16 %v244
  %v1333 = vunpack.c.l.b16 %v245
  %v1334 = vunpack.c.l.b16 %v246
  %v1335 = vunpack.c.l.b16 %v247
  %v1336 = vunpack.c.l.b16 %v248
  %v1337 = vunpack.c.l.b16 %v249
  %v1338 = vunpack.c.l.b16 %v250
  %v1339 = vunpack.c.l.b16 %v251
  %v1340 = vunpack.c.l.b16 %v252
  %v1341 = vunpack.c.l.b16 %v253
  %v1342 = vunpack.c.l.b16 %v254
  %v1343 = vunpack.c.l.b16 %v255
  %v1344 = vunpack.c.l.b16 %v256
  %v1345 = vunpack.c.l.b16 %v257
  %v1346 = vunpack.c.l.b16 %v258
  %v1347 = vunpack.c.l.b16 %v259
  %v1348 = vunpack.c.l.b16 %v260
  %v1349 = vunpack.c.l.b16 %v261
  %v1350 = vunpack.c.l.b16 %v262
  %v1351 = vunpack.c.l.b16 %v263
  %v1352 = vunpack.c.l.b16 %v264
  %v1353 = vunpack.c.l.b16 %v265
  %v1354 = vunpack.c.l.b16 %v266
  %v1355 = vunpack.c.l.b16 %v267
  %v1356 = vunpack.c.l.b16 %v268
  %v1357 = vunpack.c.l.b16 %v269
  %v1358 = vunpack.c.l.b16 %v270
  %v1359 = vunpack.c.l.b16 %v271
  %v1360 = vunpack.c.l.b16 %v272
  %v1361 = vunpack.c.l.b16 %v273
  %v1362 = vunpack.c.l.b16 %v274
  %v1363 = vunpack.c.l.b16 %v275
  %v1364 = vunpack.c.l.b16 %v276
  %v1365 = vunpack.c.l.b16 %v277
  %v1366 = vunpack.c.l.b16 %v278
  %v1367 = vunpack.c.l.b16 %v279
  %v1368 = vunpack.c.l.b16 %v280
  %v1369 = vunpack.c.l.b16 %v281
  %v1370 = vunpack.c.l.b16 %v282
  %v1371 = vunpack.c.l.b16 %v283
  %v1372 = vunpack.c.l.b16 %v284
  %v1373 = vunpack.c.l.b16 %v285
  %v1374 = vunpack.c.l.b16 %v286
  %v1375 = vunpack.c.l.b16 %v287
  %v1376 = vunpack.c.l.b16 %v288
  %v1377 = vunpack.c.l.b16 %v289
  %v1378 = vunpack.c.l.b16 %v290
  %v1379 = vunpack.c.l.b16 %v291
  %v1380 = vpack.c.b16 %v1253, %v1252
  %v1381 = vpack.c.b16 %v1255, %v1254
  %v1382 = vpack.c.b16 %v1257, %v1256
  %v1383 = vpack.c.b16 %v1259, %v1258
  %v1384 = vpack.c.b16 %v1261, %v1260
  %v1385 = vpack.c.b16 %v1263, %v1262
  %v1386 = vpack.c.b16 %v1265, %v1264
  %v1387 = vpack.c.b16 %v1267, %v1266
  %v1388 = vpack.c.b16 %v1269, %v1268
  %v1389 = vpack.c.b16 %v1271, %v1270
  %v1390 = vpack.c.b16 %v1273, %v1272
  %v1391 = vpack.c.b16 %v1275, %v1274
  %v1392 = vpack.c.b16 %v1277, %v1276
  %v1393 = vpack.c.b16 %v1279, %v1278
  %v1394 = vpack.c.b16 %v1281, %v1280
  %v1395 = vpack.c.b16 %v1283, %v1282
  %v1396 = vpack.c.b16 %v1285, %v1284
  %v1397 = vpack.c.b16 %v1287, %v1286
  %v1398 = vpack.c.b16 %v1289, %v1288
  %v1399 = vpack.c.b16 %v1291, %v1290
  %v1400 = vpack.c.b16 %v1293, %v1292
  %v1401 = vpack.c.b16 %v1295, %v1294
  %v1402 = vpack.c.b16 %v1297, %v1296
  %v1403 = vpack.c.b16 %v1299, %v1298
  %v1404 = vpack.c.b16 %v1301, %v1300
  %v1405 = vpack.c.b16 %v1303, %v1302
  %v1406 = vpack.c.b16 %v1305, %v1304
  %v1407 = vpack.c.b16 %v1307, %v1306
  %v1408 = vpack.c.b16 %v1309, %v1308
  %v1409 = vpack.c.b16 %v1311, %v1310
  %v1410 = vpack.c.b16 %v1313, %v1312
  %v1411 = vpack.c.b16 %v1315, %v1314
  %v1412 = vpack.c.b16 %v1317, %v1316
  %v1413 = vpack.c.b16 %v1319, %v1318
  %v1414 = vpack.c.b16 %v1321, %v1320
  %v1415 = vpack.c.b16 %v1323, %v1322
  %v1416 = vpack.c.b16 %v1325, %v1324
  %v1417 = vpack.c.b16 %v1327, %v1326
  %v1418 = vpack.c.b16 %v1329, %v1328
  %v1419 = vpack.c.b16 %v1331, %v1330
  %v1420 = vpack.c.b16 %v1333, %v1332
  %v1421 = vpack.c.b16 %v1335, %v1334
  %v1422 = vpack.c.b16 %v1337, %v1336
  %v1423 = vpack.c.b16 %v1339, %v1338
  %v1424 = vpack.c.b16 %v1341, %v1340
  %v1425 = vpack.c.b16 %v1343, %v1342
  %v1426 = vpack.c.b16 %v1345, %v1344
  %v1427 = vpack.c.b16 %v1347, %v1346
  %v1428 = vpack.c.b16 %v1349, %v1348
  %v1429 = vpack.c.b16 %v1351, %v1350
  %v1430 = vpack.c.b16 %v1353, %v1352
  %v1431 = vpack.c.b16 %v1355, %v1354
  %v1432 = vpack.c.b16 %v1357, %v1356
  %v1433 = vpack.c.b16 %v1359, %v1358
  %v1434 = vpack.c.b16 %v1361, %v1360
  %v1435 = vpack.c.b16 %v1363, %v1362
  %v1436 = vpack.c.b16 %v1365, %v1364
  %v1437 = vpack.c.b16 %v1367, %v1366
  %v1438 = vpack.c.b16 %v1369, %v1368
  %v1439 = vpack.c.b16 %v1371, %v1370
  %v1440 = vpack.c.b16 %v1373, %v1372
  %v1441 = vpack.c.b16 %v1375, %v1374
  %v1442 = vpack.c.b16 %v1377, %v1376
  %v1443 = vpack.c.b16 %v1379, %v1378
  %1508 = vmatprep.subr.bf16.mxu0 0
  %1509 = vmatpush1.bf16.msra.mxu0 %v1380
  %1510 = vmatprep.subr.bf16.mxu0 0
  %1511 = vmatpush1.bf16.msra.mxu0 %v1381
  %1512 = vmatprep.subr.bf16.mxu0 0
  %1513 = vmatpush1.bf16.msra.mxu0 %v1382
  %1514 = vmatprep.subr.bf16.mxu0 0
  %1515 = vmatpush1.bf16.msra.mxu0 %v1383
  %1516 = vmatprep.subr.bf16.mxu0 0
  %1517 = vmatpush1.bf16.msra.mxu0 %v1384
  %1518 = vmatprep.subr.bf16.mxu0 0
  %1519 = vmatpush1.bf16.msra.mxu0 %v1385
  %1520 = vmatprep.subr.bf16.mxu0 0
  %1521 = vmatpush1.bf16.msra.mxu0 %v1386
  %1522 = vmatprep.subr.bf16.mxu0 0
  %1523 = vmatpush1.bf16.msra.mxu0 %v1387
  %1524 = vmatprep.subr.bf16.mxu0 0
  %1525 = vmatpush1.bf16.msra.mxu0 %v1388
  %1526 = vmatprep.subr.bf16.mxu0 0
  %1527 = vmatpush1.bf16.msra.mxu0 %v1389
  %1528 = vmatprep.subr.bf16.mxu0 0
  %1529 = vmatpush1.bf16.msra.mxu0 %v1390
  %1530 = vmatprep.subr.bf16.mxu0 0
  %1531 = vmatpush1.bf16.msra.mxu0 %v1391
  %1532 = vmatprep.subr.bf16.mxu0 0
  %1533 = vmatpush1.bf16.msra.mxu0 %v1392
  %1534 = vmatprep.subr.bf16.mxu0 0
  %1535 = vmatpush1.bf16.msra.mxu0 %v1393
  %1536 = vmatprep.subr.bf16.mxu0 0
  %1537 = vmatpush1.bf16.msra.mxu0 %v1394
  %1538 = vmatprep.subr.bf16.mxu0 0
  %1539 = vmatpush1.bf16.msra.mxu0 %v1395
  %1540 = vmatprep.mubr.bf16.mxu0 %v869
  %1541 = vmatmul.mubr.bf16.gmra.mrb[0].mxu0 %v868
  %v1542 = vpop.f32.mrb[0].mxu0
  %v1543 = vadd.f32 %v327, %v1542
  %v1544 = vpop.f32.mrb[0].mxu0
  %v1545 = vpop.f32.mrb[0].mxu0
  %v1546 = vadd.f32 %v332, %v1545
  %v1547 = vpop.f32.mrb[0].mxu0
  %1548 = vmatprep.mubr.bf16.mxu0 %v877
  %1549 = vmatmul.mubr.bf16.gmra.mrb[0].mxu0 %v876
  %v1550 = vpop.f32.mrb[0].mxu0
  %v1551 = vadd.f32 %v337, %v1550
  %v1552 = vpop.f32.mrb[0].mxu0
  %v1553 = vpop.f32.mrb[0].mxu0
  %v1554 = vadd.f32 %v342, %v1553
  %v1555 = vpop.f32.mrb[0].mxu0
  %1556 = vmatprep.mubr.bf16.mxu0 %v885
  %1557 = vmatmul.mubr.bf16.gmra.mrb[0].mxu0 %v884
  %v1558 = vpop.f32.mrb[0].mxu0
  %v1559 = vadd.f32 %v347, %v1558
  %v1560 = vpop.f32.mrb[0].mxu0
  %v1561 = vpop.f32.mrb[0].mxu0
  %v1562 = vadd.f32 %v352, %v1561
  %v1563 = vpop.f32.mrb[0].mxu0
  %1564 = vmatprep.mubr.bf16.mxu0 %v893
  %1565 = vmatmul.mubr.bf16.gmra.mrb[0].mxu0 %v892
  %v1566 = vpop.f32.mrb[0].mxu0
  %v1567 = vadd.f32 %v357, %v1566
  %v1568 = vpop.f32.mrb[0].mxu0
  %v1569 = vpop.f32.mrb[0].mxu0
  %v1570 = vadd.f32 %v362, %v1569
  %v1571 = vpop.f32.mrb[0].mxu0
  %1572 = vmatprep.mubr.bf16.mxu0 %v901
  %1573 = vmatmul.mubr.bf16.gmra.mrb[0].mxu0 %v900
  %v1574 = vpop.f32.mrb[0].mxu0
  %v1575 = vadd.f32 %v367, %v1574
  %v1576 = vpop.f32.mrb[0].mxu0
  %v1577 = vpop.f32.mrb[0].mxu0
  %v1578 = vadd.f32 %v372, %v1577
  %v1579 = vpop.f32.mrb[0].mxu0
  %1580 = vmatprep.mubr.bf16.mxu0 %v909
  %1581 = vmatmul.mubr.bf16.gmra.mrb[0].mxu0 %v908
  %v1582 = vpop.f32.mrb[0].mxu0
  %v1583 = vadd.f32 %v377, %v1582
  %v1584 = vpop.f32.mrb[0].mxu0
  %v1585 = vpop.f32.mrb[0].mxu0
  %v1586 = vadd.f32 %v382, %v1585
  %v1587 = vpop.f32.mrb[0].mxu0
  %1588 = vmatprep.mubr.bf16.mxu0 %v917
  %1589 = vmatmul.mubr.bf16.gmra.mrb[0].mxu0 %v916
  %v1590 = vpop.f32.mrb[0].mxu0
  %v1591 = vadd.f32 %v387, %v1590
  %v1592 = vpop.f32.mrb[0].mxu0
  %v1593 = vpop.f32.mrb[0].mxu0
  %v1594 = vadd.f32 %v392, %v1593
  %v1595 = vpop.f32.mrb[0].mxu0
  %1596 = vmatprep.mubr.bf16.mxu0 %v925
  %1597 = vmatmul.mubr.bf16.gmra.mrb[0].mxu0 %v924
  %v1598 = vpop.f32.mrb[0].mxu0
  %v1599 = vadd.f32 %v397, %v1598
  %v1600 = vpop.f32.mrb[0].mxu0
  %v1601 = vpop.f32.mrb[0].mxu0
  %v1602 = vadd.f32 %v402, %v1601
  %v1603 = vpop.f32.mrb[0].mxu0
  %1604 = vmatprep.mubr.bf16.mxu0 %v933
  %1605 = vmatmul.mubr.bf16.gmra.mrb[0].mxu0 %v932
  %v1606 = vpop.f32.mrb[0].mxu0
  %v1607 = vadd.f32 %v407, %v1606
  %v1608 = vpop.f32.mrb[0].mxu0
  %v1609 = vpop.f32.mrb[0].mxu0
  %v1610 = vadd.f32 %v412, %v1609
  %v1611 = vpop.f32.mrb[0].mxu0
  %1612 = vmatprep.mubr.bf16.mxu0 %v941
  %1613 = vmatmul.mubr.bf16.gmra.mrb[0].mxu0 %v940
  %v1614 = vpop.f32.mrb[0].mxu0
  %v1615 = vadd.f32 %v417, %v1614
  %v1616 = vpop.f32.mrb[0].mxu0
  %v1617 = vpop.f32.mrb[0].mxu0
  %v1618 = vadd.f32 %v422, %v1617
  %v1619 = vpop.f32.mrb[0].mxu0
  %1620 = vmatprep.mubr.bf16.mxu0 %v949
  %1621 = vmatmul.mubr.bf16.gmra.mrb[0].mxu0 %v948
  %v1622 = vpop.f32.mrb[0].mxu0
  %v1623 = vadd.f32 %v427, %v1622
  %v1624 = vpop.f32.mrb[0].mxu0
  %v1625 = vpop.f32.mrb[0].mxu0
  %v1626 = vadd.f32 %v432, %v1625
  %v1627 = vpop.f32.mrb[0].mxu0
  %1628 = vmatprep.mubr.bf16.mxu0 %v957
  %1629 = vmatmul.mubr.bf16.gmra.mrb[0].mxu0 %v956
  %v1630 = vpop.f32.mrb[0].mxu0
  %v1631 = vadd.f32 %v437, %v1630
  %v1632 = vpop.f32.mrb[0].mxu0
  %v1633 = vpop.f32.mrb[0].mxu0
  %v1634 = vadd.f32 %v442, %v1633
  %v1635 = vpop.f32.mrb[0].mxu0
  %1636 = vmatprep.mubr.bf16.mxu0 %v965
  %1637 = vmatmul.mubr.bf16.gmra.mrb[0].mxu0 %v964
  %v1638 = vpop.f32.mrb[0].mxu0
  %v1639 = vadd.f32 %v447, %v1638
  %v1640 = vpop.f32.mrb[0].mxu0
  %v1641 = vpop.f32.mrb[0].mxu0
  %v1642 = vadd.f32 %v452, %v1641
  %v1643 = vpop.f32.mrb[0].mxu0
  %1644 = vmatprep.mubr.bf16.mxu0 %v973
  %1645 = vmatmul.mubr.bf16.gmra.mrb[0].mxu0 %v972
  %v1646 = vpop.f32.mrb[0].mxu0
  %v1647 = vadd.f32 %v457, %v1646
  %v1648 = vpop.f32.mrb[0].mxu0
  %v1649 = vpop.f32.mrb[0].mxu0
  %v1650 = vadd.f32 %v462, %v1649
  %v1651 = vpop.f32.mrb[0].mxu0
  %1652 = vmatprep.mubr.bf16.mxu0 %v981
  %1653 = vmatmul.mubr.bf16.gmra.mrb[0].mxu0 %v980
  %v1654 = vpop.f32.mrb[0].mxu0
  %v1655 = vadd.f32 %v467, %v1654
  %v1656 = vpop.f32.mrb[0].mxu0
  %v1657 = vpop.f32.mrb[0].mxu0
  %v1658 = vadd.f32 %v472, %v1657
  %v1659 = vpop.f32.mrb[0].mxu0
  %1660 = vmatprep.mubr.bf16.mxu0 %v989
  %1661 = vmatmul.mubr.bf16.gmra.mrb[0].mxu0 %v988
  %v1662 = vpop.f32.mrb[0].mxu0
  %v1663 = vadd.f32 %v477, %v1662
  %v1664 = vpop.f32.mrb[0].mxu0
  %v1665 = vpop.f32.mrb[0].mxu0
  %v1666 = vadd.f32 %v482, %v1665
  %v1667 = vpop.f32.mrb[0].mxu0
  %1668 = vdwg.mxu0
  %1669 = vmatprep.subr.bf16.mxu0 0
  %1670 = vmatpush1.bf16.msra.mxu0 %v1396
  %1671 = vmatprep.subr.bf16.mxu0 0
  %1672 = vmatpush1.bf16.msra.mxu0 %v1397
  %1673 = vmatprep.subr.bf16.mxu0 0
  %1674 = vmatpush1.bf16.msra.mxu0 %v1398
  %1675 = vmatprep.subr.bf16.mxu0 0
  %1676 = vmatpush1.bf16.msra.mxu0 %v1399
  %1677 = vmatprep.subr.bf16.mxu0 0
  %1678 = vmatpush1.bf16.msra.mxu0 %v1400
  %1679 = vmatprep.subr.bf16.mxu0 0
  %1680 = vmatpush1.bf16.msra.mxu0 %v1401
  %1681 = vmatprep.subr.bf16.mxu0 0
  %1682 = vmatpush1.bf16.msra.mxu0 %v1402
  %1683 = vmatprep.subr.bf16.mxu0 0
  %1684 = vmatpush1.bf16.msra.mxu0 %v1403
  %1685 = vmatprep.subr.bf16.mxu0 0
  %1686 = vmatpush1.bf16.msra.mxu0 %v1404
  %1687 = vmatprep.subr.bf16.mxu0 0
  %1688 = vmatpush1.bf16.msra.mxu0 %v1405
  %1689 = vmatprep.subr.bf16.mxu0 0
  %1690 = vmatpush1.bf16.msra.mxu0 %v1406
  %1691 = vmatprep.subr.bf16.mxu0 0
  %1692 = vmatpush1.bf16.msra.mxu0 %v1407
  %1693 = vmatprep.subr.bf16.mxu0 0
  %1694 = vmatpush1.bf16.msra.mxu0 %v1408
  %1695 = vmatprep.subr.bf16.mxu0 0
  %1696 = vmatpush1.bf16.msra.mxu0 %v1409
  %1697 = vmatprep.subr.bf16.mxu0 0
  %1698 = vmatpush1.bf16.msra.mxu0 %v1410
  %1699 = vmatprep.subr.bf16.mxu0 0
  %1700 = vmatpush1.bf16.msra.mxu0 %v1411
  %1701 = vmatprep.mubr.bf16.mxu0 %v871
  %1702 = vmatmul.mubr.bf16.gmra.mrb[0].mxu0 %v870
  %v1703 = vpop.f32.mrb[0].mxu0
  %v1704 = vadd.f32 %v1543, %v1703
  %v1705 = vpop.f32.mrb[0].mxu0
  %v1706 = vpop.f32.mrb[0].mxu0
  %v1707 = vadd.f32 %v1546, %v1706
  %v1708 = vpop.f32.mrb[0].mxu0
  %1709 = vmatprep.mubr.bf16.mxu0 %v879
  %1710 = vmatmul.mubr.bf16.gmra.mrb[0].mxu0 %v878
  %v1711 = vpop.f32.mrb[0].mxu0
  %v1712 = vadd.f32 %v1551, %v1711
  %v1713 = vpop.f32.mrb[0].mxu0
  %v1714 = vpop.f32.mrb[0].mxu0
  %v1715 = vadd.f32 %v1554, %v1714
  %v1716 = vpop.f32.mrb[0].mxu0
  %1717 = vmatprep.mubr.bf16.mxu0 %v887
  %1718 = vmatmul.mubr.bf16.gmra.mrb[0].mxu0 %v886
  %v1719 = vpop.f32.mrb[0].mxu0
  %v1720 = vadd.f32 %v1559, %v1719
  %v1721 = vpop.f32.mrb[0].mxu0
  %v1722 = vpop.f32.mrb[0].mxu0
  %v1723 = vadd.f32 %v1562, %v1722
  %v1724 = vpop.f32.mrb[0].mxu0
  %1725 = vmatprep.mubr.bf16.mxu0 %v895
  %1726 = vmatmul.mubr.bf16.gmra.mrb[0].mxu0 %v894
  %v1727 = vpop.f32.mrb[0].mxu0
  %v1728 = vadd.f32 %v1567, %v1727
  %v1729 = vpop.f32.mrb[0].mxu0
  %v1730 = vpop.f32.mrb[0].mxu0
  %v1731 = vadd.f32 %v1570, %v1730
  %v1732 = vpop.f32.mrb[0].mxu0
  %1733 = vmatprep.mubr.bf16.mxu0 %v903
  %1734 = vmatmul.mubr.bf16.gmra.mrb[0].mxu0 %v902
  %v1735 = vpop.f32.mrb[0].mxu0
  %v1736 = vadd.f32 %v1575, %v1735
  %v1737 = vpop.f32.mrb[0].mxu0
  %v1738 = vpop.f32.mrb[0].mxu0
  %v1739 = vadd.f32 %v1578, %v1738
  %v1740 = vpop.f32.mrb[0].mxu0
  %1741 = vmatprep.mubr.bf16.mxu0 %v911
  %1742 = vmatmul.mubr.bf16.gmra.mrb[0].mxu0 %v910
  %v1743 = vpop.f32.mrb[0].mxu0
  %v1744 = vadd.f32 %v1583, %v1743
  %v1745 = vpop.f32.mrb[0].mxu0
  %v1746 = vpop.f32.mrb[0].mxu0
  %v1747 = vadd.f32 %v1586, %v1746
  %v1748 = vpop.f32.mrb[0].mxu0
  %1749 = vmatprep.mubr.bf16.mxu0 %v919
  %1750 = vmatmul.mubr.bf16.gmra.mrb[0].mxu0 %v918
  %v1751 = vpop.f32.mrb[0].mxu0
  %v1752 = vadd.f32 %v1591, %v1751
  %v1753 = vpop.f32.mrb[0].mxu0
  %v1754 = vpop.f32.mrb[0].mxu0
  %v1755 = vadd.f32 %v1594, %v1754
  %v1756 = vpop.f32.mrb[0].mxu0
  %1757 = vmatprep.mubr.bf16.mxu0 %v927
  %1758 = vmatmul.mubr.bf16.gmra.mrb[0].mxu0 %v926
  %v1759 = vpop.f32.mrb[0].mxu0
  %v1760 = vadd.f32 %v1599, %v1759
  %v1761 = vpop.f32.mrb[0].mxu0
  %v1762 = vpop.f32.mrb[0].mxu0
  %v1763 = vadd.f32 %v1602, %v1762
  %v1764 = vpop.f32.mrb[0].mxu0
  %1765 = vmatprep.mubr.bf16.mxu0 %v935
  %1766 = vmatmul.mubr.bf16.gmra.mrb[0].mxu0 %v934
  %v1767 = vpop.f32.mrb[0].mxu0
  %v1768 = vadd.f32 %v1607, %v1767
  %v1769 = vpop.f32.mrb[0].mxu0
  %v1770 = vpop.f32.mrb[0].mxu0
  %v1771 = vadd.f32 %v1610, %v1770
  %v1772 = vpop.f32.mrb[0].mxu0
  %1773 = vmatprep.mubr.bf16.mxu0 %v943
  %1774 = vmatmul.mubr.bf16.gmra.mrb[0].mxu0 %v942
  %v1775 = vpop.f32.mrb[0].mxu0
  %v1776 = vadd.f32 %v1615, %v1775
  %v1777 = vpop.f32.mrb[0].mxu0
  %v1778 = vpop.f32.mrb[0].mxu0
  %v1779 = vadd.f32 %v1618, %v1778
  %v1780 = vpop.f32.mrb[0].mxu0
  %1781 = vmatprep.mubr.bf16.mxu0 %v951
  %1782 = vmatmul.mubr.bf16.gmra.mrb[0].mxu0 %v950
  %v1783 = vpop.f32.mrb[0].mxu0
  %v1784 = vadd.f32 %v1623, %v1783
  %v1785 = vpop.f32.mrb[0].mxu0
  %v1786 = vpop.f32.mrb[0].mxu0
  %v1787 = vadd.f32 %v1626, %v1786
  %v1788 = vpop.f32.mrb[0].mxu0
  %1789 = vmatprep.mubr.bf16.mxu0 %v959
  %1790 = vmatmul.mubr.bf16.gmra.mrb[0].mxu0 %v958
  %v1791 = vpop.f32.mrb[0].mxu0
  %v1792 = vadd.f32 %v1631, %v1791
  %v1793 = vpop.f32.mrb[0].mxu0
  %v1794 = vpop.f32.mrb[0].mxu0
  %v1795 = vadd.f32 %v1634, %v1794
  %v1796 = vpop.f32.mrb[0].mxu0
  %1797 = vmatprep.mubr.bf16.mxu0 %v967
  %1798 = vmatmul.mubr.bf16.gmra.mrb[0].mxu0 %v966
  %v1799 = vpop.f32.mrb[0].mxu0
  %v1800 = vadd.f32 %v1639, %v1799
  %v1801 = vpop.f32.mrb[0].mxu0
  %v1802 = vpop.f32.mrb[0].mxu0
  %v1803 = vadd.f32 %v1642, %v1802
  %v1804 = vpop.f32.mrb[0].mxu0
  %1805 = vmatprep.mubr.bf16.mxu0 %v975
  %1806 = vmatmul.mubr.bf16.gmra.mrb[0].mxu0 %v974
  %v1807 = vpop.f32.mrb[0].mxu0
  %v1808 = vadd.f32 %v1647, %v1807
  %v1809 = vpop.f32.mrb[0].mxu0
  %v1810 = vpop.f32.mrb[0].mxu0
  %v1811 = vadd.f32 %v1650, %v1810
  %v1812 = vpop.f32.mrb[0].mxu0
  %1813 = vmatprep.mubr.bf16.mxu0 %v983
  %1814 = vmatmul.mubr.bf16.gmra.mrb[0].mxu0 %v982
  %v1815 = vpop.f32.mrb[0].mxu0
  %v1816 = vadd.f32 %v1655, %v1815
  %v1817 = vpop.f32.mrb[0].mxu0
  %v1818 = vpop.f32.mrb[0].mxu0
  %v1819 = vadd.f32 %v1658, %v1818
  %v1820 = vpop.f32.mrb[0].mxu0
  %1821 = vmatprep.mubr.bf16.mxu0 %v991
  %1822 = vmatmul.mubr.bf16.gmra.mrb[0].mxu0 %v990
  %v1823 = vpop.f32.mrb[0].mxu0
  %v1824 = vadd.f32 %v1663, %v1823
  %v1825 = vpop.f32.mrb[0].mxu0
  %v1826 = vpop.f32.mrb[0].mxu0
  %v1827 = vadd.f32 %v1666, %v1826
  %v1828 = vpop.f32.mrb[0].mxu0
  %1829 = vdwg.mxu0
  %1830 = vmatprep.subr.bf16.mxu0 0
  %1831 = vmatpush1.bf16.msra.mxu0 %v1412
  %1832 = vmatprep.subr.bf16.mxu0 0
  %1833 = vmatpush1.bf16.msra.mxu0 %v1413
  %1834 = vmatprep.subr.bf16.mxu0 0
  %1835 = vmatpush1.bf16.msra.mxu0 %v1414
  %1836 = vmatprep.subr.bf16.mxu0 0
  %1837 = vmatpush1.bf16.msra.mxu0 %v1415
  %1838 = vmatprep.subr.bf16.mxu0 0
  %1839 = vmatpush1.bf16.msra.mxu0 %v1416
  %1840 = vmatprep.subr.bf16.mxu0 0
  %1841 = vmatpush1.bf16.msra.mxu0 %v1417
  %1842 = vmatprep.subr.bf16.mxu0 0
  %1843 = vmatpush1.bf16.msra.mxu0 %v1418
  %1844 = vmatprep.subr.bf16.mxu0 0
  %1845 = vmatpush1.bf16.msra.mxu0 %v1419
  %1846 = vmatprep.subr.bf16.mxu0 0
  %1847 = vmatpush1.bf16.msra.mxu0 %v1420
  %1848 = vmatprep.subr.bf16.mxu0 0
  %1849 = vmatpush1.bf16.msra.mxu0 %v1421
  %1850 = vmatprep.subr.bf16.mxu0 0
  %1851 = vmatpush1.bf16.msra.mxu0 %v1422
  %1852 = vmatprep.subr.bf16.mxu0 0
  %1853 = vmatpush1.bf16.msra.mxu0 %v1423
  %1854 = vmatprep.subr.bf16.mxu0 0
  %1855 = vmatpush1.bf16.msra.mxu0 %v1424
  %1856 = vmatprep.subr.bf16.mxu0 0
  %1857 = vmatpush1.bf16.msra.mxu0 %v1425
  %1858 = vmatprep.subr.bf16.mxu0 0
  %1859 = vmatpush1.bf16.msra.mxu0 %v1426
  %1860 = vmatprep.subr.bf16.mxu0 0
  %1861 = vmatpush1.bf16.msra.mxu0 %v1427
  %1862 = vmatprep.mubr.bf16.mxu0 %v873
  %1863 = vmatmul.mubr.bf16.gmra.mrb[0].mxu0 %v872
  %v1864 = vpop.f32.mrb[0].mxu0
  %v1865 = vadd.f32 %v1704, %v1864
  %v1866 = vpop.f32.mrb[0].mxu0
  %v1867 = vpop.f32.mrb[0].mxu0
  %v1868 = vadd.f32 %v1707, %v1867
  %v1869 = vpop.f32.mrb[0].mxu0
  %1870 = vmatprep.mubr.bf16.mxu0 %v881
  %1871 = vmatmul.mubr.bf16.gmra.mrb[0].mxu0 %v880
  %v1872 = vpop.f32.mrb[0].mxu0
  %v1873 = vadd.f32 %v1712, %v1872
  %v1874 = vpop.f32.mrb[0].mxu0
  %v1875 = vpop.f32.mrb[0].mxu0
  %v1876 = vadd.f32 %v1715, %v1875
  %v1877 = vpop.f32.mrb[0].mxu0
  %1878 = vmatprep.mubr.bf16.mxu0 %v889
  %1879 = vmatmul.mubr.bf16.gmra.mrb[0].mxu0 %v888
  %v1880 = vpop.f32.mrb[0].mxu0
  %v1881 = vadd.f32 %v1720, %v1880
  %v1882 = vpop.f32.mrb[0].mxu0
  %v1883 = vpop.f32.mrb[0].mxu0
  %v1884 = vadd.f32 %v1723, %v1883
  %v1885 = vpop.f32.mrb[0].mxu0
  %1886 = vmatprep.mubr.bf16.mxu0 %v897
  %1887 = vmatmul.mubr.bf16.gmra.mrb[0].mxu0 %v896
  %v1888 = vpop.f32.mrb[0].mxu0
  %v1889 = vadd.f32 %v1728, %v1888
  %v1890 = vpop.f32.mrb[0].mxu0
  %v1891 = vpop.f32.mrb[0].mxu0
  %v1892 = vadd.f32 %v1731, %v1891
  %v1893 = vpop.f32.mrb[0].mxu0
  %1894 = vmatprep.mubr.bf16.mxu0 %v905
  %1895 = vmatmul.mubr.bf16.gmra.mrb[0].mxu0 %v904
  %v1896 = vpop.f32.mrb[0].mxu0
  %v1897 = vadd.f32 %v1736, %v1896
  %v1898 = vpop.f32.mrb[0].mxu0
  %v1899 = vpop.f32.mrb[0].mxu0
  %v1900 = vadd.f32 %v1739, %v1899
  %v1901 = vpop.f32.mrb[0].mxu0
  %1902 = vmatprep.mubr.bf16.mxu0 %v913
  %1903 = vmatmul.mubr.bf16.gmra.mrb[0].mxu0 %v912
  %v1904 = vpop.f32.mrb[0].mxu0
  %v1905 = vadd.f32 %v1744, %v1904
  %v1906 = vpop.f32.mrb[0].mxu0
  %v1907 = vpop.f32.mrb[0].mxu0
  %v1908 = vadd.f32 %v1747, %v1907
  %v1909 = vpop.f32.mrb[0].mxu0
  %1910 = vmatprep.mubr.bf16.mxu0 %v921
  %1911 = vmatmul.mubr.bf16.gmra.mrb[0].mxu0 %v920
  %v1912 = vpop.f32.mrb[0].mxu0
  %v1913 = vadd.f32 %v1752, %v1912
  %v1914 = vpop.f32.mrb[0].mxu0
  %v1915 = vpop.f32.mrb[0].mxu0
  %v1916 = vadd.f32 %v1755, %v1915
  %v1917 = vpop.f32.mrb[0].mxu0
  %1918 = vmatprep.mubr.bf16.mxu0 %v929
  %1919 = vmatmul.mubr.bf16.gmra.mrb[0].mxu0 %v928
  %v1920 = vpop.f32.mrb[0].mxu0
  %v1921 = vadd.f32 %v1760, %v1920
  %v1922 = vpop.f32.mrb[0].mxu0
  %v1923 = vpop.f32.mrb[0].mxu0
  %v1924 = vadd.f32 %v1763, %v1923
  %v1925 = vpop.f32.mrb[0].mxu0
  %1926 = vmatprep.mubr.bf16.mxu0 %v937
  %1927 = vmatmul.mubr.bf16.gmra.mrb[0].mxu0 %v936
  %v1928 = vpop.f32.mrb[0].mxu0
  %v1929 = vadd.f32 %v1768, %v1928
  %v1930 = vpop.f32.mrb[0].mxu0
  %v1931 = vpop.f32.mrb[0].mxu0
  %v1932 = vadd.f32 %v1771, %v1931
  %v1933 = vpop.f32.mrb[0].mxu0
  %1934 = vmatprep.mubr.bf16.mxu0 %v945
  %1935 = vmatmul.mubr.bf16.gmra.mrb[0].mxu0 %v944
  %v1936 = vpop.f32.mrb[0].mxu0
  %v1937 = vadd.f32 %v1776, %v1936
  %v1938 = vpop.f32.mrb[0].mxu0
  %v1939 = vpop.f32.mrb[0].mxu0
  %v1940 = vadd.f32 %v1779, %v1939
  %v1941 = vpop.f32.mrb[0].mxu0
  %1942 = vmatprep.mubr.bf16.mxu0 %v953
  %1943 = vmatmul.mubr.bf16.gmra.mrb[0].mxu0 %v952
  %v1944 = vpop.f32.mrb[0].mxu0
  %v1945 = vadd.f32 %v1784, %v1944
  %v1946 = vpop.f32.mrb[0].mxu0
  %v1947 = vpop.f32.mrb[0].mxu0
  %v1948 = vadd.f32 %v1787, %v1947
  %v1949 = vpop.f32.mrb[0].mxu0
  %1950 = vmatprep.mubr.bf16.mxu0 %v961
  %1951 = vmatmul.mubr.bf16.gmra.mrb[0].mxu0 %v960
  %v1952 = vpop.f32.mrb[0].mxu0
  %v1953 = vadd.f32 %v1792, %v1952
  %v1954 = vpop.f32.mrb[0].mxu0
  %v1955 = vpop.f32.mrb[0].mxu0
  %v1956 = vadd.f32 %v1795, %v1955
  %v1957 = vpop.f32.mrb[0].mxu0
  %1958 = vmatprep.mubr.bf16.mxu0 %v969
  %1959 = vmatmul.mubr.bf16.gmra.mrb[0].mxu0 %v968
  %v1960 = vpop.f32.mrb[0].mxu0
  %v1961 = vadd.f32 %v1800, %v1960
  %v1962 = vpop.f32.mrb[0].mxu0
  %v1963 = vpop.f32.mrb[0].mxu0
  %v1964 = vadd.f32 %v1803, %v1963
  %v1965 = vpop.f32.mrb[0].mxu0
  %1966 = vmatprep.mubr.bf16.mxu0 %v977
  %1967 = vmatmul.mubr.bf16.gmra.mrb[0].mxu0 %v976
  %v1968 = vpop.f32.mrb[0].mxu0
  %v1969 = vadd.f32 %v1808, %v1968
  %v1970 = vpop.f32.mrb[0].mxu0
  %v1971 = vpop.f32.mrb[0].mxu0
  %v1972 = vadd.f32 %v1811, %v1971
  %v1973 = vpop.f32.mrb[0].mxu0
  %1974 = vmatprep.mubr.bf16.mxu0 %v985
  %1975 = vmatmul.mubr.bf16.gmra.mrb[0].mxu0 %v984
  %v1976 = vpop.f32.mrb[0].mxu0
  %v1977 = vadd.f32 %v1816, %v1976
  %v1978 = vpop.f32.mrb[0].mxu0
  %v1979 = vpop.f32.mrb[0].mxu0
  %v1980 = vadd.f32 %v1819, %v1979
  %v1981 = vpop.f32.mrb[0].mxu0
  %1982 = vmatprep.mubr.bf16.mxu0 %v993
  %1983 = vmatmul.mubr.bf16.gmra.mrb[0].mxu0 %v992
  %v1984 = vpop.f32.mrb[0].mxu0
  %v1985 = vadd.f32 %v1824, %v1984
  %v1986 = vpop.f32.mrb[0].mxu0
  %v1987 = vpop.f32.mrb[0].mxu0
  %v1988 = vadd.f32 %v1827, %v1987
  %v1989 = vpop.f32.mrb[0].mxu0
  %1990 = vdwg.mxu0
  %1991 = vmatprep.subr.bf16.mxu0 0
  %1992 = vmatpush1.bf16.msra.mxu0 %v1428
  %1993 = vmatprep.subr.bf16.mxu0 0
  %1994 = vmatpush1.bf16.msra.mxu0 %v1429
  %1995 = vmatprep.subr.bf16.mxu0 0
  %1996 = vmatpush1.bf16.msra.mxu0 %v1430
  %1997 = vmatprep.subr.bf16.mxu0 0
  %1998 = vmatpush1.bf16.msra.mxu0 %v1431
  %1999 = vmatprep.subr.bf16.mxu0 0
  %2000 = vmatpush1.bf16.msra.mxu0 %v1432
  %2001 = vmatprep.subr.bf16.mxu0 0
  %2002 = vmatpush1.bf16.msra.mxu0 %v1433
  %2003 = vmatprep.subr.bf16.mxu0 0
  %2004 = vmatpush1.bf16.msra.mxu0 %v1434
  %2005 = vmatprep.subr.bf16.mxu0 0
  %2006 = vmatpush1.bf16.msra.mxu0 %v1435
  %2007 = vmatprep.subr.bf16.mxu0 0
  %2008 = vmatpush1.bf16.msra.mxu0 %v1436
  %2009 = vmatprep.subr.bf16.mxu0 0
  %2010 = vmatpush1.bf16.msra.mxu0 %v1437
  %2011 = vmatprep.subr.bf16.mxu0 0
  %2012 = vmatpush1.bf16.msra.mxu0 %v1438
  %2013 = vmatprep.subr.bf16.mxu0 0
  %2014 = vmatpush1.bf16.msra.mxu0 %v1439
  %2015 = vmatprep.subr.bf16.mxu0 0
  %2016 = vmatpush1.bf16.msra.mxu0 %v1440
  %2017 = vmatprep.subr.bf16.mxu0 0
  %2018 = vmatpush1.bf16.msra.mxu0 %v1441
  %2019 = vmatprep.subr.bf16.mxu0 0
  %2020 = vmatpush1.bf16.msra.mxu0 %v1442
  %2021 = vmatprep.subr.bf16.mxu0 0
  %2022 = vmatpush1.bf16.msra.mxu0 %v1443
  %2023 = vmatprep.mubr.bf16.mxu0 %v875
  %2024 = vmatmul.mubr.bf16.gmra.mrb[0].mxu0 %v874
  %v2025 = vpop.f32.mrb[0].mxu0
  %v2026 = vadd.f32 %v1865, %v2025
  %v2027 = vpop.f32.mrb[0].mxu0
  %v2028 = vpop.f32.mrb[0].mxu0
  %v2029 = vadd.f32 %v1868, %v2028
  %v2030 = vpop.f32.mrb[0].mxu0
  %2031 = vmatprep.mubr.bf16.mxu0 %v883
  %2032 = vmatmul.mubr.bf16.gmra.mrb[0].mxu0 %v882
  %v2033 = vpop.f32.mrb[0].mxu0
  %v2034 = vadd.f32 %v1873, %v2033
  %v2035 = vpop.f32.mrb[0].mxu0
  %v2036 = vpop.f32.mrb[0].mxu0
  %v2037 = vadd.f32 %v1876, %v2036
  %v2038 = vpop.f32.mrb[0].mxu0
  %2039 = vmatprep.mubr.bf16.mxu0 %v891
  %2040 = vmatmul.mubr.bf16.gmra.mrb[0].mxu0 %v890
  %v2041 = vpop.f32.mrb[0].mxu0
  %v2042 = vadd.f32 %v1881, %v2041
  %v2043 = vpop.f32.mrb[0].mxu0
  %v2044 = vpop.f32.mrb[0].mxu0
  %v2045 = vadd.f32 %v1884, %v2044
  %v2046 = vpop.f32.mrb[0].mxu0
  %2047 = vmatprep.mubr.bf16.mxu0 %v899
  %2048 = vmatmul.mubr.bf16.gmra.mrb[0].mxu0 %v898
  %v2049 = vpop.f32.mrb[0].mxu0
  %v2050 = vadd.f32 %v1889, %v2049
  %v2051 = vpop.f32.mrb[0].mxu0
  %v2052 = vpop.f32.mrb[0].mxu0
  %v2053 = vadd.f32 %v1892, %v2052
  %v2054 = vpop.f32.mrb[0].mxu0
  %2055 = vmatprep.mubr.bf16.mxu0 %v907
  %2056 = vmatmul.mubr.bf16.gmra.mrb[0].mxu0 %v906
  %v2057 = vpop.f32.mrb[0].mxu0
  %v2058 = vadd.f32 %v1897, %v2057
  %v2059 = vpop.f32.mrb[0].mxu0
  %v2060 = vpop.f32.mrb[0].mxu0
  %v2061 = vadd.f32 %v1900, %v2060
  %v2062 = vpop.f32.mrb[0].mxu0
  %2063 = vmatprep.mubr.bf16.mxu0 %v915
  %2064 = vmatmul.mubr.bf16.gmra.mrb[0].mxu0 %v914
  %v2065 = vpop.f32.mrb[0].mxu0
  %v2066 = vadd.f32 %v1905, %v2065
  %v2067 = vpop.f32.mrb[0].mxu0
  %v2068 = vpop.f32.mrb[0].mxu0
  %v2069 = vadd.f32 %v1908, %v2068
  %v2070 = vpop.f32.mrb[0].mxu0
  %2071 = vmatprep.mubr.bf16.mxu0 %v923
  %2072 = vmatmul.mubr.bf16.gmra.mrb[0].mxu0 %v922
  %v2073 = vpop.f32.mrb[0].mxu0
  %v2074 = vadd.f32 %v1913, %v2073
  %v2075 = vpop.f32.mrb[0].mxu0
  %v2076 = vpop.f32.mrb[0].mxu0
  %v2077 = vadd.f32 %v1916, %v2076
  %v2078 = vpop.f32.mrb[0].mxu0
  %2079 = vmatprep.mubr.bf16.mxu0 %v931
  %2080 = vmatmul.mubr.bf16.gmra.mrb[0].mxu0 %v930
  %v2081 = vpop.f32.mrb[0].mxu0
  %v2082 = vadd.f32 %v1921, %v2081
  %v2083 = vpop.f32.mrb[0].mxu0
  %v2084 = vpop.f32.mrb[0].mxu0
  %v2085 = vadd.f32 %v1924, %v2084
  %v2086 = vpop.f32.mrb[0].mxu0
  %2087 = vmatprep.mubr.bf16.mxu0 %v939
  %2088 = vmatmul.mubr.bf16.gmra.mrb[0].mxu0 %v938
  %v2089 = vpop.f32.mrb[0].mxu0
  %v2090 = vadd.f32 %v1929, %v2089
  %v2091 = vpop.f32.mrb[0].mxu0
  %v2092 = vpop.f32.mrb[0].mxu0
  %v2093 = vadd.f32 %v1932, %v2092
  %v2094 = vpop.f32.mrb[0].mxu0
  %2095 = vmatprep.mubr.bf16.mxu0 %v947
  %2096 = vmatmul.mubr.bf16.gmra.mrb[0].mxu0 %v946
  %v2097 = vpop.f32.mrb[0].mxu0
  %v2098 = vadd.f32 %v1937, %v2097
  %v2099 = vpop.f32.mrb[0].mxu0
  %v2100 = vpop.f32.mrb[0].mxu0
  %v2101 = vadd.f32 %v1940, %v2100
  %v2102 = vpop.f32.mrb[0].mxu0
  %2103 = vmatprep.mubr.bf16.mxu0 %v955
  %2104 = vmatmul.mubr.bf16.gmra.mrb[0].mxu0 %v954
  %v2105 = vpop.f32.mrb[0].mxu0
  %v2106 = vadd.f32 %v1945, %v2105
  %v2107 = vpop.f32.mrb[0].mxu0
  %v2108 = vpop.f32.mrb[0].mxu0
  %v2109 = vadd.f32 %v1948, %v2108
  %v2110 = vpop.f32.mrb[0].mxu0
  %2111 = vmatprep.mubr.bf16.mxu0 %v963
  %2112 = vmatmul.mubr.bf16.gmra.mrb[0].mxu0 %v962
  %v2113 = vpop.f32.mrb[0].mxu0
  %v2114 = vadd.f32 %v1953, %v2113
  %v2115 = vpop.f32.mrb[0].mxu0
  %v2116 = vpop.f32.mrb[0].mxu0
  %v2117 = vadd.f32 %v1956, %v2116
  %v2118 = vpop.f32.mrb[0].mxu0
  %2119 = vmatprep.mubr.bf16.mxu0 %v971
  %2120 = vmatmul.mubr.bf16.gmra.mrb[0].mxu0 %v970
  %v2121 = vpop.f32.mrb[0].mxu0
  %v2122 = vadd.f32 %v1961, %v2121
  %v2123 = vpop.f32.mrb[0].mxu0
  %v2124 = vpop.f32.mrb[0].mxu0
  %v2125 = vadd.f32 %v1964, %v2124
  %v2126 = vpop.f32.mrb[0].mxu0
  %2127 = vmatprep.mubr.bf16.mxu0 %v979
  %2128 = vmatmul.mubr.bf16.gmra.mrb[0].mxu0 %v978
  %v2129 = vpop.f32.mrb[0].mxu0
  %v2130 = vadd.f32 %v1969, %v2129
  %v2131 = vpop.f32.mrb[0].mxu0
  %v2132 = vpop.f32.mrb[0].mxu0
  %v2133 = vadd.f32 %v1972, %v2132
  %v2134 = vpop.f32.mrb[0].mxu0
  %2135 = vmatprep.mubr.bf16.mxu0 %v987
  %2136 = vmatmul.mubr.bf16.gmra.mrb[0].mxu0 %v986
  %v2137 = vpop.f32.mrb[0].mxu0
  %v2138 = vadd.f32 %v1977, %v2137
  %v2139 = vpop.f32.mrb[0].mxu0
  %v2140 = vpop.f32.mrb[0].mxu0
  %v2141 = vadd.f32 %v1980, %v2140
  %v2142 = vpop.f32.mrb[0].mxu0
  %2143 = vmatprep.mubr.bf16.mxu0 %v995
  %2144 = vmatmul.mubr.bf16.gmra.mrb[0].mxu0 %v994
  %v2145 = vpop.f32.mrb[0].mxu0
  %v2146 = vadd.f32 %v1985, %v2145
  %v2147 = vpop.f32.mrb[0].mxu0
  %v2148 = vpop.f32.mrb[0].mxu0
  %v2149 = vadd.f32 %v1988, %v2148
  %v2150 = vpop.f32.mrb[0].mxu0
  %2151 = vdwg.mxu0
  %vm2152 = vcmask 261120
  %2153 = vst.msk [vmem:[%s9] sm:$0xff] %vm2152, %v2026
  %2154 = vst.msk [vmem:[%s9 + $0x8] sm:$0xff] %vm2152, %v2029
  %2155 = vst.msk [vmem:[%s9 + $0x10] sm:$0xff] %vm2152, %v2034
  %2156 = vst.msk [vmem:[%s9 + $0x18] sm:$0xff] %vm2152, %v2037
  %2157 = vst.msk [vmem:[%s9 + $0x20] sm:$0xff] %vm2152, %v2042
  %2158 = vst.msk [vmem:[%s9 + $0x28] sm:$0xff] %vm2152, %v2045
  %2159 = vst.msk [vmem:[%s9 + $0x30] sm:$0xff] %vm2152, %v2050
  %2160 = vst.msk [vmem:[%s9 + $0x38] sm:$0xff] %vm2152, %v2053
  %2161 = vst.msk [vmem:[%s9 + $0x40] sm:$0xff] %vm2152, %v2058
  %2162 = vst.msk [vmem:[%s9 + $0x48] sm:$0xff] %vm2152, %v2061
  %2163 = vst.msk [vmem:[%s9 + $0x50] sm:$0xff] %vm2152, %v2066
  %2164 = vst.msk [vmem:[%s9 + $0x58] sm:$0xff] %vm2152, %v2069
  %2165 = vst.msk [vmem:[%s9 + $0x60] sm:$0xff] %vm2152, %v2074
  %2166 = vst.msk [vmem:[%s9 + $0x68] sm:$0xff] %vm2152, %v2077
  %2167 = vst.msk [vmem:[%s9 + $0x70] sm:$0xff] %vm2152, %v2082
  %2168 = vst.msk [vmem:[%s9 + $0x78] sm:$0xff] %vm2152, %v2085
  %2169 = vst.msk [vmem:[%s9 + $0x80] sm:$0xff] %vm2152, %v2090
  %2170 = vst.msk [vmem:[%s9 + $0x88] sm:$0xff] %vm2152, %v2093
  %2171 = vst.msk [vmem:[%s9 + $0x90] sm:$0xff] %vm2152, %v2098
  %2172 = vst.msk [vmem:[%s9 + $0x98] sm:$0xff] %vm2152, %v2101
  %2173 = vst.msk [vmem:[%s9 + $0xa0] sm:$0xff] %vm2152, %v2106
  %2174 = vst.msk [vmem:[%s9 + $0xa8] sm:$0xff] %vm2152, %v2109
  %2175 = vst.msk [vmem:[%s9 + $0xb0] sm:$0xff] %vm2152, %v2114
  %2176 = vst.msk [vmem:[%s9 + $0xb8] sm:$0xff] %vm2152, %v2117
  %2177 = vst.msk [vmem:[%s9 + $0xc0] sm:$0xff] %vm2152, %v2122
  %2178 = vst.msk [vmem:[%s9 + $0xc8] sm:$0xff] %vm2152, %v2125
  %2179 = vst.msk [vmem:[%s9 + $0xd0] sm:$0xff] %vm2152, %v2130
  %2180 = vst.msk [vmem:[%s9 + $0xd8] sm:$0xff] %vm2152, %v2133
  %2181 = vst.msk [vmem:[%s9 + $0xe0] sm:$0xff] %vm2152, %v2138
  %2182 = vst.msk [vmem:[%s9 + $0xe8] sm:$0xff] %vm2152, %v2141
  %2183 = vst.msk [vmem:[%s9 + $0xf0] sm:$0xff] %vm2152, %v2146
  %2184 = vst.msk [vmem:[%s9 + $0xf8] sm:$0xff] %vm2152, %v2149
  %v2185 = vld [vmem:[%s4] sm:$0xff]
  %v2186 = vld [vmem:[%s4 + $0x8] sm:$0xff]
  %v2187 = vld [vmem:[%s4 + $0x10] sm:$0xff]
  %v2188 = vld [vmem:[%s4 + $0x18] sm:$0xff]
  %v2189 = vld [vmem:[%s4 + $0x20] sm:$0xff]
  %v2190 = vld [vmem:[%s4 + $0x28] sm:$0xff]
  %v2191 = vld [vmem:[%s4 + $0x30] sm:$0xff]
  %v2192 = vld [vmem:[%s4 + $0x38] sm:$0xff]
  %v2193 = vld [vmem:[%s4 + $0x40] sm:$0xff]
  %v2194 = vld [vmem:[%s4 + $0x48] sm:$0xff]
  %v2195 = vld [vmem:[%s4 + $0x50] sm:$0xff]
  %v2196 = vld [vmem:[%s4 + $0x58] sm:$0xff]
  %v2197 = vld [vmem:[%s4 + $0x60] sm:$0xff]
  %v2198 = vld [vmem:[%s4 + $0x68] sm:$0xff]
  %v2199 = vld [vmem:[%s4 + $0x70] sm:$0xff]
  %v2200 = vld [vmem:[%s4 + $0x78] sm:$0xff]
  %v2201 = vld [vmem:[%s4 + $0x80] sm:$0xff]
  %v2202 = vld [vmem:[%s4 + $0x88] sm:$0xff]
  %v2203 = vld [vmem:[%s4 + $0x90] sm:$0xff]
  %v2204 = vld [vmem:[%s4 + $0x98] sm:$0xff]
  %v2205 = vld [vmem:[%s4 + $0xa0] sm:$0xff]
  %v2206 = vld [vmem:[%s4 + $0xa8] sm:$0xff]
  %v2207 = vld [vmem:[%s4 + $0xb0] sm:$0xff]
  %v2208 = vld [vmem:[%s4 + $0xb8] sm:$0xff]
  %v2209 = vld [vmem:[%s4 + $0xc0] sm:$0xff]
  %v2210 = vld [vmem:[%s4 + $0xc8] sm:$0xff]
  %v2211 = vld [vmem:[%s4 + $0xd0] sm:$0xff]
  %v2212 = vld [vmem:[%s4 + $0xd8] sm:$0xff]
  %v2213 = vld [vmem:[%s4 + $0xe0] sm:$0xff]
  %v2214 = vld [vmem:[%s4 + $0xe8] sm:$0xff]
  %v2215 = vld [vmem:[%s4 + $0xf0] sm:$0xff]
  %v2216 = vld [vmem:[%s4 + $0xf8] sm:$0xff]
  %v2217 = vld [vmem:[%s4 + $0x100] sm:$0xff]
  %v2218 = vld [vmem:[%s4 + $0x108] sm:$0xff]
  %v2219 = vld [vmem:[%s4 + $0x110] sm:$0xff]
  %v2220 = vld [vmem:[%s4 + $0x118] sm:$0xff]
  %v2221 = vld [vmem:[%s4 + $0x120] sm:$0xff]
  %v2222 = vld [vmem:[%s4 + $0x128] sm:$0xff]
  %v2223 = vld [vmem:[%s4 + $0x130] sm:$0xff]
  %v2224 = vld [vmem:[%s4 + $0x138] sm:$0xff]
  %v2225 = vld [vmem:[%s4 + $0x140] sm:$0xff]
  %v2226 = vld [vmem:[%s4 + $0x148] sm:$0xff]
  %v2227 = vld [vmem:[%s4 + $0x150] sm:$0xff]
  %v2228 = vld [vmem:[%s4 + $0x158] sm:$0xff]
  %v2229 = vld [vmem:[%s4 + $0x160] sm:$0xff]
  %v2230 = vld [vmem:[%s4 + $0x168] sm:$0xff]
  %v2231 = vld [vmem:[%s4 + $0x170] sm:$0xff]
  %v2232 = vld [vmem:[%s4 + $0x178] sm:$0xff]
  %v2233 = vld [vmem:[%s4 + $0x180] sm:$0xff]
  %v2234 = vld [vmem:[%s4 + $0x188] sm:$0xff]
  %v2235 = vld [vmem:[%s4 + $0x190] sm:$0xff]
  %v2236 = vld [vmem:[%s4 + $0x198] sm:$0xff]
  %v2237 = vld [vmem:[%s4 + $0x1a0] sm:$0xff]
  %v2238 = vld [vmem:[%s4 + $0x1a8] sm:$0xff]
  %v2239 = vld [vmem:[%s4 + $0x1b0] sm:$0xff]
  %v2240 = vld [vmem:[%s4 + $0x1b8] sm:$0xff]
  %v2241 = vld [vmem:[%s4 + $0x1c0] sm:$0xff]
  %v2242 = vld [vmem:[%s4 + $0x1c8] sm:$0xff]
  %v2243 = vld [vmem:[%s4 + $0x1d0] sm:$0xff]
  %v2244 = vld [vmem:[%s4 + $0x1d8] sm:$0xff]
  %v2245 = vld [vmem:[%s4 + $0x1e0] sm:$0xff]
  %v2246 = vld [vmem:[%s4 + $0x1e8] sm:$0xff]
  %v2247 = vld [vmem:[%s4 + $0x1f0] sm:$0xff]
  %v2248 = vld [vmem:[%s4 + $0x1f8] sm:$0xff]
  %v2249 = vld [vmem:[%s4 + $0x200] sm:$0xff]
  %v2250 = vld [vmem:[%s4 + $0x208] sm:$0xff]
  %v2251 = vld [vmem:[%s4 + $0x210] sm:$0xff]
  %v2252 = vld [vmem:[%s4 + $0x218] sm:$0xff]
  %v2253 = vld [vmem:[%s4 + $0x220] sm:$0xff]
  %v2254 = vld [vmem:[%s4 + $0x228] sm:$0xff]
  %v2255 = vld [vmem:[%s4 + $0x230] sm:$0xff]
  %v2256 = vld [vmem:[%s4 + $0x238] sm:$0xff]
  %v2257 = vld [vmem:[%s4 + $0x240] sm:$0xff]
  %v2258 = vld [vmem:[%s4 + $0x248] sm:$0xff]
  %v2259 = vld [vmem:[%s4 + $0x250] sm:$0xff]
  %v2260 = vld [vmem:[%s4 + $0x258] sm:$0xff]
  %v2261 = vld [vmem:[%s4 + $0x260] sm:$0xff]
  %v2262 = vld [vmem:[%s4 + $0x268] sm:$0xff]
  %v2263 = vld [vmem:[%s4 + $0x270] sm:$0xff]
  %v2264 = vld [vmem:[%s4 + $0x278] sm:$0xff]
  %v2265 = vld [vmem:[%s4 + $0x280] sm:$0xff]
  %v2266 = vld [vmem:[%s4 + $0x288] sm:$0xff]
  %v2267 = vld [vmem:[%s4 + $0x290] sm:$0xff]
  %v2268 = vld [vmem:[%s4 + $0x298] sm:$0xff]
  %v2269 = vld [vmem:[%s4 + $0x2a0] sm:$0xff]
  %v2270 = vld [vmem:[%s4 + $0x2a8] sm:$0xff]
  %v2271 = vld [vmem:[%s4 + $0x2b0] sm:$0xff]
  %v2272 = vld [vmem:[%s4 + $0x2b8] sm:$0xff]
  %v2273 = vld [vmem:[%s4 + $0x2c0] sm:$0xff]
  %v2274 = vld [vmem:[%s4 + $0x2c8] sm:$0xff]
  %v2275 = vld [vmem:[%s4 + $0x2d0] sm:$0xff]
  %v2276 = vld [vmem:[%s4 + $0x2d8] sm:$0xff]
  %v2277 = vld [vmem:[%s4 + $0x2e0] sm:$0xff]
  %v2278 = vld [vmem:[%s4 + $0x2e8] sm:$0xff]
  %v2279 = vld [vmem:[%s4 + $0x2f0] sm:$0xff]
  %v2280 = vld [vmem:[%s4 + $0x2f8] sm:$0xff]
  %v2281 = vld [vmem:[%s4 + $0x300] sm:$0xff]
  %v2282 = vld [vmem:[%s4 + $0x308] sm:$0xff]
  %v2283 = vld [vmem:[%s4 + $0x310] sm:$0xff]
  %v2284 = vld [vmem:[%s4 + $0x318] sm:$0xff]
  %v2285 = vld [vmem:[%s4 + $0x320] sm:$0xff]
  %v2286 = vld [vmem:[%s4 + $0x328] sm:$0xff]
  %v2287 = vld [vmem:[%s4 + $0x330] sm:$0xff]
  %v2288 = vld [vmem:[%s4 + $0x338] sm:$0xff]
  %v2289 = vld [vmem:[%s4 + $0x340] sm:$0xff]
  %v2290 = vld [vmem:[%s4 + $0x348] sm:$0xff]
  %v2291 = vld [vmem:[%s4 + $0x350] sm:$0xff]
  %v2292 = vld [vmem:[%s4 + $0x358] sm:$0xff]
  %v2293 = vld [vmem:[%s4 + $0x360] sm:$0xff]
  %v2294 = vld [vmem:[%s4 + $0x368] sm:$0xff]
  %v2295 = vld [vmem:[%s4 + $0x370] sm:$0xff]
  %v2296 = vld [vmem:[%s4 + $0x378] sm:$0xff]
  %v2297 = vld [vmem:[%s4 + $0x380] sm:$0xff]
  %v2298 = vld [vmem:[%s4 + $0x388] sm:$0xff]
  %v2299 = vld [vmem:[%s4 + $0x390] sm:$0xff]
  %v2300 = vld [vmem:[%s4 + $0x398] sm:$0xff]
  %v2301 = vld [vmem:[%s4 + $0x3a0] sm:$0xff]
  %v2302 = vld [vmem:[%s4 + $0x3a8] sm:$0xff]
  %v2303 = vld [vmem:[%s4 + $0x3b0] sm:$0xff]
  %v2304 = vld [vmem:[%s4 + $0x3b8] sm:$0xff]
  %v2305 = vld [vmem:[%s4 + $0x3c0] sm:$0xff]
  %v2306 = vld [vmem:[%s4 + $0x3c8] sm:$0xff]
  %v2307 = vld [vmem:[%s4 + $0x3d0] sm:$0xff]
  %v2308 = vld [vmem:[%s4 + $0x3d8] sm:$0xff]
  %v2309 = vld [vmem:[%s4 + $0x3e0] sm:$0xff]
  %v2310 = vld [vmem:[%s4 + $0x3e8] sm:$0xff]
  %v2311 = vld [vmem:[%s4 + $0x3f0] sm:$0xff]
  %v2312 = vld [vmem:[%s4 + $0x3f8] sm:$0xff]
  %v2313 = vld [vmem:[%s1] sm:$0xf]
  %v2314 = vld [vmem:[%s1 + $0x4] sm:$0xf]
  %v2315 = vld [vmem:[%s1 + $0x8] sm:$0xf]
  %v2316 = vld [vmem:[%s1 + $0xc] sm:$0xf]
  %v2317 = vld [vmem:[%s1 + $0x10] sm:$0xf]
  %v2318 = vld [vmem:[%s1 + $0x14] sm:$0xf]
  %v2319 = vld [vmem:[%s1 + $0x18] sm:$0xf]
  %v2320 = vld [vmem:[%s1 + $0x1c] sm:$0xf]
  %v2321 = vld [vmem:[%s1 + $0x20] sm:$0xf]
  %v2322 = vld [vmem:[%s1 + $0x24] sm:$0xf]
  %v2323 = vld [vmem:[%s1 + $0x28] sm:$0xf]
  %v2324 = vld [vmem:[%s1 + $0x2c] sm:$0xf]
  %v2325 = vld [vmem:[%s1 + $0x30] sm:$0xf]
  %v2326 = vld [vmem:[%s1 + $0x34] sm:$0xf]
  %v2327 = vld [vmem:[%s1 + $0x38] sm:$0xf]
  %v2328 = vld [vmem:[%s1 + $0x3c] sm:$0xf]
  %v2329 = vld [vmem:[%s1 + $0x40] sm:$0xf]
  %v2330 = vld [vmem:[%s1 + $0x44] sm:$0xf]
  %v2331 = vld [vmem:[%s1 + $0x48] sm:$0xf]
  %v2332 = vld [vmem:[%s1 + $0x4c] sm:$0xf]
  %v2333 = vld [vmem:[%s1 + $0x50] sm:$0xf]
  %v2334 = vld [vmem:[%s1 + $0x54] sm:$0xf]
  %v2335 = vld [vmem:[%s1 + $0x58] sm:$0xf]
  %v2336 = vld [vmem:[%s1 + $0x5c] sm:$0xf]
  %v2337 = vld [vmem:[%s1 + $0x60] sm:$0xf]
  %v2338 = vld [vmem:[%s1 + $0x64] sm:$0xf]
  %v2339 = vld [vmem:[%s1 + $0x68] sm:$0xf]
  %v2340 = vld [vmem:[%s1 + $0x6c] sm:$0xf]
  %v2341 = vld [vmem:[%s1 + $0x70] sm:$0xf]
  %v2342 = vld [vmem:[%s1 + $0x74] sm:$0xf]
  %v2343 = vld [vmem:[%s1 + $0x78] sm:$0xf]
  %v2344 = vld [vmem:[%s1 + $0x7c] sm:$0xf]
  %v2345 = vld [vmem:[%s1 + $0x80] sm:$0xf]
  %v2346 = vld [vmem:[%s1 + $0x84] sm:$0xf]
  %v2347 = vld [vmem:[%s1 + $0x88] sm:$0xf]
  %v2348 = vld [vmem:[%s1 + $0x8c] sm:$0xf]
  %v2349 = vld [vmem:[%s1 + $0x90] sm:$0xf]
  %v2350 = vld [vmem:[%s1 + $0x94] sm:$0xf]
  %v2351 = vld [vmem:[%s1 + $0x98] sm:$0xf]
  %v2352 = vld [vmem:[%s1 + $0x9c] sm:$0xf]
  %v2353 = vld [vmem:[%s1 + $0xa0] sm:$0xf]
  %v2354 = vld [vmem:[%s1 + $0xa4] sm:$0xf]
  %v2355 = vld [vmem:[%s1 + $0xa8] sm:$0xf]
  %v2356 = vld [vmem:[%s1 + $0xac] sm:$0xf]
  %v2357 = vld [vmem:[%s1 + $0xb0] sm:$0xf]
  %v2358 = vld [vmem:[%s1 + $0xb4] sm:$0xf]
  %v2359 = vld [vmem:[%s1 + $0xb8] sm:$0xf]
  %v2360 = vld [vmem:[%s1 + $0xbc] sm:$0xf]
  %v2361 = vld [vmem:[%s1 + $0xc0] sm:$0xf]
  %v2362 = vld [vmem:[%s1 + $0xc4] sm:$0xf]
  %v2363 = vld [vmem:[%s1 + $0xc8] sm:$0xf]
  %v2364 = vld [vmem:[%s1 + $0xcc] sm:$0xf]
  %v2365 = vld [vmem:[%s1 + $0xd0] sm:$0xf]
  %v2366 = vld [vmem:[%s1 + $0xd4] sm:$0xf]
  %v2367 = vld [vmem:[%s1 + $0xd8] sm:$0xf]
  %v2368 = vld [vmem:[%s1 + $0xdc] sm:$0xf]
  %v2369 = vld [vmem:[%s1 + $0xe0] sm:$0xf]
  %v2370 = vld [vmem:[%s1 + $0xe4] sm:$0xf]
  %v2371 = vld [vmem:[%s1 + $0xe8] sm:$0xf]
  %v2372 = vld [vmem:[%s1 + $0xec] sm:$0xf]
  %v2373 = vld [vmem:[%s1 + $0xf0] sm:$0xf]
  %v2374 = vld [vmem:[%s1 + $0xf4] sm:$0xf]
  %v2375 = vld [vmem:[%s1 + $0xf8] sm:$0xf]
  %v2376 = vld [vmem:[%s1 + $0xfc] sm:$0xf]
  %v2377 = vld [vmem:[%s1 + $0x100] sm:$0xf]
  %v2378 = vld [vmem:[%s1 + $0x104] sm:$0xf]
  %v2379 = vld [vmem:[%s1 + $0x108] sm:$0xf]
  %v2380 = vld [vmem:[%s1 + $0x10c] sm:$0xf]
  %v2381 = vld [vmem:[%s1 + $0x110] sm:$0xf]
  %v2382 = vld [vmem:[%s1 + $0x114] sm:$0xf]
  %v2383 = vld [vmem:[%s1 + $0x118] sm:$0xf]
  %v2384 = vld [vmem:[%s1 + $0x11c] sm:$0xf]
  %v2385 = vld [vmem:[%s1 + $0x120] sm:$0xf]
  %v2386 = vld [vmem:[%s1 + $0x124] sm:$0xf]
  %v2387 = vld [vmem:[%s1 + $0x128] sm:$0xf]
  %v2388 = vld [vmem:[%s1 + $0x12c] sm:$0xf]
  %v2389 = vld [vmem:[%s1 + $0x130] sm:$0xf]
  %v2390 = vld [vmem:[%s1 + $0x134] sm:$0xf]
  %v2391 = vld [vmem:[%s1 + $0x138] sm:$0xf]
  %v2392 = vld [vmem:[%s1 + $0x13c] sm:$0xf]
  %v2393 = vld [vmem:[%s1 + $0x140] sm:$0xf]
  %v2394 = vld [vmem:[%s1 + $0x144] sm:$0xf]
  %v2395 = vld [vmem:[%s1 + $0x148] sm:$0xf]
  %v2396 = vld [vmem:[%s1 + $0x14c] sm:$0xf]
  %v2397 = vld [vmem:[%s1 + $0x150] sm:$0xf]
  %v2398 = vld [vmem:[%s1 + $0x154] sm:$0xf]
  %v2399 = vld [vmem:[%s1 + $0x158] sm:$0xf]
  %v2400 = vld [vmem:[%s1 + $0x15c] sm:$0xf]
  %v2401 = vld [vmem:[%s1 + $0x160] sm:$0xf]
  %v2402 = vld [vmem:[%s1 + $0x164] sm:$0xf]
  %v2403 = vld [vmem:[%s1 + $0x168] sm:$0xf]
  %v2404 = vld [vmem:[%s1 + $0x16c] sm:$0xf]
  %v2405 = vld [vmem:[%s1 + $0x170] sm:$0xf]
  %v2406 = vld [vmem:[%s1 + $0x174] sm:$0xf]
  %v2407 = vld [vmem:[%s1 + $0x178] sm:$0xf]
  %v2408 = vld [vmem:[%s1 + $0x17c] sm:$0xf]
  %v2409 = vld [vmem:[%s1 + $0x180] sm:$0xf]
  %v2410 = vld [vmem:[%s1 + $0x184] sm:$0xf]
  %v2411 = vld [vmem:[%s1 + $0x188] sm:$0xf]
  %v2412 = vld [vmem:[%s1 + $0x18c] sm:$0xf]
  %v2413 = vld [vmem:[%s1 + $0x190] sm:$0xf]
  %v2414 = vld [vmem:[%s1 + $0x194] sm:$0xf]
  %v2415 = vld [vmem:[%s1 + $0x198] sm:$0xf]
  %v2416 = vld [vmem:[%s1 + $0x19c] sm:$0xf]
  %v2417 = vld [vmem:[%s1 + $0x1a0] sm:$0xf]
  %v2418 = vld [vmem:[%s1 + $0x1a4] sm:$0xf]
  %v2419 = vld [vmem:[%s1 + $0x1a8] sm:$0xf]
  %v2420 = vld [vmem:[%s1 + $0x1ac] sm:$0xf]
  %v2421 = vld [vmem:[%s1 + $0x1b0] sm:$0xf]
  %v2422 = vld [vmem:[%s1 + $0x1b4] sm:$0xf]
  %v2423 = vld [vmem:[%s1 + $0x1b8] sm:$0xf]
  %v2424 = vld [vmem:[%s1 + $0x1bc] sm:$0xf]
  %v2425 = vld [vmem:[%s1 + $0x1c0] sm:$0xf]
  %v2426 = vld [vmem:[%s1 + $0x1c4] sm:$0xf]
  %v2427 = vld [vmem:[%s1 + $0x1c8] sm:$0xf]
  %v2428 = vld [vmem:[%s1 + $0x1cc] sm:$0xf]
  %v2429 = vld [vmem:[%s1 + $0x1d0] sm:$0xf]
  %v2430 = vld [vmem:[%s1 + $0x1d4] sm:$0xf]
  %v2431 = vld [vmem:[%s1 + $0x1d8] sm:$0xf]
  %v2432 = vld [vmem:[%s1 + $0x1dc] sm:$0xf]
  %v2433 = vld [vmem:[%s1 + $0x1e0] sm:$0xf]
  %v2434 = vld [vmem:[%s1 + $0x1e4] sm:$0xf]
  %v2435 = vld [vmem:[%s1 + $0x1e8] sm:$0xf]
  %v2436 = vld [vmem:[%s1 + $0x1ec] sm:$0xf]
  %v2437 = vld [vmem:[%s1 + $0x1f0] sm:$0xf]
  %v2438 = vld [vmem:[%s1 + $0x1f4] sm:$0xf]
  %v2439 = vld [vmem:[%s1 + $0x1f8] sm:$0xf]
  %v2440 = vld [vmem:[%s1 + $0x1fc] sm:$0xf]
  %v2441 = vld [vmem:[%s7] sm:$0xff]
  %v2442 = vld [vmem:[%s7 + $0x8] sm:$0xff]
  %v2443 = vld [vmem:[%s7 + $0x10] sm:$0xff]
  %v2444 = vld [vmem:[%s7 + $0x18] sm:$0xff]
  %v2445 = vld [vmem:[%s7 + $0x20] sm:$0xff]
  %v2446 = vld [vmem:[%s7 + $0x28] sm:$0xff]
  %v2447 = vld [vmem:[%s7 + $0x30] sm:$0xff]
  %v2448 = vld [vmem:[%s7 + $0x38] sm:$0xff]
  %v2449 = vld [vmem:[%s7 + $0x40] sm:$0xff]
  %v2450 = vld [vmem:[%s7 + $0x48] sm:$0xff]
  %v2451 = vld [vmem:[%s7 + $0x50] sm:$0xff]
  %v2452 = vld [vmem:[%s7 + $0x58] sm:$0xff]
  %v2453 = vld [vmem:[%s7 + $0x60] sm:$0xff]
  %v2454 = vld [vmem:[%s7 + $0x68] sm:$0xff]
  %v2455 = vld [vmem:[%s7 + $0x70] sm:$0xff]
  %v2456 = vld [vmem:[%s7 + $0x78] sm:$0xff]
  %v2457 = vld [vmem:[%s7 + $0x80] sm:$0xff]
  %v2458 = vld [vmem:[%s7 + $0x88] sm:$0xff]
  %v2459 = vld [vmem:[%s7 + $0x90] sm:$0xff]
  %v2460 = vld [vmem:[%s7 + $0x98] sm:$0xff]
  %v2461 = vld [vmem:[%s7 + $0xa0] sm:$0xff]
  %v2462 = vld [vmem:[%s7 + $0xa8] sm:$0xff]
  %v2463 = vld [vmem:[%s7 + $0xb0] sm:$0xff]
  %v2464 = vld [vmem:[%s7 + $0xb8] sm:$0xff]
  %v2465 = vld [vmem:[%s7 + $0xc0] sm:$0xff]
  %v2466 = vld [vmem:[%s7 + $0xc8] sm:$0xff]
  %v2467 = vld [vmem:[%s7 + $0xd0] sm:$0xff]
  %v2468 = vld [vmem:[%s7 + $0xd8] sm:$0xff]
  %v2469 = vld [vmem:[%s7 + $0xe0] sm:$0xff]
  %v2470 = vld [vmem:[%s7 + $0xe8] sm:$0xff]
  %v2471 = vld [vmem:[%s7 + $0xf0] sm:$0xff]
  %v2472 = vld [vmem:[%s7 + $0xf8] sm:$0xff]
  %2474 = vset.pattern.permute.xlu0 0
  %2475 = vperm.xlu0 %2474, %v2441
  %v2476 = vpop.permute.xlu0 %2475
  %2479 = vset.pattern.permute.xlu0 0
  %2480 = vperm.xlu0 %2479, %v2442
  %v2481 = vpop.permute.xlu0 %2480
  %2484 = vset.pattern.permute.xlu0 0
  %2485 = vperm.xlu0 %2484, %v2443
  %v2486 = vpop.permute.xlu0 %2485
  %2489 = vset.pattern.permute.xlu0 0
  %2490 = vperm.xlu0 %2489, %v2444
  %v2491 = vpop.permute.xlu0 %2490
  %2494 = vset.pattern.permute.xlu0 0
  %2495 = vperm.xlu0 %2494, %v2445
  %v2496 = vpop.permute.xlu0 %2495
  %2499 = vset.pattern.permute.xlu0 0
  %2500 = vperm.xlu0 %2499, %v2446
  %v2501 = vpop.permute.xlu0 %2500
  %2504 = vset.pattern.permute.xlu0 0
  %2505 = vperm.xlu0 %2504, %v2447
  %v2506 = vpop.permute.xlu0 %2505
  %2509 = vset.pattern.permute.xlu0 0
  %2510 = vperm.xlu0 %2509, %v2448
  %v2511 = vpop.permute.xlu0 %2510
  %2514 = vset.pattern.permute.xlu0 0
  %2515 = vperm.xlu0 %2514, %v2449
  %v2516 = vpop.permute.xlu0 %2515
  %2519 = vset.pattern.permute.xlu0 0
  %2520 = vperm.xlu0 %2519, %v2450
  %v2521 = vpop.permute.xlu0 %2520
  %2524 = vset.pattern.permute.xlu0 0
  %2525 = vperm.xlu0 %2524, %v2451
  %v2526 = vpop.permute.xlu0 %2525
  %2529 = vset.pattern.permute.xlu0 0
  %2530 = vperm.xlu0 %2529, %v2452
  %v2531 = vpop.permute.xlu0 %2530
  %2534 = vset.pattern.permute.xlu0 0
  %2535 = vperm.xlu0 %2534, %v2453
  %v2536 = vpop.permute.xlu0 %2535
  %2539 = vset.pattern.permute.xlu0 0
  %2540 = vperm.xlu0 %2539, %v2454
  %v2541 = vpop.permute.xlu0 %2540
  %2544 = vset.pattern.permute.xlu0 0
  %2545 = vperm.xlu0 %2544, %v2455
  %v2546 = vpop.permute.xlu0 %2545
  %2549 = vset.pattern.permute.xlu0 0
  %2550 = vperm.xlu0 %2549, %v2456
  %v2551 = vpop.permute.xlu0 %2550
  %2554 = vset.pattern.permute.xlu0 0
  %2555 = vperm.xlu0 %2554, %v2457
  %v2556 = vpop.permute.xlu0 %2555
  %2559 = vset.pattern.permute.xlu0 0
  %2560 = vperm.xlu0 %2559, %v2458
  %v2561 = vpop.permute.xlu0 %2560
  %2564 = vset.pattern.permute.xlu0 0
  %2565 = vperm.xlu0 %2564, %v2459
  %v2566 = vpop.permute.xlu0 %2565
  %2569 = vset.pattern.permute.xlu0 0
  %2570 = vperm.xlu0 %2569, %v2460
  %v2571 = vpop.permute.xlu0 %2570
  %2574 = vset.pattern.permute.xlu0 0
  %2575 = vperm.xlu0 %2574, %v2461
  %v2576 = vpop.permute.xlu0 %2575
  %2579 = vset.pattern.permute.xlu0 0
  %2580 = vperm.xlu0 %2579, %v2462
  %v2581 = vpop.permute.xlu0 %2580
  %2584 = vset.pattern.permute.xlu0 0
  %2585 = vperm.xlu0 %2584, %v2463
  %v2586 = vpop.permute.xlu0 %2585
  %2589 = vset.pattern.permute.xlu0 0
  %2590 = vperm.xlu0 %2589, %v2464
  %v2591 = vpop.permute.xlu0 %2590
  %2594 = vset.pattern.permute.xlu0 0
  %2595 = vperm.xlu0 %2594, %v2465
  %v2596 = vpop.permute.xlu0 %2595
  %2599 = vset.pattern.permute.xlu0 0
  %2600 = vperm.xlu0 %2599, %v2466
  %v2601 = vpop.permute.xlu0 %2600
  %2604 = vset.pattern.permute.xlu0 0
  %2605 = vperm.xlu0 %2604, %v2467
  %v2606 = vpop.permute.xlu0 %2605
  %2609 = vset.pattern.permute.xlu0 0
  %2610 = vperm.xlu0 %2609, %v2468
  %v2611 = vpop.permute.xlu0 %2610
  %2614 = vset.pattern.permute.xlu0 0
  %2615 = vperm.xlu0 %2614, %v2469
  %v2616 = vpop.permute.xlu0 %2615
  %2619 = vset.pattern.permute.xlu0 0
  %2620 = vperm.xlu0 %2619, %v2470
  %v2621 = vpop.permute.xlu0 %2620
  %2624 = vset.pattern.permute.xlu0 0
  %2625 = vperm.xlu0 %2624, %v2471
  %v2626 = vpop.permute.xlu0 %2625
  %2629 = vset.pattern.permute.xlu0 0
  %2630 = vperm.xlu0 %2629, %v2472
  %v2631 = vpop.permute.xlu0 %2630
  %v2761 = vunpack.c.l.b16 %v2185
  %v2762 = vunpack.c.h.b16 %v2185
  %v2763 = vunpack.c.l.b16 %v2186
  %v2764 = vunpack.c.h.b16 %v2186
  %v2765 = vunpack.c.l.b16 %v2187
  %v2766 = vunpack.c.h.b16 %v2187
  %v2767 = vunpack.c.l.b16 %v2188
  %v2768 = vunpack.c.h.b16 %v2188
  %v2769 = vunpack.c.l.b16 %v2189
  %v2770 = vunpack.c.h.b16 %v2189
  %v2771 = vunpack.c.l.b16 %v2190
  %v2772 = vunpack.c.h.b16 %v2190
  %v2773 = vunpack.c.l.b16 %v2191
  %v2774 = vunpack.c.h.b16 %v2191
  %v2775 = vunpack.c.l.b16 %v2192
  %v2776 = vunpack.c.h.b16 %v2192
  %v2777 = vunpack.c.l.b16 %v2193
  %v2778 = vunpack.c.h.b16 %v2193
  %v2779 = vunpack.c.l.b16 %v2194
  %v2780 = vunpack.c.h.b16 %v2194
  %v2781 = vunpack.c.l.b16 %v2195
  %v2782 = vunpack.c.h.b16 %v2195
  %v2783 = vunpack.c.l.b16 %v2196
  %v2784 = vunpack.c.h.b16 %v2196
  %v2785 = vunpack.c.l.b16 %v2197
  %v2786 = vunpack.c.h.b16 %v2197
  %v2787 = vunpack.c.l.b16 %v2198
  %v2788 = vunpack.c.h.b16 %v2198
  %v2789 = vunpack.c.l.b16 %v2199
  %v2790 = vunpack.c.h.b16 %v2199
  %v2791 = vunpack.c.l.b16 %v2200
  %v2792 = vunpack.c.h.b16 %v2200
  %v2793 = vunpack.c.l.b16 %v2201
  %v2794 = vunpack.c.h.b16 %v2201
  %v2795 = vunpack.c.l.b16 %v2202
  %v2796 = vunpack.c.h.b16 %v2202
  %v2797 = vunpack.c.l.b16 %v2203
  %v2798 = vunpack.c.h.b16 %v2203
  %v2799 = vunpack.c.l.b16 %v2204
  %v2800 = vunpack.c.h.b16 %v2204
  %v2801 = vunpack.c.l.b16 %v2205
  %v2802 = vunpack.c.h.b16 %v2205
  %v2803 = vunpack.c.l.b16 %v2206
  %v2804 = vunpack.c.h.b16 %v2206
  %v2805 = vunpack.c.l.b16 %v2207
  %v2806 = vunpack.c.h.b16 %v2207
  %v2807 = vunpack.c.l.b16 %v2208
  %v2808 = vunpack.c.h.b16 %v2208
  %v2809 = vunpack.c.l.b16 %v2209
  %v2810 = vunpack.c.h.b16 %v2209
  %v2811 = vunpack.c.l.b16 %v2210
  %v2812 = vunpack.c.h.b16 %v2210
  %v2813 = vunpack.c.l.b16 %v2211
  %v2814 = vunpack.c.h.b16 %v2211
  %v2815 = vunpack.c.l.b16 %v2212
  %v2816 = vunpack.c.h.b16 %v2212
  %v2817 = vunpack.c.l.b16 %v2213
  %v2818 = vunpack.c.h.b16 %v2213
  %v2819 = vunpack.c.l.b16 %v2214
  %v2820 = vunpack.c.h.b16 %v2214
  %v2821 = vunpack.c.l.b16 %v2215
  %v2822 = vunpack.c.h.b16 %v2215
  %v2823 = vunpack.c.l.b16 %v2216
  %v2824 = vunpack.c.h.b16 %v2216
  %v2825 = vunpack.c.l.b16 %v2217
  %v2826 = vunpack.c.h.b16 %v2217
  %v2827 = vunpack.c.l.b16 %v2218
  %v2828 = vunpack.c.h.b16 %v2218
  %v2829 = vunpack.c.l.b16 %v2219
  %v2830 = vunpack.c.h.b16 %v2219
  %v2831 = vunpack.c.l.b16 %v2220
  %v2832 = vunpack.c.h.b16 %v2220
  %v2833 = vunpack.c.l.b16 %v2221
  %v2834 = vunpack.c.h.b16 %v2221
  %v2835 = vunpack.c.l.b16 %v2222
  %v2836 = vunpack.c.h.b16 %v2222
  %v2837 = vunpack.c.l.b16 %v2223
  %v2838 = vunpack.c.h.b16 %v2223
  %v2839 = vunpack.c.l.b16 %v2224
  %v2840 = vunpack.c.h.b16 %v2224
  %v2841 = vunpack.c.l.b16 %v2225
  %v2842 = vunpack.c.h.b16 %v2225
  %v2843 = vunpack.c.l.b16 %v2226
  %v2844 = vunpack.c.h.b16 %v2226
  %v2845 = vunpack.c.l.b16 %v2227
  %v2846 = vunpack.c.h.b16 %v2227
  %v2847 = vunpack.c.l.b16 %v2228
  %v2848 = vunpack.c.h.b16 %v2228
  %v2849 = vunpack.c.l.b16 %v2229
  %v2850 = vunpack.c.h.b16 %v2229
  %v2851 = vunpack.c.l.b16 %v2230
  %v2852 = vunpack.c.h.b16 %v2230
  %v2853 = vunpack.c.l.b16 %v2231
  %v2854 = vunpack.c.h.b16 %v2231
  %v2855 = vunpack.c.l.b16 %v2232
  %v2856 = vunpack.c.h.b16 %v2232
  %v2857 = vunpack.c.l.b16 %v2233
  %v2858 = vunpack.c.h.b16 %v2233
  %v2859 = vunpack.c.l.b16 %v2234
  %v2860 = vunpack.c.h.b16 %v2234
  %v2861 = vunpack.c.l.b16 %v2235
  %v2862 = vunpack.c.h.b16 %v2235
  %v2863 = vunpack.c.l.b16 %v2236
  %v2864 = vunpack.c.h.b16 %v2236
  %v2865 = vunpack.c.l.b16 %v2237
  %v2866 = vunpack.c.h.b16 %v2237
  %v2867 = vunpack.c.l.b16 %v2238
  %v2868 = vunpack.c.h.b16 %v2238
  %v2869 = vunpack.c.l.b16 %v2239
  %v2870 = vunpack.c.h.b16 %v2239
  %v2871 = vunpack.c.l.b16 %v2240
  %v2872 = vunpack.c.h.b16 %v2240
  %v2873 = vunpack.c.l.b16 %v2241
  %v2874 = vunpack.c.h.b16 %v2241
  %v2875 = vunpack.c.l.b16 %v2242
  %v2876 = vunpack.c.h.b16 %v2242
  %v2877 = vunpack.c.l.b16 %v2243
  %v2878 = vunpack.c.h.b16 %v2243
  %v2879 = vunpack.c.l.b16 %v2244
  %v2880 = vunpack.c.h.b16 %v2244
  %v2881 = vunpack.c.l.b16 %v2245
  %v2882 = vunpack.c.h.b16 %v2245
  %v2883 = vunpack.c.l.b16 %v2246
  %v2884 = vunpack.c.h.b16 %v2246
  %v2885 = vunpack.c.l.b16 %v2247
  %v2886 = vunpack.c.h.b16 %v2247
  %v2887 = vunpack.c.l.b16 %v2248
  %v2888 = vunpack.c.h.b16 %v2248
  %v2889 = vunpack.c.l.b16 %v2249
  %v2890 = vunpack.c.h.b16 %v2249
  %v2891 = vunpack.c.l.b16 %v2250
  %v2892 = vunpack.c.h.b16 %v2250
  %v2893 = vunpack.c.l.b16 %v2251
  %v2894 = vunpack.c.h.b16 %v2251
  %v2895 = vunpack.c.l.b16 %v2252
  %v2896 = vunpack.c.h.b16 %v2252
  %v2897 = vunpack.c.l.b16 %v2253
  %v2898 = vunpack.c.h.b16 %v2253
  %v2899 = vunpack.c.l.b16 %v2254
  %v2900 = vunpack.c.h.b16 %v2254
  %v2901 = vunpack.c.l.b16 %v2255
  %v2902 = vunpack.c.h.b16 %v2255
  %v2903 = vunpack.c.l.b16 %v2256
  %v2904 = vunpack.c.h.b16 %v2256
  %v2905 = vunpack.c.l.b16 %v2257
  %v2906 = vunpack.c.h.b16 %v2257
  %v2907 = vunpack.c.l.b16 %v2258
  %v2908 = vunpack.c.h.b16 %v2258
  %v2909 = vunpack.c.l.b16 %v2259
  %v2910 = vunpack.c.h.b16 %v2259
  %v2911 = vunpack.c.l.b16 %v2260
  %v2912 = vunpack.c.h.b16 %v2260
  %v2913 = vunpack.c.l.b16 %v2261
  %v2914 = vunpack.c.h.b16 %v2261
  %v2915 = vunpack.c.l.b16 %v2262
  %v2916 = vunpack.c.h.b16 %v2262
  %v2917 = vunpack.c.l.b16 %v2263
  %v2918 = vunpack.c.h.b16 %v2263
  %v2919 = vunpack.c.l.b16 %v2264
  %v2920 = vunpack.c.h.b16 %v2264
  %v2921 = vunpack.c.l.b16 %v2265
  %v2922 = vunpack.c.h.b16 %v2265
  %v2923 = vunpack.c.l.b16 %v2266
  %v2924 = vunpack.c.h.b16 %v2266
  %v2925 = vunpack.c.l.b16 %v2267
  %v2926 = vunpack.c.h.b16 %v2267
  %v2927 = vunpack.c.l.b16 %v2268
  %v2928 = vunpack.c.h.b16 %v2268
  %v2929 = vunpack.c.l.b16 %v2269
  %v2930 = vunpack.c.h.b16 %v2269
  %v2931 = vunpack.c.l.b16 %v2270
  %v2932 = vunpack.c.h.b16 %v2270
  %v2933 = vunpack.c.l.b16 %v2271
  %v2934 = vunpack.c.h.b16 %v2271
  %v2935 = vunpack.c.l.b16 %v2272
  %v2936 = vunpack.c.h.b16 %v2272
  %v2937 = vunpack.c.l.b16 %v2273
  %v2938 = vunpack.c.h.b16 %v2273
  %v2939 = vunpack.c.l.b16 %v2274
  %v2940 = vunpack.c.h.b16 %v2274
  %v2941 = vunpack.c.l.b16 %v2275
  %v2942 = vunpack.c.h.b16 %v2275
  %v2943 = vunpack.c.l.b16 %v2276
  %v2944 = vunpack.c.h.b16 %v2276
  %v2945 = vunpack.c.l.b16 %v2277
  %v2946 = vunpack.c.h.b16 %v2277
  %v2947 = vunpack.c.l.b16 %v2278
  %v2948 = vunpack.c.h.b16 %v2278
  %v2949 = vunpack.c.l.b16 %v2279
  %v2950 = vunpack.c.h.b16 %v2279
  %v2951 = vunpack.c.l.b16 %v2280
  %v2952 = vunpack.c.h.b16 %v2280
  %v2953 = vunpack.c.l.b16 %v2281
  %v2954 = vunpack.c.h.b16 %v2281
  %v2955 = vunpack.c.l.b16 %v2282
  %v2956 = vunpack.c.h.b16 %v2282
  %v2957 = vunpack.c.l.b16 %v2283
  %v2958 = vunpack.c.h.b16 %v2283
  %v2959 = vunpack.c.l.b16 %v2284
  %v2960 = vunpack.c.h.b16 %v2284
  %v2961 = vunpack.c.l.b16 %v2285
  %v2962 = vunpack.c.h.b16 %v2285
  %v2963 = vunpack.c.l.b16 %v2286
  %v2964 = vunpack.c.h.b16 %v2286
  %v2965 = vunpack.c.l.b16 %v2287
  %v2966 = vunpack.c.h.b16 %v2287
  %v2967 = vunpack.c.l.b16 %v2288
  %v2968 = vunpack.c.h.b16 %v2288
  %v2969 = vunpack.c.l.b16 %v2289
  %v2970 = vunpack.c.h.b16 %v2289
  %v2971 = vunpack.c.l.b16 %v2290
  %v2972 = vunpack.c.h.b16 %v2290
  %v2973 = vunpack.c.l.b16 %v2291
  %v2974 = vunpack.c.h.b16 %v2291
  %v2975 = vunpack.c.l.b16 %v2292
  %v2976 = vunpack.c.h.b16 %v2292
  %v2977 = vunpack.c.l.b16 %v2293
  %v2978 = vunpack.c.h.b16 %v2293
  %v2979 = vunpack.c.l.b16 %v2294
  %v2980 = vunpack.c.h.b16 %v2294
  %v2981 = vunpack.c.l.b16 %v2295
  %v2982 = vunpack.c.h.b16 %v2295
  %v2983 = vunpack.c.l.b16 %v2296
  %v2984 = vunpack.c.h.b16 %v2296
  %v2985 = vunpack.c.l.b16 %v2297
  %v2986 = vunpack.c.h.b16 %v2297
  %v2987 = vunpack.c.l.b16 %v2298
  %v2988 = vunpack.c.h.b16 %v2298
  %v2989 = vunpack.c.l.b16 %v2299
  %v2990 = vunpack.c.h.b16 %v2299
  %v2991 = vunpack.c.l.b16 %v2300
  %v2992 = vunpack.c.h.b16 %v2300
  %v2993 = vunpack.c.l.b16 %v2301
  %v2994 = vunpack.c.h.b16 %v2301
  %v2995 = vunpack.c.l.b16 %v2302
  %v2996 = vunpack.c.h.b16 %v2302
  %v2997 = vunpack.c.l.b16 %v2303
  %v2998 = vunpack.c.h.b16 %v2303
  %v2999 = vunpack.c.l.b16 %v2304
  %v3000 = vunpack.c.h.b16 %v2304
  %v3001 = vunpack.c.l.b16 %v2305
  %v3002 = vunpack.c.h.b16 %v2305
  %v3003 = vunpack.c.l.b16 %v2306
  %v3004 = vunpack.c.h.b16 %v2306
  %v3005 = vunpack.c.l.b16 %v2307
  %v3006 = vunpack.c.h.b16 %v2307
  %v3007 = vunpack.c.l.b16 %v2308
  %v3008 = vunpack.c.h.b16 %v2308
  %v3009 = vunpack.c.l.b16 %v2309
  %v3010 = vunpack.c.h.b16 %v2309
  %v3011 = vunpack.c.l.b16 %v2310
  %v3012 = vunpack.c.h.b16 %v2310
  %v3013 = vunpack.c.l.b16 %v2311
  %v3014 = vunpack.c.h.b16 %v2311
  %v3015 = vunpack.c.l.b16 %v2312
  %v3016 = vunpack.c.h.b16 %v2312
  %v3017 = vpack.c.b16 %v2769, %v2761
  %v3018 = vpack.c.b16 %v2770, %v2762
  %v3019 = vpack.c.b16 %v2771, %v2763
  %v3020 = vpack.c.b16 %v2772, %v2764
  %v3021 = vpack.c.b16 %v2773, %v2765
  %v3022 = vpack.c.b16 %v2774, %v2766
  %v3023 = vpack.c.b16 %v2775, %v2767
  %v3024 = vpack.c.b16 %v2776, %v2768
  %v3025 = vpack.c.b16 %v2785, %v2777
  %v3026 = vpack.c.b16 %v2786, %v2778
  %v3027 = vpack.c.b16 %v2787, %v2779
  %v3028 = vpack.c.b16 %v2788, %v2780
  %v3029 = vpack.c.b16 %v2789, %v2781
  %v3030 = vpack.c.b16 %v2790, %v2782
  %v3031 = vpack.c.b16 %v2791, %v2783
  %v3032 = vpack.c.b16 %v2792, %v2784
  %v3033 = vpack.c.b16 %v2801, %v2793
  %v3034 = vpack.c.b16 %v2802, %v2794
  %v3035 = vpack.c.b16 %v2803, %v2795
  %v3036 = vpack.c.b16 %v2804, %v2796
  %v3037 = vpack.c.b16 %v2805, %v2797
  %v3038 = vpack.c.b16 %v2806, %v2798
  %v3039 = vpack.c.b16 %v2807, %v2799
  %v3040 = vpack.c.b16 %v2808, %v2800
  %v3041 = vpack.c.b16 %v2817, %v2809
  %v3042 = vpack.c.b16 %v2818, %v2810
  %v3043 = vpack.c.b16 %v2819, %v2811
  %v3044 = vpack.c.b16 %v2820, %v2812
  %v3045 = vpack.c.b16 %v2821, %v2813
  %v3046 = vpack.c.b16 %v2822, %v2814
  %v3047 = vpack.c.b16 %v2823, %v2815
  %v3048 = vpack.c.b16 %v2824, %v2816
  %v3049 = vpack.c.b16 %v2833, %v2825
  %v3050 = vpack.c.b16 %v2834, %v2826
  %v3051 = vpack.c.b16 %v2835, %v2827
  %v3052 = vpack.c.b16 %v2836, %v2828
  %v3053 = vpack.c.b16 %v2837, %v2829
  %v3054 = vpack.c.b16 %v2838, %v2830
  %v3055 = vpack.c.b16 %v2839, %v2831
  %v3056 = vpack.c.b16 %v2840, %v2832
  %v3057 = vpack.c.b16 %v2849, %v2841
  %v3058 = vpack.c.b16 %v2850, %v2842
  %v3059 = vpack.c.b16 %v2851, %v2843
  %v3060 = vpack.c.b16 %v2852, %v2844
  %v3061 = vpack.c.b16 %v2853, %v2845
  %v3062 = vpack.c.b16 %v2854, %v2846
  %v3063 = vpack.c.b16 %v2855, %v2847
  %v3064 = vpack.c.b16 %v2856, %v2848
  %v3065 = vpack.c.b16 %v2865, %v2857
  %v3066 = vpack.c.b16 %v2866, %v2858
  %v3067 = vpack.c.b16 %v2867, %v2859
  %v3068 = vpack.c.b16 %v2868, %v2860
  %v3069 = vpack.c.b16 %v2869, %v2861
  %v3070 = vpack.c.b16 %v2870, %v2862
  %v3071 = vpack.c.b16 %v2871, %v2863
  %v3072 = vpack.c.b16 %v2872, %v2864
  %v3073 = vpack.c.b16 %v2881, %v2873
  %v3074 = vpack.c.b16 %v2882, %v2874
  %v3075 = vpack.c.b16 %v2883, %v2875
  %v3076 = vpack.c.b16 %v2884, %v2876
  %v3077 = vpack.c.b16 %v2885, %v2877
  %v3078 = vpack.c.b16 %v2886, %v2878
  %v3079 = vpack.c.b16 %v2887, %v2879
  %v3080 = vpack.c.b16 %v2888, %v2880
  %v3081 = vpack.c.b16 %v2897, %v2889
  %v3082 = vpack.c.b16 %v2898, %v2890
  %v3083 = vpack.c.b16 %v2899, %v2891
  %v3084 = vpack.c.b16 %v2900, %v2892
  %v3085 = vpack.c.b16 %v2901, %v2893
  %v3086 = vpack.c.b16 %v2902, %v2894
  %v3087 = vpack.c.b16 %v2903, %v2895
  %v3088 = vpack.c.b16 %v2904, %v2896
  %v3089 = vpack.c.b16 %v2913, %v2905
  %v3090 = vpack.c.b16 %v2914, %v2906
  %v3091 = vpack.c.b16 %v2915, %v2907
  %v3092 = vpack.c.b16 %v2916, %v2908
  %v3093 = vpack.c.b16 %v2917, %v2909
  %v3094 = vpack.c.b16 %v2918, %v2910
  %v3095 = vpack.c.b16 %v2919, %v2911
  %v3096 = vpack.c.b16 %v2920, %v2912
  %v3097 = vpack.c.b16 %v2929, %v2921
  %v3098 = vpack.c.b16 %v2930, %v2922
  %v3099 = vpack.c.b16 %v2931, %v2923
  %v3100 = vpack.c.b16 %v2932, %v2924
  %v3101 = vpack.c.b16 %v2933, %v2925
  %v3102 = vpack.c.b16 %v2934, %v2926
  %v3103 = vpack.c.b16 %v2935, %v2927
  %v3104 = vpack.c.b16 %v2936, %v2928
  %v3105 = vpack.c.b16 %v2945, %v2937
  %v3106 = vpack.c.b16 %v2946, %v2938
  %v3107 = vpack.c.b16 %v2947, %v2939
  %v3108 = vpack.c.b16 %v2948, %v2940
  %v3109 = vpack.c.b16 %v2949, %v2941
  %v3110 = vpack.c.b16 %v2950, %v2942
  %v3111 = vpack.c.b16 %v2951, %v2943
  %v3112 = vpack.c.b16 %v2952, %v2944
  %v3113 = vpack.c.b16 %v2961, %v2953
  %v3114 = vpack.c.b16 %v2962, %v2954
  %v3115 = vpack.c.b16 %v2963, %v2955
  %v3116 = vpack.c.b16 %v2964, %v2956
  %v3117 = vpack.c.b16 %v2965, %v2957
  %v3118 = vpack.c.b16 %v2966, %v2958
  %v3119 = vpack.c.b16 %v2967, %v2959
  %v3120 = vpack.c.b16 %v2968, %v2960
  %v3121 = vpack.c.b16 %v2977, %v2969
  %v3122 = vpack.c.b16 %v2978, %v2970
  %v3123 = vpack.c.b16 %v2979, %v2971
  %v3124 = vpack.c.b16 %v2980, %v2972
  %v3125 = vpack.c.b16 %v2981, %v2973
  %v3126 = vpack.c.b16 %v2982, %v2974
  %v3127 = vpack.c.b16 %v2983, %v2975
  %v3128 = vpack.c.b16 %v2984, %v2976
  %v3129 = vpack.c.b16 %v2993, %v2985
  %v3130 = vpack.c.b16 %v2994, %v2986
  %v3131 = vpack.c.b16 %v2995, %v2987
  %v3132 = vpack.c.b16 %v2996, %v2988
  %v3133 = vpack.c.b16 %v2997, %v2989
  %v3134 = vpack.c.b16 %v2998, %v2990
  %v3135 = vpack.c.b16 %v2999, %v2991
  %v3136 = vpack.c.b16 %v3000, %v2992
  %v3137 = vpack.c.b16 %v3009, %v3001
  %v3138 = vpack.c.b16 %v3010, %v3002
  %v3139 = vpack.c.b16 %v3011, %v3003
  %v3140 = vpack.c.b16 %v3012, %v3004
  %v3141 = vpack.c.b16 %v3013, %v3005
  %v3142 = vpack.c.b16 %v3014, %v3006
  %v3143 = vpack.c.b16 %v3015, %v3007
  %v3144 = vpack.c.b16 %v3016, %v3008
  %v3401 = vunpack.c.l.b16 %v2313
  %v3402 = vunpack.c.l.b16 %v2314
  %v3403 = vunpack.c.l.b16 %v2315
  %v3404 = vunpack.c.l.b16 %v2316
  %v3405 = vunpack.c.l.b16 %v2317
  %v3406 = vunpack.c.l.b16 %v2318
  %v3407 = vunpack.c.l.b16 %v2319
  %v3408 = vunpack.c.l.b16 %v2320
  %v3409 = vunpack.c.l.b16 %v2321
  %v3410 = vunpack.c.l.b16 %v2322
  %v3411 = vunpack.c.l.b16 %v2323
  %v3412 = vunpack.c.l.b16 %v2324
  %v3413 = vunpack.c.l.b16 %v2325
  %v3414 = vunpack.c.l.b16 %v2326
  %v3415 = vunpack.c.l.b16 %v2327
  %v3416 = vunpack.c.l.b16 %v2328
  %v3417 = vunpack.c.l.b16 %v2329
  %v3418 = vunpack.c.l.b16 %v2330
  %v3419 = vunpack.c.l.b16 %v2331
  %v3420 = vunpack.c.l.b16 %v2332
  %v3421 = vunpack.c.l.b16 %v2333
  %v3422 = vunpack.c.l.b16 %v2334
  %v3423 = vunpack.c.l.b16 %v2335
  %v3424 = vunpack.c.l.b16 %v2336
  %v3425 = vunpack.c.l.b16 %v2337
  %v3426 = vunpack.c.l.b16 %v2338
  %v3427 = vunpack.c.l.b16 %v2339
  %v3428 = vunpack.c.l.b16 %v2340
  %v3429 = vunpack.c.l.b16 %v2341
  %v3430 = vunpack.c.l.b16 %v2342
  %v3431 = vunpack.c.l.b16 %v2343
  %v3432 = vunpack.c.l.b16 %v2344
  %v3433 = vunpack.c.l.b16 %v2345
  %v3434 = vunpack.c.l.b16 %v2346
  %v3435 = vunpack.c.l.b16 %v2347
  %v3436 = vunpack.c.l.b16 %v2348
  %v3437 = vunpack.c.l.b16 %v2349
  %v3438 = vunpack.c.l.b16 %v2350
  %v3439 = vunpack.c.l.b16 %v2351
  %v3440 = vunpack.c.l.b16 %v2352
  %v3441 = vunpack.c.l.b16 %v2353
  %v3442 = vunpack.c.l.b16 %v2354
  %v3443 = vunpack.c.l.b16 %v2355
  %v3444 = vunpack.c.l.b16 %v2356
  %v3445 = vunpack.c.l.b16 %v2357
  %v3446 = vunpack.c.l.b16 %v2358
  %v3447 = vunpack.c.l.b16 %v2359
  %v3448 = vunpack.c.l.b16 %v2360
  %v3449 = vunpack.c.l.b16 %v2361
  %v3450 = vunpack.c.l.b16 %v2362
  %v3451 = vunpack.c.l.b16 %v2363
  %v3452 = vunpack.c.l.b16 %v2364
  %v3453 = vunpack.c.l.b16 %v2365
  %v3454 = vunpack.c.l.b16 %v2366
  %v3455 = vunpack.c.l.b16 %v2367
  %v3456 = vunpack.c.l.b16 %v2368
  %v3457 = vunpack.c.l.b16 %v2369
  %v3458 = vunpack.c.l.b16 %v2370
  %v3459 = vunpack.c.l.b16 %v2371
  %v3460 = vunpack.c.l.b16 %v2372
  %v3461 = vunpack.c.l.b16 %v2373
  %v3462 = vunpack.c.l.b16 %v2374
  %v3463 = vunpack.c.l.b16 %v2375
  %v3464 = vunpack.c.l.b16 %v2376
  %v3465 = vunpack.c.l.b16 %v2377
  %v3466 = vunpack.c.l.b16 %v2378
  %v3467 = vunpack.c.l.b16 %v2379
  %v3468 = vunpack.c.l.b16 %v2380
  %v3469 = vunpack.c.l.b16 %v2381
  %v3470 = vunpack.c.l.b16 %v2382
  %v3471 = vunpack.c.l.b16 %v2383
  %v3472 = vunpack.c.l.b16 %v2384
  %v3473 = vunpack.c.l.b16 %v2385
  %v3474 = vunpack.c.l.b16 %v2386
  %v3475 = vunpack.c.l.b16 %v2387
  %v3476 = vunpack.c.l.b16 %v2388
  %v3477 = vunpack.c.l.b16 %v2389
  %v3478 = vunpack.c.l.b16 %v2390
  %v3479 = vunpack.c.l.b16 %v2391
  %v3480 = vunpack.c.l.b16 %v2392
  %v3481 = vunpack.c.l.b16 %v2393
  %v3482 = vunpack.c.l.b16 %v2394
  %v3483 = vunpack.c.l.b16 %v2395
  %v3484 = vunpack.c.l.b16 %v2396
  %v3485 = vunpack.c.l.b16 %v2397
  %v3486 = vunpack.c.l.b16 %v2398
  %v3487 = vunpack.c.l.b16 %v2399
  %v3488 = vunpack.c.l.b16 %v2400
  %v3489 = vunpack.c.l.b16 %v2401
  %v3490 = vunpack.c.l.b16 %v2402
  %v3491 = vunpack.c.l.b16 %v2403
  %v3492 = vunpack.c.l.b16 %v2404
  %v3493 = vunpack.c.l.b16 %v2405
  %v3494 = vunpack.c.l.b16 %v2406
  %v3495 = vunpack.c.l.b16 %v2407
  %v3496 = vunpack.c.l.b16 %v2408
  %v3497 = vunpack.c.l.b16 %v2409
  %v3498 = vunpack.c.l.b16 %v2410
  %v3499 = vunpack.c.l.b16 %v2411
  %v3500 = vunpack.c.l.b16 %v2412
  %v3501 = vunpack.c.l.b16 %v2413
  %v3502 = vunpack.c.l.b16 %v2414
  %v3503 = vunpack.c.l.b16 %v2415
  %v3504 = vunpack.c.l.b16 %v2416
  %v3505 = vunpack.c.l.b16 %v2417
  %v3506 = vunpack.c.l.b16 %v2418
  %v3507 = vunpack.c.l.b16 %v2419
  %v3508 = vunpack.c.l.b16 %v2420
  %v3509 = vunpack.c.l.b16 %v2421
  %v3510 = vunpack.c.l.b16 %v2422
  %v3511 = vunpack.c.l.b16 %v2423
  %v3512 = vunpack.c.l.b16 %v2424
  %v3513 = vunpack.c.l.b16 %v2425
  %v3514 = vunpack.c.l.b16 %v2426
  %v3515 = vunpack.c.l.b16 %v2427
  %v3516 = vunpack.c.l.b16 %v2428
  %v3517 = vunpack.c.l.b16 %v2429
  %v3518 = vunpack.c.l.b16 %v2430
  %v3519 = vunpack.c.l.b16 %v2431
  %v3520 = vunpack.c.l.b16 %v2432
  %v3521 = vunpack.c.l.b16 %v2433
  %v3522 = vunpack.c.l.b16 %v2434
  %v3523 = vunpack.c.l.b16 %v2435
  %v3524 = vunpack.c.l.b16 %v2436
  %v3525 = vunpack.c.l.b16 %v2437
  %v3526 = vunpack.c.l.b16 %v2438
  %v3527 = vunpack.c.l.b16 %v2439
  %v3528 = vunpack.c.l.b16 %v2440
  %v3529 = vpack.c.b16 %v3402, %v3401
  %v3530 = vpack.c.b16 %v3404, %v3403
  %v3531 = vpack.c.b16 %v3406, %v3405
  %v3532 = vpack.c.b16 %v3408, %v3407
  %v3533 = vpack.c.b16 %v3410, %v3409
  %v3534 = vpack.c.b16 %v3412, %v3411
  %v3535 = vpack.c.b16 %v3414, %v3413
  %v3536 = vpack.c.b16 %v3416, %v3415
  %v3537 = vpack.c.b16 %v3418, %v3417
  %v3538 = vpack.c.b16 %v3420, %v3419
  %v3539 = vpack.c.b16 %v3422, %v3421
  %v3540 = vpack.c.b16 %v3424, %v3423
  %v3541 = vpack.c.b16 %v3426, %v3425
  %v3542 = vpack.c.b16 %v3428, %v3427
  %v3543 = vpack.c.b16 %v3430, %v3429
  %v3544 = vpack.c.b16 %v3432, %v3431
  %v3545 = vpack.c.b16 %v3434, %v3433
  %v3546 = vpack.c.b16 %v3436, %v3435
  %v3547 = vpack.c.b16 %v3438, %v3437
  %v3548 = vpack.c.b16 %v3440, %v3439
  %v3549 = vpack.c.b16 %v3442, %v3441
  %v3550 = vpack.c.b16 %v3444, %v3443
  %v3551 = vpack.c.b16 %v3446, %v3445
  %v3552 = vpack.c.b16 %v3448, %v3447
  %v3553 = vpack.c.b16 %v3450, %v3449
  %v3554 = vpack.c.b16 %v3452, %v3451
  %v3555 = vpack.c.b16 %v3454, %v3453
  %v3556 = vpack.c.b16 %v3456, %v3455
  %v3557 = vpack.c.b16 %v3458, %v3457
  %v3558 = vpack.c.b16 %v3460, %v3459
  %v3559 = vpack.c.b16 %v3462, %v3461
  %v3560 = vpack.c.b16 %v3464, %v3463
  %v3561 = vpack.c.b16 %v3466, %v3465
  %v3562 = vpack.c.b16 %v3468, %v3467
  %v3563 = vpack.c.b16 %v3470, %v3469
  %v3564 = vpack.c.b16 %v3472, %v3471
  %v3565 = vpack.c.b16 %v3474, %v3473
  %v3566 = vpack.c.b16 %v3476, %v3475
  %v3567 = vpack.c.b16 %v3478, %v3477
  %v3568 = vpack.c.b16 %v3480, %v3479
  %v3569 = vpack.c.b16 %v3482, %v3481
  %v3570 = vpack.c.b16 %v3484, %v3483
  %v3571 = vpack.c.b16 %v3486, %v3485
  %v3572 = vpack.c.b16 %v3488, %v3487
  %v3573 = vpack.c.b16 %v3490, %v3489
  %v3574 = vpack.c.b16 %v3492, %v3491
  %v3575 = vpack.c.b16 %v3494, %v3493
  %v3576 = vpack.c.b16 %v3496, %v3495
  %v3577 = vpack.c.b16 %v3498, %v3497
  %v3578 = vpack.c.b16 %v3500, %v3499
  %v3579 = vpack.c.b16 %v3502, %v3501
  %v3580 = vpack.c.b16 %v3504, %v3503
  %v3581 = vpack.c.b16 %v3506, %v3505
  %v3582 = vpack.c.b16 %v3508, %v3507
  %v3583 = vpack.c.b16 %v3510, %v3509
  %v3584 = vpack.c.b16 %v3512, %v3511
  %v3585 = vpack.c.b16 %v3514, %v3513
  %v3586 = vpack.c.b16 %v3516, %v3515
  %v3587 = vpack.c.b16 %v3518, %v3517
  %v3588 = vpack.c.b16 %v3520, %v3519
  %v3589 = vpack.c.b16 %v3522, %v3521
  %v3590 = vpack.c.b16 %v3524, %v3523
  %v3591 = vpack.c.b16 %v3526, %v3525
  %v3592 = vpack.c.b16 %v3528, %v3527
  %3657 = vmatprep.subr.bf16.mxu0 0
  %3658 = vmatpush1.bf16.msra.mxu0 %v3529
  %3659 = vmatprep.subr.bf16.mxu0 0
  %3660 = vmatpush1.bf16.msra.mxu0 %v3530
  %3661 = vmatprep.subr.bf16.mxu0 0
  %3662 = vmatpush1.bf16.msra.mxu0 %v3531
  %3663 = vmatprep.subr.bf16.mxu0 0
  %3664 = vmatpush1.bf16.msra.mxu0 %v3532
  %3665 = vmatprep.subr.bf16.mxu0 0
  %3666 = vmatpush1.bf16.msra.mxu0 %v3533
  %3667 = vmatprep.subr.bf16.mxu0 0
  %3668 = vmatpush1.bf16.msra.mxu0 %v3534
  %3669 = vmatprep.subr.bf16.mxu0 0
  %3670 = vmatpush1.bf16.msra.mxu0 %v3535
  %3671 = vmatprep.subr.bf16.mxu0 0
  %3672 = vmatpush1.bf16.msra.mxu0 %v3536
  %3673 = vmatprep.subr.bf16.mxu0 0
  %3674 = vmatpush1.bf16.msra.mxu0 %v3537
  %3675 = vmatprep.subr.bf16.mxu0 0
  %3676 = vmatpush1.bf16.msra.mxu0 %v3538
  %3677 = vmatprep.subr.bf16.mxu0 0
  %3678 = vmatpush1.bf16.msra.mxu0 %v3539
  %3679 = vmatprep.subr.bf16.mxu0 0
  %3680 = vmatpush1.bf16.msra.mxu0 %v3540
  %3681 = vmatprep.subr.bf16.mxu0 0
  %3682 = vmatpush1.bf16.msra.mxu0 %v3541
  %3683 = vmatprep.subr.bf16.mxu0 0
  %3684 = vmatpush1.bf16.msra.mxu0 %v3542
  %3685 = vmatprep.subr.bf16.mxu0 0
  %3686 = vmatpush1.bf16.msra.mxu0 %v3543
  %3687 = vmatprep.subr.bf16.mxu0 0
  %3688 = vmatpush1.bf16.msra.mxu0 %v3544
  %3689 = vmatprep.mubr.bf16.mxu0 %v3018
  %3690 = vmatmul.mubr.bf16.gmra.mrb[0].mxu0 %v3017
  %v3691 = vpop.f32.mrb[0].mxu0
  %v3692 = vadd.f32 %v2476, %v3691
  %v3693 = vpop.f32.mrb[0].mxu0
  %v3694 = vpop.f32.mrb[0].mxu0
  %v3695 = vadd.f32 %v2481, %v3694
  %v3696 = vpop.f32.mrb[0].mxu0
  %3697 = vmatprep.mubr.bf16.mxu0 %v3026
  %3698 = vmatmul.mubr.bf16.gmra.mrb[0].mxu0 %v3025
  %v3699 = vpop.f32.mrb[0].mxu0
  %v3700 = vadd.f32 %v2486, %v3699
  %v3701 = vpop.f32.mrb[0].mxu0
  %v3702 = vpop.f32.mrb[0].mxu0
  %v3703 = vadd.f32 %v2491, %v3702
  %v3704 = vpop.f32.mrb[0].mxu0
  %3705 = vmatprep.mubr.bf16.mxu0 %v3034
  %3706 = vmatmul.mubr.bf16.gmra.mrb[0].mxu0 %v3033
  %v3707 = vpop.f32.mrb[0].mxu0
  %v3708 = vadd.f32 %v2496, %v3707
  %v3709 = vpop.f32.mrb[0].mxu0
  %v3710 = vpop.f32.mrb[0].mxu0
  %v3711 = vadd.f32 %v2501, %v3710
  %v3712 = vpop.f32.mrb[0].mxu0
  %3713 = vmatprep.mubr.bf16.mxu0 %v3042
  %3714 = vmatmul.mubr.bf16.gmra.mrb[0].mxu0 %v3041
  %v3715 = vpop.f32.mrb[0].mxu0
  %v3716 = vadd.f32 %v2506, %v3715
  %v3717 = vpop.f32.mrb[0].mxu0
  %v3718 = vpop.f32.mrb[0].mxu0
  %v3719 = vadd.f32 %v2511, %v3718
  %v3720 = vpop.f32.mrb[0].mxu0
  %3721 = vmatprep.mubr.bf16.mxu0 %v3050
  %3722 = vmatmul.mubr.bf16.gmra.mrb[0].mxu0 %v3049
  %v3723 = vpop.f32.mrb[0].mxu0
  %v3724 = vadd.f32 %v2516, %v3723
  %v3725 = vpop.f32.mrb[0].mxu0
  %v3726 = vpop.f32.mrb[0].mxu0
  %v3727 = vadd.f32 %v2521, %v3726
  %v3728 = vpop.f32.mrb[0].mxu0
  %3729 = vmatprep.mubr.bf16.mxu0 %v3058
  %3730 = vmatmul.mubr.bf16.gmra.mrb[0].mxu0 %v3057
  %v3731 = vpop.f32.mrb[0].mxu0
  %v3732 = vadd.f32 %v2526, %v3731
  %v3733 = vpop.f32.mrb[0].mxu0
  %v3734 = vpop.f32.mrb[0].mxu0
  %v3735 = vadd.f32 %v2531, %v3734
  %v3736 = vpop.f32.mrb[0].mxu0
  %3737 = vmatprep.mubr.bf16.mxu0 %v3066
  %3738 = vmatmul.mubr.bf16.gmra.mrb[0].mxu0 %v3065
  %v3739 = vpop.f32.mrb[0].mxu0
  %v3740 = vadd.f32 %v2536, %v3739
  %v3741 = vpop.f32.mrb[0].mxu0
  %v3742 = vpop.f32.mrb[0].mxu0
  %v3743 = vadd.f32 %v2541, %v3742
  %v3744 = vpop.f32.mrb[0].mxu0
  %3745 = vmatprep.mubr.bf16.mxu0 %v3074
  %3746 = vmatmul.mubr.bf16.gmra.mrb[0].mxu0 %v3073
  %v3747 = vpop.f32.mrb[0].mxu0
  %v3748 = vadd.f32 %v2546, %v3747
  %v3749 = vpop.f32.mrb[0].mxu0
  %v3750 = vpop.f32.mrb[0].mxu0
  %v3751 = vadd.f32 %v2551, %v3750
  %v3752 = vpop.f32.mrb[0].mxu0
  %3753 = vmatprep.mubr.bf16.mxu0 %v3082
  %3754 = vmatmul.mubr.bf16.gmra.mrb[0].mxu0 %v3081
  %v3755 = vpop.f32.mrb[0].mxu0
  %v3756 = vadd.f32 %v2556, %v3755
  %v3757 = vpop.f32.mrb[0].mxu0
  %v3758 = vpop.f32.mrb[0].mxu0
  %v3759 = vadd.f32 %v2561, %v3758
  %v3760 = vpop.f32.mrb[0].mxu0
  %3761 = vmatprep.mubr.bf16.mxu0 %v3090
  %3762 = vmatmul.mubr.bf16.gmra.mrb[0].mxu0 %v3089
  %v3763 = vpop.f32.mrb[0].mxu0
  %v3764 = vadd.f32 %v2566, %v3763
  %v3765 = vpop.f32.mrb[0].mxu0
  %v3766 = vpop.f32.mrb[0].mxu0
  %v3767 = vadd.f32 %v2571, %v3766
  %v3768 = vpop.f32.mrb[0].mxu0
  %3769 = vmatprep.mubr.bf16.mxu0 %v3098
  %3770 = vmatmul.mubr.bf16.gmra.mrb[0].mxu0 %v3097
  %v3771 = vpop.f32.mrb[0].mxu0
  %v3772 = vadd.f32 %v2576, %v3771
  %v3773 = vpop.f32.mrb[0].mxu0
  %v3774 = vpop.f32.mrb[0].mxu0
  %v3775 = vadd.f32 %v2581, %v3774
  %v3776 = vpop.f32.mrb[0].mxu0
  %3777 = vmatprep.mubr.bf16.mxu0 %v3106
  %3778 = vmatmul.mubr.bf16.gmra.mrb[0].mxu0 %v3105
  %v3779 = vpop.f32.mrb[0].mxu0
  %v3780 = vadd.f32 %v2586, %v3779
  %v3781 = vpop.f32.mrb[0].mxu0
  %v3782 = vpop.f32.mrb[0].mxu0
  %v3783 = vadd.f32 %v2591, %v3782
  %v3784 = vpop.f32.mrb[0].mxu0
  %3785 = vmatprep.mubr.bf16.mxu0 %v3114
  %3786 = vmatmul.mubr.bf16.gmra.mrb[0].mxu0 %v3113
  %v3787 = vpop.f32.mrb[0].mxu0
  %v3788 = vadd.f32 %v2596, %v3787
  %v3789 = vpop.f32.mrb[0].mxu0
  %v3790 = vpop.f32.mrb[0].mxu0
  %v3791 = vadd.f32 %v2601, %v3790
  %v3792 = vpop.f32.mrb[0].mxu0
  %3793 = vmatprep.mubr.bf16.mxu0 %v3122
  %3794 = vmatmul.mubr.bf16.gmra.mrb[0].mxu0 %v3121
  %v3795 = vpop.f32.mrb[0].mxu0
  %v3796 = vadd.f32 %v2606, %v3795
  %v3797 = vpop.f32.mrb[0].mxu0
  %v3798 = vpop.f32.mrb[0].mxu0
  %v3799 = vadd.f32 %v2611, %v3798
  %v3800 = vpop.f32.mrb[0].mxu0
  %3801 = vmatprep.mubr.bf16.mxu0 %v3130
  %3802 = vmatmul.mubr.bf16.gmra.mrb[0].mxu0 %v3129
  %v3803 = vpop.f32.mrb[0].mxu0
  %v3804 = vadd.f32 %v2616, %v3803
  %v3805 = vpop.f32.mrb[0].mxu0
  %v3806 = vpop.f32.mrb[0].mxu0
  %v3807 = vadd.f32 %v2621, %v3806
  %v3808 = vpop.f32.mrb[0].mxu0
  %3809 = vmatprep.mubr.bf16.mxu0 %v3138
  %3810 = vmatmul.mubr.bf16.gmra.mrb[0].mxu0 %v3137
  %v3811 = vpop.f32.mrb[0].mxu0
  %v3812 = vadd.f32 %v2626, %v3811
  %v3813 = vpop.f32.mrb[0].mxu0
  %v3814 = vpop.f32.mrb[0].mxu0
  %v3815 = vadd.f32 %v2631, %v3814
  %v3816 = vpop.f32.mrb[0].mxu0
  %3817 = vdwg.mxu0
  %3818 = vmatprep.subr.bf16.mxu0 0
  %3819 = vmatpush1.bf16.msra.mxu0 %v3545
  %3820 = vmatprep.subr.bf16.mxu0 0
  %3821 = vmatpush1.bf16.msra.mxu0 %v3546
  %3822 = vmatprep.subr.bf16.mxu0 0
  %3823 = vmatpush1.bf16.msra.mxu0 %v3547
  %3824 = vmatprep.subr.bf16.mxu0 0
  %3825 = vmatpush1.bf16.msra.mxu0 %v3548
  %3826 = vmatprep.subr.bf16.mxu0 0
  %3827 = vmatpush1.bf16.msra.mxu0 %v3549
  %3828 = vmatprep.subr.bf16.mxu0 0
  %3829 = vmatpush1.bf16.msra.mxu0 %v3550
  %3830 = vmatprep.subr.bf16.mxu0 0
  %3831 = vmatpush1.bf16.msra.mxu0 %v3551
  %3832 = vmatprep.subr.bf16.mxu0 0
  %3833 = vmatpush1.bf16.msra.mxu0 %v3552
  %3834 = vmatprep.subr.bf16.mxu0 0
  %3835 = vmatpush1.bf16.msra.mxu0 %v3553
  %3836 = vmatprep.subr.bf16.mxu0 0
  %3837 = vmatpush1.bf16.msra.mxu0 %v3554
  %3838 = vmatprep.subr.bf16.mxu0 0
  %3839 = vmatpush1.bf16.msra.mxu0 %v3555
  %3840 = vmatprep.subr.bf16.mxu0 0
  %3841 = vmatpush1.bf16.msra.mxu0 %v3556
  %3842 = vmatprep.subr.bf16.mxu0 0
  %3843 = vmatpush1.bf16.msra.mxu0 %v3557
  %3844 = vmatprep.subr.bf16.mxu0 0
  %3845 = vmatpush1.bf16.msra.mxu0 %v3558
  %3846 = vmatprep.subr.bf16.mxu0 0
  %3847 = vmatpush1.bf16.msra.mxu0 %v3559
  %3848 = vmatprep.subr.bf16.mxu0 0
  %3849 = vmatpush1.bf16.msra.mxu0 %v3560
  %3850 = vmatprep.mubr.bf16.mxu0 %v3020
  %3851 = vmatmul.mubr.bf16.gmra.mrb[0].mxu0 %v3019
  %v3852 = vpop.f32.mrb[0].mxu0
  %v3853 = vadd.f32 %v3692, %v3852
  %v3854 = vpop.f32.mrb[0].mxu0
  %v3855 = vpop.f32.mrb[0].mxu0
  %v3856 = vadd.f32 %v3695, %v3855
  %v3857 = vpop.f32.mrb[0].mxu0
  %3858 = vmatprep.mubr.bf16.mxu0 %v3028
  %3859 = vmatmul.mubr.bf16.gmra.mrb[0].mxu0 %v3027
  %v3860 = vpop.f32.mrb[0].mxu0
  %v3861 = vadd.f32 %v3700, %v3860
  %v3862 = vpop.f32.mrb[0].mxu0
  %v3863 = vpop.f32.mrb[0].mxu0
  %v3864 = vadd.f32 %v3703, %v3863
  %v3865 = vpop.f32.mrb[0].mxu0
  %3866 = vmatprep.mubr.bf16.mxu0 %v3036
  %3867 = vmatmul.mubr.bf16.gmra.mrb[0].mxu0 %v3035
  %v3868 = vpop.f32.mrb[0].mxu0
  %v3869 = vadd.f32 %v3708, %v3868
  %v3870 = vpop.f32.mrb[0].mxu0
  %v3871 = vpop.f32.mrb[0].mxu0
  %v3872 = vadd.f32 %v3711, %v3871
  %v3873 = vpop.f32.mrb[0].mxu0
  %3874 = vmatprep.mubr.bf16.mxu0 %v3044
  %3875 = vmatmul.mubr.bf16.gmra.mrb[0].mxu0 %v3043
  %v3876 = vpop.f32.mrb[0].mxu0
  %v3877 = vadd.f32 %v3716, %v3876
  %v3878 = vpop.f32.mrb[0].mxu0
  %v3879 = vpop.f32.mrb[0].mxu0
  %v3880 = vadd.f32 %v3719, %v3879
  %v3881 = vpop.f32.mrb[0].mxu0
  %3882 = vmatprep.mubr.bf16.mxu0 %v3052
  %3883 = vmatmul.mubr.bf16.gmra.mrb[0].mxu0 %v3051
  %v3884 = vpop.f32.mrb[0].mxu0
  %v3885 = vadd.f32 %v3724, %v3884
  %v3886 = vpop.f32.mrb[0].mxu0
  %v3887 = vpop.f32.mrb[0].mxu0
  %v3888 = vadd.f32 %v3727, %v3887
  %v3889 = vpop.f32.mrb[0].mxu0
  %3890 = vmatprep.mubr.bf16.mxu0 %v3060
  %3891 = vmatmul.mubr.bf16.gmra.mrb[0].mxu0 %v3059
  %v3892 = vpop.f32.mrb[0].mxu0
  %v3893 = vadd.f32 %v3732, %v3892
  %v3894 = vpop.f32.mrb[0].mxu0
  %v3895 = vpop.f32.mrb[0].mxu0
  %v3896 = vadd.f32 %v3735, %v3895
  %v3897 = vpop.f32.mrb[0].mxu0
  %3898 = vmatprep.mubr.bf16.mxu0 %v3068
  %3899 = vmatmul.mubr.bf16.gmra.mrb[0].mxu0 %v3067
  %v3900 = vpop.f32.mrb[0].mxu0
  %v3901 = vadd.f32 %v3740, %v3900
  %v3902 = vpop.f32.mrb[0].mxu0
  %v3903 = vpop.f32.mrb[0].mxu0
  %v3904 = vadd.f32 %v3743, %v3903
  %v3905 = vpop.f32.mrb[0].mxu0
  %3906 = vmatprep.mubr.bf16.mxu0 %v3076
  %3907 = vmatmul.mubr.bf16.gmra.mrb[0].mxu0 %v3075
  %v3908 = vpop.f32.mrb[0].mxu0
  %v3909 = vadd.f32 %v3748, %v3908
  %v3910 = vpop.f32.mrb[0].mxu0
  %v3911 = vpop.f32.mrb[0].mxu0
  %v3912 = vadd.f32 %v3751, %v3911
  %v3913 = vpop.f32.mrb[0].mxu0
  %3914 = vmatprep.mubr.bf16.mxu0 %v3084
  %3915 = vmatmul.mubr.bf16.gmra.mrb[0].mxu0 %v3083
  %v3916 = vpop.f32.mrb[0].mxu0
  %v3917 = vadd.f32 %v3756, %v3916
  %v3918 = vpop.f32.mrb[0].mxu0
  %v3919 = vpop.f32.mrb[0].mxu0
  %v3920 = vadd.f32 %v3759, %v3919
  %v3921 = vpop.f32.mrb[0].mxu0
  %3922 = vmatprep.mubr.bf16.mxu0 %v3092
  %3923 = vmatmul.mubr.bf16.gmra.mrb[0].mxu0 %v3091
  %v3924 = vpop.f32.mrb[0].mxu0
  %v3925 = vadd.f32 %v3764, %v3924
  %v3926 = vpop.f32.mrb[0].mxu0
  %v3927 = vpop.f32.mrb[0].mxu0
  %v3928 = vadd.f32 %v3767, %v3927
  %v3929 = vpop.f32.mrb[0].mxu0
  %3930 = vmatprep.mubr.bf16.mxu0 %v3100
  %3931 = vmatmul.mubr.bf16.gmra.mrb[0].mxu0 %v3099
  %v3932 = vpop.f32.mrb[0].mxu0
  %v3933 = vadd.f32 %v3772, %v3932
  %v3934 = vpop.f32.mrb[0].mxu0
  %v3935 = vpop.f32.mrb[0].mxu0
  %v3936 = vadd.f32 %v3775, %v3935
  %v3937 = vpop.f32.mrb[0].mxu0
  %3938 = vmatprep.mubr.bf16.mxu0 %v3108
  %3939 = vmatmul.mubr.bf16.gmra.mrb[0].mxu0 %v3107
  %v3940 = vpop.f32.mrb[0].mxu0
  %v3941 = vadd.f32 %v3780, %v3940
  %v3942 = vpop.f32.mrb[0].mxu0
  %v3943 = vpop.f32.mrb[0].mxu0
  %v3944 = vadd.f32 %v3783, %v3943
  %v3945 = vpop.f32.mrb[0].mxu0
  %3946 = vmatprep.mubr.bf16.mxu0 %v3116
  %3947 = vmatmul.mubr.bf16.gmra.mrb[0].mxu0 %v3115
  %v3948 = vpop.f32.mrb[0].mxu0
  %v3949 = vadd.f32 %v3788, %v3948
  %v3950 = vpop.f32.mrb[0].mxu0
  %v3951 = vpop.f32.mrb[0].mxu0
  %v3952 = vadd.f32 %v3791, %v3951
  %v3953 = vpop.f32.mrb[0].mxu0
  %3954 = vmatprep.mubr.bf16.mxu0 %v3124
  %3955 = vmatmul.mubr.bf16.gmra.mrb[0].mxu0 %v3123
  %v3956 = vpop.f32.mrb[0].mxu0
  %v3957 = vadd.f32 %v3796, %v3956
  %v3958 = vpop.f32.mrb[0].mxu0
  %v3959 = vpop.f32.mrb[0].mxu0
  %v3960 = vadd.f32 %v3799, %v3959
  %v3961 = vpop.f32.mrb[0].mxu0
  %3962 = vmatprep.mubr.bf16.mxu0 %v3132
  %3963 = vmatmul.mubr.bf16.gmra.mrb[0].mxu0 %v3131
  %v3964 = vpop.f32.mrb[0].mxu0
  %v3965 = vadd.f32 %v3804, %v3964
  %v3966 = vpop.f32.mrb[0].mxu0
  %v3967 = vpop.f32.mrb[0].mxu0
  %v3968 = vadd.f32 %v3807, %v3967
  %v3969 = vpop.f32.mrb[0].mxu0
  %3970 = vmatprep.mubr.bf16.mxu0 %v3140
  %3971 = vmatmul.mubr.bf16.gmra.mrb[0].mxu0 %v3139
  %v3972 = vpop.f32.mrb[0].mxu0
  %v3973 = vadd.f32 %v3812, %v3972
  %v3974 = vpop.f32.mrb[0].mxu0
  %v3975 = vpop.f32.mrb[0].mxu0
  %v3976 = vadd.f32 %v3815, %v3975
  %v3977 = vpop.f32.mrb[0].mxu0
  %3978 = vdwg.mxu0
  %3979 = vmatprep.subr.bf16.mxu0 0
  %3980 = vmatpush1.bf16.msra.mxu0 %v3561
  %3981 = vmatprep.subr.bf16.mxu0 0
  %3982 = vmatpush1.bf16.msra.mxu0 %v3562
  %3983 = vmatprep.subr.bf16.mxu0 0
  %3984 = vmatpush1.bf16.msra.mxu0 %v3563
  %3985 = vmatprep.subr.bf16.mxu0 0
  %3986 = vmatpush1.bf16.msra.mxu0 %v3564
  %3987 = vmatprep.subr.bf16.mxu0 0
  %3988 = vmatpush1.bf16.msra.mxu0 %v3565
  %3989 = vmatprep.subr.bf16.mxu0 0
  %3990 = vmatpush1.bf16.msra.mxu0 %v3566
  %3991 = vmatprep.subr.bf16.mxu0 0
  %3992 = vmatpush1.bf16.msra.mxu0 %v3567
  %3993 = vmatprep.subr.bf16.mxu0 0
  %3994 = vmatpush1.bf16.msra.mxu0 %v3568
  %3995 = vmatprep.subr.bf16.mxu0 0
  %3996 = vmatpush1.bf16.msra.mxu0 %v3569
  %3997 = vmatprep.subr.bf16.mxu0 0
  %3998 = vmatpush1.bf16.msra.mxu0 %v3570
  %3999 = vmatprep.subr.bf16.mxu0 0
  %4000 = vmatpush1.bf16.msra.mxu0 %v3571
  %4001 = vmatprep.subr.bf16.mxu0 0
  %4002 = vmatpush1.bf16.msra.mxu0 %v3572
  %4003 = vmatprep.subr.bf16.mxu0 0
  %4004 = vmatpush1.bf16.msra.mxu0 %v3573
  %4005 = vmatprep.subr.bf16.mxu0 0
  %4006 = vmatpush1.bf16.msra.mxu0 %v3574
  %4007 = vmatprep.subr.bf16.mxu0 0
  %4008 = vmatpush1.bf16.msra.mxu0 %v3575
  %4009 = vmatprep.subr.bf16.mxu0 0
  %4010 = vmatpush1.bf16.msra.mxu0 %v3576
  %4011 = vmatprep.mubr.bf16.mxu0 %v3022
  %4012 = vmatmul.mubr.bf16.gmra.mrb[0].mxu0 %v3021
  %v4013 = vpop.f32.mrb[0].mxu0
  %v4014 = vadd.f32 %v3853, %v4013
  %v4015 = vpop.f32.mrb[0].mxu0
  %v4016 = vpop.f32.mrb[0].mxu0
  %v4017 = vadd.f32 %v3856, %v4016
  %v4018 = vpop.f32.mrb[0].mxu0
  %4019 = vmatprep.mubr.bf16.mxu0 %v3030
  %4020 = vmatmul.mubr.bf16.gmra.mrb[0].mxu0 %v3029
  %v4021 = vpop.f32.mrb[0].mxu0
  %v4022 = vadd.f32 %v3861, %v4021
  %v4023 = vpop.f32.mrb[0].mxu0
  %v4024 = vpop.f32.mrb[0].mxu0
  %v4025 = vadd.f32 %v3864, %v4024
  %v4026 = vpop.f32.mrb[0].mxu0
  %4027 = vmatprep.mubr.bf16.mxu0 %v3038
  %4028 = vmatmul.mubr.bf16.gmra.mrb[0].mxu0 %v3037
  %v4029 = vpop.f32.mrb[0].mxu0
  %v4030 = vadd.f32 %v3869, %v4029
  %v4031 = vpop.f32.mrb[0].mxu0
  %v4032 = vpop.f32.mrb[0].mxu0
  %v4033 = vadd.f32 %v3872, %v4032
  %v4034 = vpop.f32.mrb[0].mxu0
  %4035 = vmatprep.mubr.bf16.mxu0 %v3046
  %4036 = vmatmul.mubr.bf16.gmra.mrb[0].mxu0 %v3045
  %v4037 = vpop.f32.mrb[0].mxu0
  %v4038 = vadd.f32 %v3877, %v4037
  %v4039 = vpop.f32.mrb[0].mxu0
  %v4040 = vpop.f32.mrb[0].mxu0
  %v4041 = vadd.f32 %v3880, %v4040
  %v4042 = vpop.f32.mrb[0].mxu0
  %4043 = vmatprep.mubr.bf16.mxu0 %v3054
  %4044 = vmatmul.mubr.bf16.gmra.mrb[0].mxu0 %v3053
  %v4045 = vpop.f32.mrb[0].mxu0
  %v4046 = vadd.f32 %v3885, %v4045
  %v4047 = vpop.f32.mrb[0].mxu0
  %v4048 = vpop.f32.mrb[0].mxu0
  %v4049 = vadd.f32 %v3888, %v4048
  %v4050 = vpop.f32.mrb[0].mxu0
  %4051 = vmatprep.mubr.bf16.mxu0 %v3062
  %4052 = vmatmul.mubr.bf16.gmra.mrb[0].mxu0 %v3061
  %v4053 = vpop.f32.mrb[0].mxu0
  %v4054 = vadd.f32 %v3893, %v4053
  %v4055 = vpop.f32.mrb[0].mxu0
  %v4056 = vpop.f32.mrb[0].mxu0
  %v4057 = vadd.f32 %v3896, %v4056
  %v4058 = vpop.f32.mrb[0].mxu0
  %4059 = vmatprep.mubr.bf16.mxu0 %v3070
  %4060 = vmatmul.mubr.bf16.gmra.mrb[0].mxu0 %v3069
  %v4061 = vpop.f32.mrb[0].mxu0
  %v4062 = vadd.f32 %v3901, %v4061
  %v4063 = vpop.f32.mrb[0].mxu0
  %v4064 = vpop.f32.mrb[0].mxu0
  %v4065 = vadd.f32 %v3904, %v4064
  %v4066 = vpop.f32.mrb[0].mxu0
  %4067 = vmatprep.mubr.bf16.mxu0 %v3078
  %4068 = vmatmul.mubr.bf16.gmra.mrb[0].mxu0 %v3077
  %v4069 = vpop.f32.mrb[0].mxu0
  %v4070 = vadd.f32 %v3909, %v4069
  %v4071 = vpop.f32.mrb[0].mxu0
  %v4072 = vpop.f32.mrb[0].mxu0
  %v4073 = vadd.f32 %v3912, %v4072
  %v4074 = vpop.f32.mrb[0].mxu0
  %4075 = vmatprep.mubr.bf16.mxu0 %v3086
  %4076 = vmatmul.mubr.bf16.gmra.mrb[0].mxu0 %v3085
  %v4077 = vpop.f32.mrb[0].mxu0
  %v4078 = vadd.f32 %v3917, %v4077
  %v4079 = vpop.f32.mrb[0].mxu0
  %v4080 = vpop.f32.mrb[0].mxu0
  %v4081 = vadd.f32 %v3920, %v4080
  %v4082 = vpop.f32.mrb[0].mxu0
  %4083 = vmatprep.mubr.bf16.mxu0 %v3094
  %4084 = vmatmul.mubr.bf16.gmra.mrb[0].mxu0 %v3093
  %v4085 = vpop.f32.mrb[0].mxu0
  %v4086 = vadd.f32 %v3925, %v4085
  %v4087 = vpop.f32.mrb[0].mxu0
  %v4088 = vpop.f32.mrb[0].mxu0
  %v4089 = vadd.f32 %v3928, %v4088
  %v4090 = vpop.f32.mrb[0].mxu0
  %4091 = vmatprep.mubr.bf16.mxu0 %v3102
  %4092 = vmatmul.mubr.bf16.gmra.mrb[0].mxu0 %v3101
  %v4093 = vpop.f32.mrb[0].mxu0
  %v4094 = vadd.f32 %v3933, %v4093
  %v4095 = vpop.f32.mrb[0].mxu0
  %v4096 = vpop.f32.mrb[0].mxu0
  %v4097 = vadd.f32 %v3936, %v4096
  %v4098 = vpop.f32.mrb[0].mxu0
  %4099 = vmatprep.mubr.bf16.mxu0 %v3110
  %4100 = vmatmul.mubr.bf16.gmra.mrb[0].mxu0 %v3109
  %v4101 = vpop.f32.mrb[0].mxu0
  %v4102 = vadd.f32 %v3941, %v4101
  %v4103 = vpop.f32.mrb[0].mxu0
  %v4104 = vpop.f32.mrb[0].mxu0
  %v4105 = vadd.f32 %v3944, %v4104
  %v4106 = vpop.f32.mrb[0].mxu0
  %4107 = vmatprep.mubr.bf16.mxu0 %v3118
  %4108 = vmatmul.mubr.bf16.gmra.mrb[0].mxu0 %v3117
  %v4109 = vpop.f32.mrb[0].mxu0
  %v4110 = vadd.f32 %v3949, %v4109
  %v4111 = vpop.f32.mrb[0].mxu0
  %v4112 = vpop.f32.mrb[0].mxu0
  %v4113 = vadd.f32 %v3952, %v4112
  %v4114 = vpop.f32.mrb[0].mxu0
  %4115 = vmatprep.mubr.bf16.mxu0 %v3126
  %4116 = vmatmul.mubr.bf16.gmra.mrb[0].mxu0 %v3125
  %v4117 = vpop.f32.mrb[0].mxu0
  %v4118 = vadd.f32 %v3957, %v4117
  %v4119 = vpop.f32.mrb[0].mxu0
  %v4120 = vpop.f32.mrb[0].mxu0
  %v4121 = vadd.f32 %v3960, %v4120
  %v4122 = vpop.f32.mrb[0].mxu0
  %4123 = vmatprep.mubr.bf16.mxu0 %v3134
  %4124 = vmatmul.mubr.bf16.gmra.mrb[0].mxu0 %v3133
  %v4125 = vpop.f32.mrb[0].mxu0
  %v4126 = vadd.f32 %v3965, %v4125
  %v4127 = vpop.f32.mrb[0].mxu0
  %v4128 = vpop.f32.mrb[0].mxu0
  %v4129 = vadd.f32 %v3968, %v4128
  %v4130 = vpop.f32.mrb[0].mxu0
  %4131 = vmatprep.mubr.bf16.mxu0 %v3142
  %4132 = vmatmul.mubr.bf16.gmra.mrb[0].mxu0 %v3141
  %v4133 = vpop.f32.mrb[0].mxu0
  %v4134 = vadd.f32 %v3973, %v4133
  %v4135 = vpop.f32.mrb[0].mxu0
  %v4136 = vpop.f32.mrb[0].mxu0
  %v4137 = vadd.f32 %v3976, %v4136
  %v4138 = vpop.f32.mrb[0].mxu0
  %4139 = vdwg.mxu0
  %4140 = vmatprep.subr.bf16.mxu0 0
  %4141 = vmatpush1.bf16.msra.mxu0 %v3577
  %4142 = vmatprep.subr.bf16.mxu0 0
  %4143 = vmatpush1.bf16.msra.mxu0 %v3578
  %4144 = vmatprep.subr.bf16.mxu0 0
  %4145 = vmatpush1.bf16.msra.mxu0 %v3579
  %4146 = vmatprep.subr.bf16.mxu0 0
  %4147 = vmatpush1.bf16.msra.mxu0 %v3580
  %4148 = vmatprep.subr.bf16.mxu0 0
  %4149 = vmatpush1.bf16.msra.mxu0 %v3581
  %4150 = vmatprep.subr.bf16.mxu0 0
  %4151 = vmatpush1.bf16.msra.mxu0 %v3582
  %4152 = vmatprep.subr.bf16.mxu0 0
  %4153 = vmatpush1.bf16.msra.mxu0 %v3583
  %4154 = vmatprep.subr.bf16.mxu0 0
  %4155 = vmatpush1.bf16.msra.mxu0 %v3584
  %4156 = vmatprep.subr.bf16.mxu0 0
  %4157 = vmatpush1.bf16.msra.mxu0 %v3585
  %4158 = vmatprep.subr.bf16.mxu0 0
  %4159 = vmatpush1.bf16.msra.mxu0 %v3586
  %4160 = vmatprep.subr.bf16.mxu0 0
  %4161 = vmatpush1.bf16.msra.mxu0 %v3587
  %4162 = vmatprep.subr.bf16.mxu0 0
  %4163 = vmatpush1.bf16.msra.mxu0 %v3588
  %4164 = vmatprep.subr.bf16.mxu0 0
  %4165 = vmatpush1.bf16.msra.mxu0 %v3589
  %4166 = vmatprep.subr.bf16.mxu0 0
  %4167 = vmatpush1.bf16.msra.mxu0 %v3590
  %4168 = vmatprep.subr.bf16.mxu0 0
  %4169 = vmatpush1.bf16.msra.mxu0 %v3591
  %4170 = vmatprep.subr.bf16.mxu0 0
  %4171 = vmatpush1.bf16.msra.mxu0 %v3592
  %4172 = vmatprep.mubr.bf16.mxu0 %v3024
  %4173 = vmatmul.mubr.bf16.gmra.mrb[0].mxu0 %v3023
  %v4174 = vpop.f32.mrb[0].mxu0
  %v4175 = vadd.f32 %v4014, %v4174
  %v4176 = vpop.f32.mrb[0].mxu0
  %v4177 = vpop.f32.mrb[0].mxu0
  %v4178 = vadd.f32 %v4017, %v4177
  %v4179 = vpop.f32.mrb[0].mxu0
  %4180 = vmatprep.mubr.bf16.mxu0 %v3032
  %4181 = vmatmul.mubr.bf16.gmra.mrb[0].mxu0 %v3031
  %v4182 = vpop.f32.mrb[0].mxu0
  %v4183 = vadd.f32 %v4022, %v4182
  %v4184 = vpop.f32.mrb[0].mxu0
  %v4185 = vpop.f32.mrb[0].mxu0
  %v4186 = vadd.f32 %v4025, %v4185
  %v4187 = vpop.f32.mrb[0].mxu0
  %4188 = vmatprep.mubr.bf16.mxu0 %v3040
  %4189 = vmatmul.mubr.bf16.gmra.mrb[0].mxu0 %v3039
  %v4190 = vpop.f32.mrb[0].mxu0
  %v4191 = vadd.f32 %v4030, %v4190
  %v4192 = vpop.f32.mrb[0].mxu0
  %v4193 = vpop.f32.mrb[0].mxu0
  %v4194 = vadd.f32 %v4033, %v4193
  %v4195 = vpop.f32.mrb[0].mxu0
  %4196 = vmatprep.mubr.bf16.mxu0 %v3048
  %4197 = vmatmul.mubr.bf16.gmra.mrb[0].mxu0 %v3047
  %v4198 = vpop.f32.mrb[0].mxu0
  %v4199 = vadd.f32 %v4038, %v4198
  %v4200 = vpop.f32.mrb[0].mxu0
  %v4201 = vpop.f32.mrb[0].mxu0
  %v4202 = vadd.f32 %v4041, %v4201
  %v4203 = vpop.f32.mrb[0].mxu0
  %4204 = vmatprep.mubr.bf16.mxu0 %v3056
  %4205 = vmatmul.mubr.bf16.gmra.mrb[0].mxu0 %v3055
  %v4206 = vpop.f32.mrb[0].mxu0
  %v4207 = vadd.f32 %v4046, %v4206
  %v4208 = vpop.f32.mrb[0].mxu0
  %v4209 = vpop.f32.mrb[0].mxu0
  %v4210 = vadd.f32 %v4049, %v4209
  %v4211 = vpop.f32.mrb[0].mxu0
  %4212 = vmatprep.mubr.bf16.mxu0 %v3064
  %4213 = vmatmul.mubr.bf16.gmra.mrb[0].mxu0 %v3063
  %v4214 = vpop.f32.mrb[0].mxu0
  %v4215 = vadd.f32 %v4054, %v4214
  %v4216 = vpop.f32.mrb[0].mxu0
  %v4217 = vpop.f32.mrb[0].mxu0
  %v4218 = vadd.f32 %v4057, %v4217
  %v4219 = vpop.f32.mrb[0].mxu0
  %4220 = vmatprep.mubr.bf16.mxu0 %v3072
  %4221 = vmatmul.mubr.bf16.gmra.mrb[0].mxu0 %v3071
  %v4222 = vpop.f32.mrb[0].mxu0
  %v4223 = vadd.f32 %v4062, %v4222
  %v4224 = vpop.f32.mrb[0].mxu0
  %v4225 = vpop.f32.mrb[0].mxu0
  %v4226 = vadd.f32 %v4065, %v4225
  %v4227 = vpop.f32.mrb[0].mxu0
  %4228 = vmatprep.mubr.bf16.mxu0 %v3080
  %4229 = vmatmul.mubr.bf16.gmra.mrb[0].mxu0 %v3079
  %v4230 = vpop.f32.mrb[0].mxu0
  %v4231 = vadd.f32 %v4070, %v4230
  %v4232 = vpop.f32.mrb[0].mxu0
  %v4233 = vpop.f32.mrb[0].mxu0
  %v4234 = vadd.f32 %v4073, %v4233
  %v4235 = vpop.f32.mrb[0].mxu0
  %4236 = vmatprep.mubr.bf16.mxu0 %v3088
  %4237 = vmatmul.mubr.bf16.gmra.mrb[0].mxu0 %v3087
  %v4238 = vpop.f32.mrb[0].mxu0
  %v4239 = vadd.f32 %v4078, %v4238
  %v4240 = vpop.f32.mrb[0].mxu0
  %v4241 = vpop.f32.mrb[0].mxu0
  %v4242 = vadd.f32 %v4081, %v4241
  %v4243 = vpop.f32.mrb[0].mxu0
  %4244 = vmatprep.mubr.bf16.mxu0 %v3096
  %4245 = vmatmul.mubr.bf16.gmra.mrb[0].mxu0 %v3095
  %v4246 = vpop.f32.mrb[0].mxu0
  %v4247 = vadd.f32 %v4086, %v4246
  %v4248 = vpop.f32.mrb[0].mxu0
  %v4249 = vpop.f32.mrb[0].mxu0
  %v4250 = vadd.f32 %v4089, %v4249
  %v4251 = vpop.f32.mrb[0].mxu0
  %4252 = vmatprep.mubr.bf16.mxu0 %v3104
  %4253 = vmatmul.mubr.bf16.gmra.mrb[0].mxu0 %v3103
  %v4254 = vpop.f32.mrb[0].mxu0
  %v4255 = vadd.f32 %v4094, %v4254
  %v4256 = vpop.f32.mrb[0].mxu0
  %v4257 = vpop.f32.mrb[0].mxu0
  %v4258 = vadd.f32 %v4097, %v4257
  %v4259 = vpop.f32.mrb[0].mxu0
  %4260 = vmatprep.mubr.bf16.mxu0 %v3112
  %4261 = vmatmul.mubr.bf16.gmra.mrb[0].mxu0 %v3111
  %v4262 = vpop.f32.mrb[0].mxu0
  %v4263 = vadd.f32 %v4102, %v4262
  %v4264 = vpop.f32.mrb[0].mxu0
  %v4265 = vpop.f32.mrb[0].mxu0
  %v4266 = vadd.f32 %v4105, %v4265
  %v4267 = vpop.f32.mrb[0].mxu0
  %4268 = vmatprep.mubr.bf16.mxu0 %v3120
  %4269 = vmatmul.mubr.bf16.gmra.mrb[0].mxu0 %v3119
  %v4270 = vpop.f32.mrb[0].mxu0
  %v4271 = vadd.f32 %v4110, %v4270
  %v4272 = vpop.f32.mrb[0].mxu0
  %v4273 = vpop.f32.mrb[0].mxu0
  %v4274 = vadd.f32 %v4113, %v4273
  %v4275 = vpop.f32.mrb[0].mxu0
  %4276 = vmatprep.mubr.bf16.mxu0 %v3128
  %4277 = vmatmul.mubr.bf16.gmra.mrb[0].mxu0 %v3127
  %v4278 = vpop.f32.mrb[0].mxu0
  %v4279 = vadd.f32 %v4118, %v4278
  %v4280 = vpop.f32.mrb[0].mxu0
  %v4281 = vpop.f32.mrb[0].mxu0
  %v4282 = vadd.f32 %v4121, %v4281
  %v4283 = vpop.f32.mrb[0].mxu0
  %4284 = vmatprep.mubr.bf16.mxu0 %v3136
  %4285 = vmatmul.mubr.bf16.gmra.mrb[0].mxu0 %v3135
  %v4286 = vpop.f32.mrb[0].mxu0
  %v4287 = vadd.f32 %v4126, %v4286
  %v4288 = vpop.f32.mrb[0].mxu0
  %v4289 = vpop.f32.mrb[0].mxu0
  %v4290 = vadd.f32 %v4129, %v4289
  %v4291 = vpop.f32.mrb[0].mxu0
  %4292 = vmatprep.mubr.bf16.mxu0 %v3144
  %4293 = vmatmul.mubr.bf16.gmra.mrb[0].mxu0 %v3143
  %v4294 = vpop.f32.mrb[0].mxu0
  %v4295 = vadd.f32 %v4134, %v4294
  %v4296 = vpop.f32.mrb[0].mxu0
  %v4297 = vpop.f32.mrb[0].mxu0
  %v4298 = vadd.f32 %v4137, %v4297
  %v4299 = vpop.f32.mrb[0].mxu0
  %4300 = vdwg.mxu0
  %4301 = vst.msk [vmem:[%s10] sm:$0xff] %vm2152, %v4175
  %4302 = vst.msk [vmem:[%s10 + $0x8] sm:$0xff] %vm2152, %v4178
  %4303 = vst.msk [vmem:[%s10 + $0x10] sm:$0xff] %vm2152, %v4183
  %4304 = vst.msk [vmem:[%s10 + $0x18] sm:$0xff] %vm2152, %v4186
  %4305 = vst.msk [vmem:[%s10 + $0x20] sm:$0xff] %vm2152, %v4191
  %4306 = vst.msk [vmem:[%s10 + $0x28] sm:$0xff] %vm2152, %v4194
  %4307 = vst.msk [vmem:[%s10 + $0x30] sm:$0xff] %vm2152, %v4199
  %4308 = vst.msk [vmem:[%s10 + $0x38] sm:$0xff] %vm2152, %v4202
  %4309 = vst.msk [vmem:[%s10 + $0x40] sm:$0xff] %vm2152, %v4207
  %4310 = vst.msk [vmem:[%s10 + $0x48] sm:$0xff] %vm2152, %v4210
  %4311 = vst.msk [vmem:[%s10 + $0x50] sm:$0xff] %vm2152, %v4215
  %4312 = vst.msk [vmem:[%s10 + $0x58] sm:$0xff] %vm2152, %v4218
  %4313 = vst.msk [vmem:[%s10 + $0x60] sm:$0xff] %vm2152, %v4223
  %4314 = vst.msk [vmem:[%s10 + $0x68] sm:$0xff] %vm2152, %v4226
  %4315 = vst.msk [vmem:[%s10 + $0x70] sm:$0xff] %vm2152, %v4231
  %4316 = vst.msk [vmem:[%s10 + $0x78] sm:$0xff] %vm2152, %v4234
  %4317 = vst.msk [vmem:[%s10 + $0x80] sm:$0xff] %vm2152, %v4239
  %4318 = vst.msk [vmem:[%s10 + $0x88] sm:$0xff] %vm2152, %v4242
  %4319 = vst.msk [vmem:[%s10 + $0x90] sm:$0xff] %vm2152, %v4247
  %4320 = vst.msk [vmem:[%s10 + $0x98] sm:$0xff] %vm2152, %v4250
  %4321 = vst.msk [vmem:[%s10 + $0xa0] sm:$0xff] %vm2152, %v4255
  %4322 = vst.msk [vmem:[%s10 + $0xa8] sm:$0xff] %vm2152, %v4258
  %4323 = vst.msk [vmem:[%s10 + $0xb0] sm:$0xff] %vm2152, %v4263
  %4324 = vst.msk [vmem:[%s10 + $0xb8] sm:$0xff] %vm2152, %v4266
  %4325 = vst.msk [vmem:[%s10 + $0xc0] sm:$0xff] %vm2152, %v4271
  %4326 = vst.msk [vmem:[%s10 + $0xc8] sm:$0xff] %vm2152, %v4274
  %4327 = vst.msk [vmem:[%s10 + $0xd0] sm:$0xff] %vm2152, %v4279
  %4328 = vst.msk [vmem:[%s10 + $0xd8] sm:$0xff] %vm2152, %v4282
  %4329 = vst.msk [vmem:[%s10 + $0xe0] sm:$0xff] %vm2152, %v4287
  %4330 = vst.msk [vmem:[%s10 + $0xe8] sm:$0xff] %vm2152, %v4290
  %4331 = vst.msk [vmem:[%s10 + $0xf0] sm:$0xff] %vm2152, %v4295
  %4332 = vst.msk [vmem:[%s10 + $0xf8] sm:$0xff] %vm2152, %v4298
  %v4333 = vld [vmem:[%s5] sm:$0xff]
  %v4334 = vld [vmem:[%s5 + $0x8] sm:$0xff]
  %v4335 = vld [vmem:[%s5 + $0x10] sm:$0xff]
  %v4336 = vld [vmem:[%s5 + $0x18] sm:$0xff]
  %v4337 = vld [vmem:[%s5 + $0x20] sm:$0xff]
  %v4338 = vld [vmem:[%s5 + $0x28] sm:$0xff]
  %v4339 = vld [vmem:[%s5 + $0x30] sm:$0xff]
  %v4340 = vld [vmem:[%s5 + $0x38] sm:$0xff]
  %v4341 = vld [vmem:[%s5 + $0x40] sm:$0xff]
  %v4342 = vld [vmem:[%s5 + $0x48] sm:$0xff]
  %v4343 = vld [vmem:[%s5 + $0x50] sm:$0xff]
  %v4344 = vld [vmem:[%s5 + $0x58] sm:$0xff]
  %v4345 = vld [vmem:[%s5 + $0x60] sm:$0xff]
  %v4346 = vld [vmem:[%s5 + $0x68] sm:$0xff]
  %v4347 = vld [vmem:[%s5 + $0x70] sm:$0xff]
  %v4348 = vld [vmem:[%s5 + $0x78] sm:$0xff]
  %v4349 = vld [vmem:[%s5 + $0x80] sm:$0xff]
  %v4350 = vld [vmem:[%s5 + $0x88] sm:$0xff]
  %v4351 = vld [vmem:[%s5 + $0x90] sm:$0xff]
  %v4352 = vld [vmem:[%s5 + $0x98] sm:$0xff]
  %v4353 = vld [vmem:[%s5 + $0xa0] sm:$0xff]
  %v4354 = vld [vmem:[%s5 + $0xa8] sm:$0xff]
  %v4355 = vld [vmem:[%s5 + $0xb0] sm:$0xff]
  %v4356 = vld [vmem:[%s5 + $0xb8] sm:$0xff]
  %v4357 = vld [vmem:[%s5 + $0xc0] sm:$0xff]
  %v4358 = vld [vmem:[%s5 + $0xc8] sm:$0xff]
  %v4359 = vld [vmem:[%s5 + $0xd0] sm:$0xff]
  %v4360 = vld [vmem:[%s5 + $0xd8] sm:$0xff]
  %v4361 = vld [vmem:[%s5 + $0xe0] sm:$0xff]
  %v4362 = vld [vmem:[%s5 + $0xe8] sm:$0xff]
  %v4363 = vld [vmem:[%s5 + $0xf0] sm:$0xff]
  %v4364 = vld [vmem:[%s5 + $0xf8] sm:$0xff]
  %v4365 = vld [vmem:[%s5 + $0x100] sm:$0xff]
  %v4366 = vld [vmem:[%s5 + $0x108] sm:$0xff]
  %v4367 = vld [vmem:[%s5 + $0x110] sm:$0xff]
  %v4368 = vld [vmem:[%s5 + $0x118] sm:$0xff]
  %v4369 = vld [vmem:[%s5 + $0x120] sm:$0xff]
  %v4370 = vld [vmem:[%s5 + $0x128] sm:$0xff]
  %v4371 = vld [vmem:[%s5 + $0x130] sm:$0xff]
  %v4372 = vld [vmem:[%s5 + $0x138] sm:$0xff]
  %v4373 = vld [vmem:[%s5 + $0x140] sm:$0xff]
  %v4374 = vld [vmem:[%s5 + $0x148] sm:$0xff]
  %v4375 = vld [vmem:[%s5 + $0x150] sm:$0xff]
  %v4376 = vld [vmem:[%s5 + $0x158] sm:$0xff]
  %v4377 = vld [vmem:[%s5 + $0x160] sm:$0xff]
  %v4378 = vld [vmem:[%s5 + $0x168] sm:$0xff]
  %v4379 = vld [vmem:[%s5 + $0x170] sm:$0xff]
  %v4380 = vld [vmem:[%s5 + $0x178] sm:$0xff]
  %v4381 = vld [vmem:[%s5 + $0x180] sm:$0xff]
  %v4382 = vld [vmem:[%s5 + $0x188] sm:$0xff]
  %v4383 = vld [vmem:[%s5 + $0x190] sm:$0xff]
  %v4384 = vld [vmem:[%s5 + $0x198] sm:$0xff]
  %v4385 = vld [vmem:[%s5 + $0x1a0] sm:$0xff]
  %v4386 = vld [vmem:[%s5 + $0x1a8] sm:$0xff]
  %v4387 = vld [vmem:[%s5 + $0x1b0] sm:$0xff]
  %v4388 = vld [vmem:[%s5 + $0x1b8] sm:$0xff]
  %v4389 = vld [vmem:[%s5 + $0x1c0] sm:$0xff]
  %v4390 = vld [vmem:[%s5 + $0x1c8] sm:$0xff]
  %v4391 = vld [vmem:[%s5 + $0x1d0] sm:$0xff]
  %v4392 = vld [vmem:[%s5 + $0x1d8] sm:$0xff]
  %v4393 = vld [vmem:[%s5 + $0x1e0] sm:$0xff]
  %v4394 = vld [vmem:[%s5 + $0x1e8] sm:$0xff]
  %v4395 = vld [vmem:[%s5 + $0x1f0] sm:$0xff]
  %v4396 = vld [vmem:[%s5 + $0x1f8] sm:$0xff]
  %v4397 = vld [vmem:[%s5 + $0x200] sm:$0xff]
  %v4398 = vld [vmem:[%s5 + $0x208] sm:$0xff]
  %v4399 = vld [vmem:[%s5 + $0x210] sm:$0xff]
  %v4400 = vld [vmem:[%s5 + $0x218] sm:$0xff]
  %v4401 = vld [vmem:[%s5 + $0x220] sm:$0xff]
  %v4402 = vld [vmem:[%s5 + $0x228] sm:$0xff]
  %v4403 = vld [vmem:[%s5 + $0x230] sm:$0xff]
  %v4404 = vld [vmem:[%s5 + $0x238] sm:$0xff]
  %v4405 = vld [vmem:[%s5 + $0x240] sm:$0xff]
  %v4406 = vld [vmem:[%s5 + $0x248] sm:$0xff]
  %v4407 = vld [vmem:[%s5 + $0x250] sm:$0xff]
  %v4408 = vld [vmem:[%s5 + $0x258] sm:$0xff]
  %v4409 = vld [vmem:[%s5 + $0x260] sm:$0xff]
  %v4410 = vld [vmem:[%s5 + $0x268] sm:$0xff]
  %v4411 = vld [vmem:[%s5 + $0x270] sm:$0xff]
  %v4412 = vld [vmem:[%s5 + $0x278] sm:$0xff]
  %v4413 = vld [vmem:[%s5 + $0x280] sm:$0xff]
  %v4414 = vld [vmem:[%s5 + $0x288] sm:$0xff]
  %v4415 = vld [vmem:[%s5 + $0x290] sm:$0xff]
  %v4416 = vld [vmem:[%s5 + $0x298] sm:$0xff]
  %v4417 = vld [vmem:[%s5 + $0x2a0] sm:$0xff]
  %v4418 = vld [vmem:[%s5 + $0x2a8] sm:$0xff]
  %v4419 = vld [vmem:[%s5 + $0x2b0] sm:$0xff]
  %v4420 = vld [vmem:[%s5 + $0x2b8] sm:$0xff]
  %v4421 = vld [vmem:[%s5 + $0x2c0] sm:$0xff]
  %v4422 = vld [vmem:[%s5 + $0x2c8] sm:$0xff]
  %v4423 = vld [vmem:[%s5 + $0x2d0] sm:$0xff]
  %v4424 = vld [vmem:[%s5 + $0x2d8] sm:$0xff]
  %v4425 = vld [vmem:[%s5 + $0x2e0] sm:$0xff]
  %v4426 = vld [vmem:[%s5 + $0x2e8] sm:$0xff]
  %v4427 = vld [vmem:[%s5 + $0x2f0] sm:$0xff]
  %v4428 = vld [vmem:[%s5 + $0x2f8] sm:$0xff]
  %v4429 = vld [vmem:[%s5 + $0x300] sm:$0xff]
  %v4430 = vld [vmem:[%s5 + $0x308] sm:$0xff]
  %v4431 = vld [vmem:[%s5 + $0x310] sm:$0xff]
  %v4432 = vld [vmem:[%s5 + $0x318] sm:$0xff]
  %v4433 = vld [vmem:[%s5 + $0x320] sm:$0xff]
  %v4434 = vld [vmem:[%s5 + $0x328] sm:$0xff]
  %v4435 = vld [vmem:[%s5 + $0x330] sm:$0xff]
  %v4436 = vld [vmem:[%s5 + $0x338] sm:$0xff]
  %v4437 = vld [vmem:[%s5 + $0x340] sm:$0xff]
  %v4438 = vld [vmem:[%s5 + $0x348] sm:$0xff]
  %v4439 = vld [vmem:[%s5 + $0x350] sm:$0xff]
  %v4440 = vld [vmem:[%s5 + $0x358] sm:$0xff]
  %v4441 = vld [vmem:[%s5 + $0x360] sm:$0xff]
  %v4442 = vld [vmem:[%s5 + $0x368] sm:$0xff]
  %v4443 = vld [vmem:[%s5 + $0x370] sm:$0xff]
  %v4444 = vld [vmem:[%s5 + $0x378] sm:$0xff]
  %v4445 = vld [vmem:[%s5 + $0x380] sm:$0xff]
  %v4446 = vld [vmem:[%s5 + $0x388] sm:$0xff]
  %v4447 = vld [vmem:[%s5 + $0x390] sm:$0xff]
  %v4448 = vld [vmem:[%s5 + $0x398] sm:$0xff]
  %v4449 = vld [vmem:[%s5 + $0x3a0] sm:$0xff]
  %v4450 = vld [vmem:[%s5 + $0x3a8] sm:$0xff]
  %v4451 = vld [vmem:[%s5 + $0x3b0] sm:$0xff]
  %v4452 = vld [vmem:[%s5 + $0x3b8] sm:$0xff]
  %v4453 = vld [vmem:[%s5 + $0x3c0] sm:$0xff]
  %v4454 = vld [vmem:[%s5 + $0x3c8] sm:$0xff]
  %v4455 = vld [vmem:[%s5 + $0x3d0] sm:$0xff]
  %v4456 = vld [vmem:[%s5 + $0x3d8] sm:$0xff]
  %v4457 = vld [vmem:[%s5 + $0x3e0] sm:$0xff]
  %v4458 = vld [vmem:[%s5 + $0x3e8] sm:$0xff]
  %v4459 = vld [vmem:[%s5 + $0x3f0] sm:$0xff]
  %v4460 = vld [vmem:[%s5 + $0x3f8] sm:$0xff]
  %v4461 = vld [vmem:[%s2] sm:$0xf]
  %v4462 = vld [vmem:[%s2 + $0x4] sm:$0xf]
  %v4463 = vld [vmem:[%s2 + $0x8] sm:$0xf]
  %v4464 = vld [vmem:[%s2 + $0xc] sm:$0xf]
  %v4465 = vld [vmem:[%s2 + $0x10] sm:$0xf]
  %v4466 = vld [vmem:[%s2 + $0x14] sm:$0xf]
  %v4467 = vld [vmem:[%s2 + $0x18] sm:$0xf]
  %v4468 = vld [vmem:[%s2 + $0x1c] sm:$0xf]
  %v4469 = vld [vmem:[%s2 + $0x20] sm:$0xf]
  %v4470 = vld [vmem:[%s2 + $0x24] sm:$0xf]
  %v4471 = vld [vmem:[%s2 + $0x28] sm:$0xf]
  %v4472 = vld [vmem:[%s2 + $0x2c] sm:$0xf]
  %v4473 = vld [vmem:[%s2 + $0x30] sm:$0xf]
  %v4474 = vld [vmem:[%s2 + $0x34] sm:$0xf]
  %v4475 = vld [vmem:[%s2 + $0x38] sm:$0xf]
  %v4476 = vld [vmem:[%s2 + $0x3c] sm:$0xf]
  %v4477 = vld [vmem:[%s2 + $0x40] sm:$0xf]
  %v4478 = vld [vmem:[%s2 + $0x44] sm:$0xf]
  %v4479 = vld [vmem:[%s2 + $0x48] sm:$0xf]
  %v4480 = vld [vmem:[%s2 + $0x4c] sm:$0xf]
  %v4481 = vld [vmem:[%s2 + $0x50] sm:$0xf]
  %v4482 = vld [vmem:[%s2 + $0x54] sm:$0xf]
  %v4483 = vld [vmem:[%s2 + $0x58] sm:$0xf]
  %v4484 = vld [vmem:[%s2 + $0x5c] sm:$0xf]
  %v4485 = vld [vmem:[%s2 + $0x60] sm:$0xf]
  %v4486 = vld [vmem:[%s2 + $0x64] sm:$0xf]
  %v4487 = vld [vmem:[%s2 + $0x68] sm:$0xf]
  %v4488 = vld [vmem:[%s2 + $0x6c] sm:$0xf]
  %v4489 = vld [vmem:[%s2 + $0x70] sm:$0xf]
  %v4490 = vld [vmem:[%s2 + $0x74] sm:$0xf]
  %v4491 = vld [vmem:[%s2 + $0x78] sm:$0xf]
  %v4492 = vld [vmem:[%s2 + $0x7c] sm:$0xf]
  %v4493 = vld [vmem:[%s2 + $0x80] sm:$0xf]
  %v4494 = vld [vmem:[%s2 + $0x84] sm:$0xf]
  %v4495 = vld [vmem:[%s2 + $0x88] sm:$0xf]
  %v4496 = vld [vmem:[%s2 + $0x8c] sm:$0xf]
  %v4497 = vld [vmem:[%s2 + $0x90] sm:$0xf]
  %v4498 = vld [vmem:[%s2 + $0x94] sm:$0xf]
  %v4499 = vld [vmem:[%s2 + $0x98] sm:$0xf]
  %v4500 = vld [vmem:[%s2 + $0x9c] sm:$0xf]
  %v4501 = vld [vmem:[%s2 + $0xa0] sm:$0xf]
  %v4502 = vld [vmem:[%s2 + $0xa4] sm:$0xf]
  %v4503 = vld [vmem:[%s2 + $0xa8] sm:$0xf]
  %v4504 = vld [vmem:[%s2 + $0xac] sm:$0xf]
  %v4505 = vld [vmem:[%s2 + $0xb0] sm:$0xf]
  %v4506 = vld [vmem:[%s2 + $0xb4] sm:$0xf]
  %v4507 = vld [vmem:[%s2 + $0xb8] sm:$0xf]
  %v4508 = vld [vmem:[%s2 + $0xbc] sm:$0xf]
  %v4509 = vld [vmem:[%s2 + $0xc0] sm:$0xf]
  %v4510 = vld [vmem:[%s2 + $0xc4] sm:$0xf]
  %v4511 = vld [vmem:[%s2 + $0xc8] sm:$0xf]
  %v4512 = vld [vmem:[%s2 + $0xcc] sm:$0xf]
  %v4513 = vld [vmem:[%s2 + $0xd0] sm:$0xf]
  %v4514 = vld [vmem:[%s2 + $0xd4] sm:$0xf]
  %v4515 = vld [vmem:[%s2 + $0xd8] sm:$0xf]
  %v4516 = vld [vmem:[%s2 + $0xdc] sm:$0xf]
  %v4517 = vld [vmem:[%s2 + $0xe0] sm:$0xf]
  %v4518 = vld [vmem:[%s2 + $0xe4] sm:$0xf]
  %v4519 = vld [vmem:[%s2 + $0xe8] sm:$0xf]
  %v4520 = vld [vmem:[%s2 + $0xec] sm:$0xf]
  %v4521 = vld [vmem:[%s2 + $0xf0] sm:$0xf]
  %v4522 = vld [vmem:[%s2 + $0xf4] sm:$0xf]
  %v4523 = vld [vmem:[%s2 + $0xf8] sm:$0xf]
  %v4524 = vld [vmem:[%s2 + $0xfc] sm:$0xf]
  %v4525 = vld [vmem:[%s2 + $0x100] sm:$0xf]
  %v4526 = vld [vmem:[%s2 + $0x104] sm:$0xf]
  %v4527 = vld [vmem:[%s2 + $0x108] sm:$0xf]
  %v4528 = vld [vmem:[%s2 + $0x10c] sm:$0xf]
  %v4529 = vld [vmem:[%s2 + $0x110] sm:$0xf]
  %v4530 = vld [vmem:[%s2 + $0x114] sm:$0xf]
  %v4531 = vld [vmem:[%s2 + $0x118] sm:$0xf]
  %v4532 = vld [vmem:[%s2 + $0x11c] sm:$0xf]
  %v4533 = vld [vmem:[%s2 + $0x120] sm:$0xf]
  %v4534 = vld [vmem:[%s2 + $0x124] sm:$0xf]
  %v4535 = vld [vmem:[%s2 + $0x128] sm:$0xf]
  %v4536 = vld [vmem:[%s2 + $0x12c] sm:$0xf]
  %v4537 = vld [vmem:[%s2 + $0x130] sm:$0xf]
  %v4538 = vld [vmem:[%s2 + $0x134] sm:$0xf]
  %v4539 = vld [vmem:[%s2 + $0x138] sm:$0xf]
  %v4540 = vld [vmem:[%s2 + $0x13c] sm:$0xf]
  %v4541 = vld [vmem:[%s2 + $0x140] sm:$0xf]
  %v4542 = vld [vmem:[%s2 + $0x144] sm:$0xf]
  %v4543 = vld [vmem:[%s2 + $0x148] sm:$0xf]
  %v4544 = vld [vmem:[%s2 + $0x14c] sm:$0xf]
  %v4545 = vld [vmem:[%s2 + $0x150] sm:$0xf]
  %v4546 = vld [vmem:[%s2 + $0x154] sm:$0xf]
  %v4547 = vld [vmem:[%s2 + $0x158] sm:$0xf]
  %v4548 = vld [vmem:[%s2 + $0x15c] sm:$0xf]
  %v4549 = vld [vmem:[%s2 + $0x160] sm:$0xf]
  %v4550 = vld [vmem:[%s2 + $0x164] sm:$0xf]
  %v4551 = vld [vmem:[%s2 + $0x168] sm:$0xf]
  %v4552 = vld [vmem:[%s2 + $0x16c] sm:$0xf]
  %v4553 = vld [vmem:[%s2 + $0x170] sm:$0xf]
  %v4554 = vld [vmem:[%s2 + $0x174] sm:$0xf]
  %v4555 = vld [vmem:[%s2 + $0x178] sm:$0xf]
  %v4556 = vld [vmem:[%s2 + $0x17c] sm:$0xf]
  %v4557 = vld [vmem:[%s2 + $0x180] sm:$0xf]
  %v4558 = vld [vmem:[%s2 + $0x184] sm:$0xf]
  %v4559 = vld [vmem:[%s2 + $0x188] sm:$0xf]
  %v4560 = vld [vmem:[%s2 + $0x18c] sm:$0xf]
  %v4561 = vld [vmem:[%s2 + $0x190] sm:$0xf]
  %v4562 = vld [vmem:[%s2 + $0x194] sm:$0xf]
  %v4563 = vld [vmem:[%s2 + $0x198] sm:$0xf]
  %v4564 = vld [vmem:[%s2 + $0x19c] sm:$0xf]
  %v4565 = vld [vmem:[%s2 + $0x1a0] sm:$0xf]
  %v4566 = vld [vmem:[%s2 + $0x1a4] sm:$0xf]
  %v4567 = vld [vmem:[%s2 + $0x1a8] sm:$0xf]
  %v4568 = vld [vmem:[%s2 + $0x1ac] sm:$0xf]
  %v4569 = vld [vmem:[%s2 + $0x1b0] sm:$0xf]
  %v4570 = vld [vmem:[%s2 + $0x1b4] sm:$0xf]
  %v4571 = vld [vmem:[%s2 + $0x1b8] sm:$0xf]
  %v4572 = vld [vmem:[%s2 + $0x1bc] sm:$0xf]
  %v4573 = vld [vmem:[%s2 + $0x1c0] sm:$0xf]
  %v4574 = vld [vmem:[%s2 + $0x1c4] sm:$0xf]
  %v4575 = vld [vmem:[%s2 + $0x1c8] sm:$0xf]
  %v4576 = vld [vmem:[%s2 + $0x1cc] sm:$0xf]
  %v4577 = vld [vmem:[%s2 + $0x1d0] sm:$0xf]
  %v4578 = vld [vmem:[%s2 + $0x1d4] sm:$0xf]
  %v4579 = vld [vmem:[%s2 + $0x1d8] sm:$0xf]
  %v4580 = vld [vmem:[%s2 + $0x1dc] sm:$0xf]
  %v4581 = vld [vmem:[%s2 + $0x1e0] sm:$0xf]
  %v4582 = vld [vmem:[%s2 + $0x1e4] sm:$0xf]
  %v4583 = vld [vmem:[%s2 + $0x1e8] sm:$0xf]
  %v4584 = vld [vmem:[%s2 + $0x1ec] sm:$0xf]
  %v4585 = vld [vmem:[%s2 + $0x1f0] sm:$0xf]
  %v4586 = vld [vmem:[%s2 + $0x1f4] sm:$0xf]
  %v4587 = vld [vmem:[%s2 + $0x1f8] sm:$0xf]
  %v4588 = vld [vmem:[%s2 + $0x1fc] sm:$0xf]
  %v4589 = vld [vmem:[%s8] sm:$0xff]
  %v4590 = vld [vmem:[%s8 + $0x8] sm:$0xff]
  %v4591 = vld [vmem:[%s8 + $0x10] sm:$0xff]
  %v4592 = vld [vmem:[%s8 + $0x18] sm:$0xff]
  %v4593 = vld [vmem:[%s8 + $0x20] sm:$0xff]
  %v4594 = vld [vmem:[%s8 + $0x28] sm:$0xff]
  %v4595 = vld [vmem:[%s8 + $0x30] sm:$0xff]
  %v4596 = vld [vmem:[%s8 + $0x38] sm:$0xff]
  %v4597 = vld [vmem:[%s8 + $0x40] sm:$0xff]
  %v4598 = vld [vmem:[%s8 + $0x48] sm:$0xff]
  %v4599 = vld [vmem:[%s8 + $0x50] sm:$0xff]
  %v4600 = vld [vmem:[%s8 + $0x58] sm:$0xff]
  %v4601 = vld [vmem:[%s8 + $0x60] sm:$0xff]
  %v4602 = vld [vmem:[%s8 + $0x68] sm:$0xff]
  %v4603 = vld [vmem:[%s8 + $0x70] sm:$0xff]
  %v4604 = vld [vmem:[%s8 + $0x78] sm:$0xff]
  %v4605 = vld [vmem:[%s8 + $0x80] sm:$0xff]
  %v4606 = vld [vmem:[%s8 + $0x88] sm:$0xff]
  %v4607 = vld [vmem:[%s8 + $0x90] sm:$0xff]
  %v4608 = vld [vmem:[%s8 + $0x98] sm:$0xff]
  %v4609 = vld [vmem:[%s8 + $0xa0] sm:$0xff]
  %v4610 = vld [vmem:[%s8 + $0xa8] sm:$0xff]
  %v4611 = vld [vmem:[%s8 + $0xb0] sm:$0xff]
  %v4612 = vld [vmem:[%s8 + $0xb8] sm:$0xff]
  %v4613 = vld [vmem:[%s8 + $0xc0] sm:$0xff]
  %v4614 = vld [vmem:[%s8 + $0xc8] sm:$0xff]
  %v4615 = vld [vmem:[%s8 + $0xd0] sm:$0xff]
  %v4616 = vld [vmem:[%s8 + $0xd8] sm:$0xff]
  %v4617 = vld [vmem:[%s8 + $0xe0] sm:$0xff]
  %v4618 = vld [vmem:[%s8 + $0xe8] sm:$0xff]
  %v4619 = vld [vmem:[%s8 + $0xf0] sm:$0xff]
  %v4620 = vld [vmem:[%s8 + $0xf8] sm:$0xff]
  %4622 = vset.pattern.permute.xlu0 0
  %4623 = vperm.xlu0 %4622, %v4589
  %v4624 = vpop.permute.xlu0 %4623
  %4627 = vset.pattern.permute.xlu0 0
  %4628 = vperm.xlu0 %4627, %v4590
  %v4629 = vpop.permute.xlu0 %4628
  %4632 = vset.pattern.permute.xlu0 0
  %4633 = vperm.xlu0 %4632, %v4591
  %v4634 = vpop.permute.xlu0 %4633
  %4637 = vset.pattern.permute.xlu0 0
  %4638 = vperm.xlu0 %4637, %v4592
  %v4639 = vpop.permute.xlu0 %4638
  %4642 = vset.pattern.permute.xlu0 0
  %4643 = vperm.xlu0 %4642, %v4593
  %v4644 = vpop.permute.xlu0 %4643
  %4647 = vset.pattern.permute.xlu0 0
  %4648 = vperm.xlu0 %4647, %v4594
  %v4649 = vpop.permute.xlu0 %4648
  %4652 = vset.pattern.permute.xlu0 0
  %4653 = vperm.xlu0 %4652, %v4595
  %v4654 = vpop.permute.xlu0 %4653
  %4657 = vset.pattern.permute.xlu0 0
  %4658 = vperm.xlu0 %4657, %v4596
  %v4659 = vpop.permute.xlu0 %4658
  %4662 = vset.pattern.permute.xlu0 0
  %4663 = vperm.xlu0 %4662, %v4597
  %v4664 = vpop.permute.xlu0 %4663
  %4667 = vset.pattern.permute.xlu0 0
  %4668 = vperm.xlu0 %4667, %v4598
  %v4669 = vpop.permute.xlu0 %4668
  %4672 = vset.pattern.permute.xlu0 0
  %4673 = vperm.xlu0 %4672, %v4599
  %v4674 = vpop.permute.xlu0 %4673
  %4677 = vset.pattern.permute.xlu0 0
  %4678 = vperm.xlu0 %4677, %v4600
  %v4679 = vpop.permute.xlu0 %4678
  %4682 = vset.pattern.permute.xlu0 0
  %4683 = vperm.xlu0 %4682, %v4601
  %v4684 = vpop.permute.xlu0 %4683
  %4687 = vset.pattern.permute.xlu0 0
  %4688 = vperm.xlu0 %4687, %v4602
  %v4689 = vpop.permute.xlu0 %4688
  %4692 = vset.pattern.permute.xlu0 0
  %4693 = vperm.xlu0 %4692, %v4603
  %v4694 = vpop.permute.xlu0 %4693
  %4697 = vset.pattern.permute.xlu0 0
  %4698 = vperm.xlu0 %4697, %v4604
  %v4699 = vpop.permute.xlu0 %4698
  %4702 = vset.pattern.permute.xlu0 0
  %4703 = vperm.xlu0 %4702, %v4605
  %v4704 = vpop.permute.xlu0 %4703
  %4707 = vset.pattern.permute.xlu0 0
  %4708 = vperm.xlu0 %4707, %v4606
  %v4709 = vpop.permute.xlu0 %4708
  %4712 = vset.pattern.permute.xlu0 0
  %4713 = vperm.xlu0 %4712, %v4607
  %v4714 = vpop.permute.xlu0 %4713
  %4717 = vset.pattern.permute.xlu0 0
  %4718 = vperm.xlu0 %4717, %v4608
  %v4719 = vpop.permute.xlu0 %4718
  %4722 = vset.pattern.permute.xlu0 0
  %4723 = vperm.xlu0 %4722, %v4609
  %v4724 = vpop.permute.xlu0 %4723
  %4727 = vset.pattern.permute.xlu0 0
  %4728 = vperm.xlu0 %4727, %v4610
  %v4729 = vpop.permute.xlu0 %4728
  %4732 = vset.pattern.permute.xlu0 0
  %4733 = vperm.xlu0 %4732, %v4611
  %v4734 = vpop.permute.xlu0 %4733
  %4737 = vset.pattern.permute.xlu0 0
  %4738 = vperm.xlu0 %4737, %v4612
  %v4739 = vpop.permute.xlu0 %4738
  %4742 = vset.pattern.permute.xlu0 0
  %4743 = vperm.xlu0 %4742, %v4613
  %v4744 = vpop.permute.xlu0 %4743
  %4747 = vset.pattern.permute.xlu0 0
  %4748 = vperm.xlu0 %4747, %v4614
  %v4749 = vpop.permute.xlu0 %4748
  %4752 = vset.pattern.permute.xlu0 0
  %4753 = vperm.xlu0 %4752, %v4615
  %v4754 = vpop.permute.xlu0 %4753
  %4757 = vset.pattern.permute.xlu0 0
  %4758 = vperm.xlu0 %4757, %v4616
  %v4759 = vpop.permute.xlu0 %4758
  %4762 = vset.pattern.permute.xlu0 0
  %4763 = vperm.xlu0 %4762, %v4617
  %v4764 = vpop.permute.xlu0 %4763
  %4767 = vset.pattern.permute.xlu0 0
  %4768 = vperm.xlu0 %4767, %v4618
  %v4769 = vpop.permute.xlu0 %4768
  %4772 = vset.pattern.permute.xlu0 0
  %4773 = vperm.xlu0 %4772, %v4619
  %v4774 = vpop.permute.xlu0 %4773
  %4777 = vset.pattern.permute.xlu0 0
  %4778 = vperm.xlu0 %4777, %v4620
  %v4779 = vpop.permute.xlu0 %4778
  %v4909 = vunpack.c.l.b16 %v4333
  %v4910 = vunpack.c.h.b16 %v4333
  %v4911 = vunpack.c.l.b16 %v4334
  %v4912 = vunpack.c.h.b16 %v4334
  %v4913 = vunpack.c.l.b16 %v4335
  %v4914 = vunpack.c.h.b16 %v4335
  %v4915 = vunpack.c.l.b16 %v4336
  %v4916 = vunpack.c.h.b16 %v4336
  %v4917 = vunpack.c.l.b16 %v4337
  %v4918 = vunpack.c.h.b16 %v4337
  %v4919 = vunpack.c.l.b16 %v4338
  %v4920 = vunpack.c.h.b16 %v4338
  %v4921 = vunpack.c.l.b16 %v4339
  %v4922 = vunpack.c.h.b16 %v4339
  %v4923 = vunpack.c.l.b16 %v4340
  %v4924 = vunpack.c.h.b16 %v4340
  %v4925 = vunpack.c.l.b16 %v4341
  %v4926 = vunpack.c.h.b16 %v4341
  %v4927 = vunpack.c.l.b16 %v4342
  %v4928 = vunpack.c.h.b16 %v4342
  %v4929 = vunpack.c.l.b16 %v4343
  %v4930 = vunpack.c.h.b16 %v4343
  %v4931 = vunpack.c.l.b16 %v4344
  %v4932 = vunpack.c.h.b16 %v4344
  %v4933 = vunpack.c.l.b16 %v4345
  %v4934 = vunpack.c.h.b16 %v4345
  %v4935 = vunpack.c.l.b16 %v4346
  %v4936 = vunpack.c.h.b16 %v4346
  %v4937 = vunpack.c.l.b16 %v4347
  %v4938 = vunpack.c.h.b16 %v4347
  %v4939 = vunpack.c.l.b16 %v4348
  %v4940 = vunpack.c.h.b16 %v4348
  %v4941 = vunpack.c.l.b16 %v4349
  %v4942 = vunpack.c.h.b16 %v4349
  %v4943 = vunpack.c.l.b16 %v4350
  %v4944 = vunpack.c.h.b16 %v4350
  %v4945 = vunpack.c.l.b16 %v4351
  %v4946 = vunpack.c.h.b16 %v4351
  %v4947 = vunpack.c.l.b16 %v4352
  %v4948 = vunpack.c.h.b16 %v4352
  %v4949 = vunpack.c.l.b16 %v4353
  %v4950 = vunpack.c.h.b16 %v4353
  %v4951 = vunpack.c.l.b16 %v4354
  %v4952 = vunpack.c.h.b16 %v4354
  %v4953 = vunpack.c.l.b16 %v4355
  %v4954 = vunpack.c.h.b16 %v4355
  %v4955 = vunpack.c.l.b16 %v4356
  %v4956 = vunpack.c.h.b16 %v4356
  %v4957 = vunpack.c.l.b16 %v4357
  %v4958 = vunpack.c.h.b16 %v4357
  %v4959 = vunpack.c.l.b16 %v4358
  %v4960 = vunpack.c.h.b16 %v4358
  %v4961 = vunpack.c.l.b16 %v4359
  %v4962 = vunpack.c.h.b16 %v4359
  %v4963 = vunpack.c.l.b16 %v4360
  %v4964 = vunpack.c.h.b16 %v4360
  %v4965 = vunpack.c.l.b16 %v4361
  %v4966 = vunpack.c.h.b16 %v4361
  %v4967 = vunpack.c.l.b16 %v4362
  %v4968 = vunpack.c.h.b16 %v4362
  %v4969 = vunpack.c.l.b16 %v4363
  %v4970 = vunpack.c.h.b16 %v4363
  %v4971 = vunpack.c.l.b16 %v4364
  %v4972 = vunpack.c.h.b16 %v4364
  %v4973 = vunpack.c.l.b16 %v4365
  %v4974 = vunpack.c.h.b16 %v4365
  %v4975 = vunpack.c.l.b16 %v4366
  %v4976 = vunpack.c.h.b16 %v4366
  %v4977 = vunpack.c.l.b16 %v4367
  %v4978 = vunpack.c.h.b16 %v4367
  %v4979 = vunpack.c.l.b16 %v4368
  %v4980 = vunpack.c.h.b16 %v4368
  %v4981 = vunpack.c.l.b16 %v4369
  %v4982 = vunpack.c.h.b16 %v4369
  %v4983 = vunpack.c.l.b16 %v4370
  %v4984 = vunpack.c.h.b16 %v4370
  %v4985 = vunpack.c.l.b16 %v4371
  %v4986 = vunpack.c.h.b16 %v4371
  %v4987 = vunpack.c.l.b16 %v4372
  %v4988 = vunpack.c.h.b16 %v4372
  %v4989 = vunpack.c.l.b16 %v4373
  %v4990 = vunpack.c.h.b16 %v4373
  %v4991 = vunpack.c.l.b16 %v4374
  %v4992 = vunpack.c.h.b16 %v4374
  %v4993 = vunpack.c.l.b16 %v4375
  %v4994 = vunpack.c.h.b16 %v4375
  %v4995 = vunpack.c.l.b16 %v4376
  %v4996 = vunpack.c.h.b16 %v4376
  %v4997 = vunpack.c.l.b16 %v4377
  %v4998 = vunpack.c.h.b16 %v4377
  %v4999 = vunpack.c.l.b16 %v4378
  %v5000 = vunpack.c.h.b16 %v4378
  %v5001 = vunpack.c.l.b16 %v4379
  %v5002 = vunpack.c.h.b16 %v4379
  %v5003 = vunpack.c.l.b16 %v4380
  %v5004 = vunpack.c.h.b16 %v4380
  %v5005 = vunpack.c.l.b16 %v4381
  %v5006 = vunpack.c.h.b16 %v4381
  %v5007 = vunpack.c.l.b16 %v4382
  %v5008 = vunpack.c.h.b16 %v4382
  %v5009 = vunpack.c.l.b16 %v4383
  %v5010 = vunpack.c.h.b16 %v4383
  %v5011 = vunpack.c.l.b16 %v4384
  %v5012 = vunpack.c.h.b16 %v4384
  %v5013 = vunpack.c.l.b16 %v4385
  %v5014 = vunpack.c.h.b16 %v4385
  %v5015 = vunpack.c.l.b16 %v4386
  %v5016 = vunpack.c.h.b16 %v4386
  %v5017 = vunpack.c.l.b16 %v4387
  %v5018 = vunpack.c.h.b16 %v4387
  %v5019 = vunpack.c.l.b16 %v4388
  %v5020 = vunpack.c.h.b16 %v4388
  %v5021 = vunpack.c.l.b16 %v4389
  %v5022 = vunpack.c.h.b16 %v4389
  %v5023 = vunpack.c.l.b16 %v4390
  %v5024 = vunpack.c.h.b16 %v4390
  %v5025 = vunpack.c.l.b16 %v4391
  %v5026 = vunpack.c.h.b16 %v4391
  %v5027 = vunpack.c.l.b16 %v4392
  %v5028 = vunpack.c.h.b16 %v4392
  %v5029 = vunpack.c.l.b16 %v4393
  %v5030 = vunpack.c.h.b16 %v4393
  %v5031 = vunpack.c.l.b16 %v4394
  %v5032 = vunpack.c.h.b16 %v4394
  %v5033 = vunpack.c.l.b16 %v4395
  %v5034 = vunpack.c.h.b16 %v4395
  %v5035 = vunpack.c.l.b16 %v4396
  %v5036 = vunpack.c.h.b16 %v4396
  %v5037 = vunpack.c.l.b16 %v4397
  %v5038 = vunpack.c.h.b16 %v4397
  %v5039 = vunpack.c.l.b16 %v4398
  %v5040 = vunpack.c.h.b16 %v4398
  %v5041 = vunpack.c.l.b16 %v4399
  %v5042 = vunpack.c.h.b16 %v4399
  %v5043 = vunpack.c.l.b16 %v4400
  %v5044 = vunpack.c.h.b16 %v4400
  %v5045 = vunpack.c.l.b16 %v4401
  %v5046 = vunpack.c.h.b16 %v4401
  %v5047 = vunpack.c.l.b16 %v4402
  %v5048 = vunpack.c.h.b16 %v4402
  %v5049 = vunpack.c.l.b16 %v4403
  %v5050 = vunpack.c.h.b16 %v4403
  %v5051 = vunpack.c.l.b16 %v4404
  %v5052 = vunpack.c.h.b16 %v4404
  %v5053 = vunpack.c.l.b16 %v4405
  %v5054 = vunpack.c.h.b16 %v4405
  %v5055 = vunpack.c.l.b16 %v4406
  %v5056 = vunpack.c.h.b16 %v4406
  %v5057 = vunpack.c.l.b16 %v4407
  %v5058 = vunpack.c.h.b16 %v4407
  %v5059 = vunpack.c.l.b16 %v4408
  %v5060 = vunpack.c.h.b16 %v4408
  %v5061 = vunpack.c.l.b16 %v4409
  %v5062 = vunpack.c.h.b16 %v4409
  %v5063 = vunpack.c.l.b16 %v4410
  %v5064 = vunpack.c.h.b16 %v4410
  %v5065 = vunpack.c.l.b16 %v4411
  %v5066 = vunpack.c.h.b16 %v4411
  %v5067 = vunpack.c.l.b16 %v4412
  %v5068 = vunpack.c.h.b16 %v4412
  %v5069 = vunpack.c.l.b16 %v4413
  %v5070 = vunpack.c.h.b16 %v4413
  %v5071 = vunpack.c.l.b16 %v4414
  %v5072 = vunpack.c.h.b16 %v4414
  %v5073 = vunpack.c.l.b16 %v4415
  %v5074 = vunpack.c.h.b16 %v4415
  %v5075 = vunpack.c.l.b16 %v4416
  %v5076 = vunpack.c.h.b16 %v4416
  %v5077 = vunpack.c.l.b16 %v4417
  %v5078 = vunpack.c.h.b16 %v4417
  %v5079 = vunpack.c.l.b16 %v4418
  %v5080 = vunpack.c.h.b16 %v4418
  %v5081 = vunpack.c.l.b16 %v4419
  %v5082 = vunpack.c.h.b16 %v4419
  %v5083 = vunpack.c.l.b16 %v4420
  %v5084 = vunpack.c.h.b16 %v4420
  %v5085 = vunpack.c.l.b16 %v4421
  %v5086 = vunpack.c.h.b16 %v4421
  %v5087 = vunpack.c.l.b16 %v4422
  %v5088 = vunpack.c.h.b16 %v4422
  %v5089 = vunpack.c.l.b16 %v4423
  %v5090 = vunpack.c.h.b16 %v4423
  %v5091 = vunpack.c.l.b16 %v4424
  %v5092 = vunpack.c.h.b16 %v4424
  %v5093 = vunpack.c.l.b16 %v4425
  %v5094 = vunpack.c.h.b16 %v4425
  %v5095 = vunpack.c.l.b16 %v4426
  %v5096 = vunpack.c.h.b16 %v4426
  %v5097 = vunpack.c.l.b16 %v4427
  %v5098 = vunpack.c.h.b16 %v4427
  %v5099 = vunpack.c.l.b16 %v4428
  %v5100 = vunpack.c.h.b16 %v4428
  %v5101 = vunpack.c.l.b16 %v4429
  %v5102 = vunpack.c.h.b16 %v4429
  %v5103 = vunpack.c.l.b16 %v4430
  %v5104 = vunpack.c.h.b16 %v4430
  %v5105 = vunpack.c.l.b16 %v4431
  %v5106 = vunpack.c.h.b16 %v4431
  %v5107 = vunpack.c.l.b16 %v4432
  %v5108 = vunpack.c.h.b16 %v4432
  %v5109 = vunpack.c.l.b16 %v4433
  %v5110 = vunpack.c.h.b16 %v4433
  %v5111 = vunpack.c.l.b16 %v4434
  %v5112 = vunpack.c.h.b16 %v4434
  %v5113 = vunpack.c.l.b16 %v4435
  %v5114 = vunpack.c.h.b16 %v4435
  %v5115 = vunpack.c.l.b16 %v4436
  %v5116 = vunpack.c.h.b16 %v4436
  %v5117 = vunpack.c.l.b16 %v4437
  %v5118 = vunpack.c.h.b16 %v4437
  %v5119 = vunpack.c.l.b16 %v4438
  %v5120 = vunpack.c.h.b16 %v4438
  %v5121 = vunpack.c.l.b16 %v4439
  %v5122 = vunpack.c.h.b16 %v4439
  %v5123 = vunpack.c.l.b16 %v4440
  %v5124 = vunpack.c.h.b16 %v4440
  %v5125 = vunpack.c.l.b16 %v4441
  %v5126 = vunpack.c.h.b16 %v4441
  %v5127 = vunpack.c.l.b16 %v4442
  %v5128 = vunpack.c.h.b16 %v4442
  %v5129 = vunpack.c.l.b16 %v4443
  %v5130 = vunpack.c.h.b16 %v4443
  %v5131 = vunpack.c.l.b16 %v4444
  %v5132 = vunpack.c.h.b16 %v4444
  %v5133 = vunpack.c.l.b16 %v4445
  %v5134 = vunpack.c.h.b16 %v4445
  %v5135 = vunpack.c.l.b16 %v4446
  %v5136 = vunpack.c.h.b16 %v4446
  %v5137 = vunpack.c.l.b16 %v4447
  %v5138 = vunpack.c.h.b16 %v4447
  %v5139 = vunpack.c.l.b16 %v4448
  %v5140 = vunpack.c.h.b16 %v4448
  %v5141 = vunpack.c.l.b16 %v4449
  %v5142 = vunpack.c.h.b16 %v4449
  %v5143 = vunpack.c.l.b16 %v4450
  %v5144 = vunpack.c.h.b16 %v4450
  %v5145 = vunpack.c.l.b16 %v4451
  %v5146 = vunpack.c.h.b16 %v4451
  %v5147 = vunpack.c.l.b16 %v4452
  %v5148 = vunpack.c.h.b16 %v4452
  %v5149 = vunpack.c.l.b16 %v4453
  %v5150 = vunpack.c.h.b16 %v4453
  %v5151 = vunpack.c.l.b16 %v4454
  %v5152 = vunpack.c.h.b16 %v4454
  %v5153 = vunpack.c.l.b16 %v4455
  %v5154 = vunpack.c.h.b16 %v4455
  %v5155 = vunpack.c.l.b16 %v4456
  %v5156 = vunpack.c.h.b16 %v4456
  %v5157 = vunpack.c.l.b16 %v4457
  %v5158 = vunpack.c.h.b16 %v4457
  %v5159 = vunpack.c.l.b16 %v4458
  %v5160 = vunpack.c.h.b16 %v4458
  %v5161 = vunpack.c.l.b16 %v4459
  %v5162 = vunpack.c.h.b16 %v4459
  %v5163 = vunpack.c.l.b16 %v4460
  %v5164 = vunpack.c.h.b16 %v4460
  %v5165 = vpack.c.b16 %v4917, %v4909
  %v5166 = vpack.c.b16 %v4918, %v4910
  %v5167 = vpack.c.b16 %v4919, %v4911
  %v5168 = vpack.c.b16 %v4920, %v4912
  %v5169 = vpack.c.b16 %v4921, %v4913
  %v5170 = vpack.c.b16 %v4922, %v4914
  %v5171 = vpack.c.b16 %v4923, %v4915
  %v5172 = vpack.c.b16 %v4924, %v4916
  %v5173 = vpack.c.b16 %v4933, %v4925
  %v5174 = vpack.c.b16 %v4934, %v4926
  %v5175 = vpack.c.b16 %v4935, %v4927
  %v5176 = vpack.c.b16 %v4936, %v4928
  %v5177 = vpack.c.b16 %v4937, %v4929
  %v5178 = vpack.c.b16 %v4938, %v4930
  %v5179 = vpack.c.b16 %v4939, %v4931
  %v5180 = vpack.c.b16 %v4940, %v4932
  %v5181 = vpack.c.b16 %v4949, %v4941
  %v5182 = vpack.c.b16 %v4950, %v4942
  %v5183 = vpack.c.b16 %v4951, %v4943
  %v5184 = vpack.c.b16 %v4952, %v4944
  %v5185 = vpack.c.b16 %v4953, %v4945
  %v5186 = vpack.c.b16 %v4954, %v4946
  %v5187 = vpack.c.b16 %v4955, %v4947
  %v5188 = vpack.c.b16 %v4956, %v4948
  %v5189 = vpack.c.b16 %v4965, %v4957
  %v5190 = vpack.c.b16 %v4966, %v4958
  %v5191 = vpack.c.b16 %v4967, %v4959
  %v5192 = vpack.c.b16 %v4968, %v4960
  %v5193 = vpack.c.b16 %v4969, %v4961
  %v5194 = vpack.c.b16 %v4970, %v4962
  %v5195 = vpack.c.b16 %v4971, %v4963
  %v5196 = vpack.c.b16 %v4972, %v4964
  %v5197 = vpack.c.b16 %v4981, %v4973
  %v5198 = vpack.c.b16 %v4982, %v4974
  %v5199 = vpack.c.b16 %v4983, %v4975
  %v5200 = vpack.c.b16 %v4984, %v4976
  %v5201 = vpack.c.b16 %v4985, %v4977
  %v5202 = vpack.c.b16 %v4986, %v4978
  %v5203 = vpack.c.b16 %v4987, %v4979
  %v5204 = vpack.c.b16 %v4988, %v4980
  %v5205 = vpack.c.b16 %v4997, %v4989
  %v5206 = vpack.c.b16 %v4998, %v4990
  %v5207 = vpack.c.b16 %v4999, %v4991
  %v5208 = vpack.c.b16 %v5000, %v4992
  %v5209 = vpack.c.b16 %v5001, %v4993
  %v5210 = vpack.c.b16 %v5002, %v4994
  %v5211 = vpack.c.b16 %v5003, %v4995
  %v5212 = vpack.c.b16 %v5004, %v4996
  %v5213 = vpack.c.b16 %v5013, %v5005
  %v5214 = vpack.c.b16 %v5014, %v5006
  %v5215 = vpack.c.b16 %v5015, %v5007
  %v5216 = vpack.c.b16 %v5016, %v5008
  %v5217 = vpack.c.b16 %v5017, %v5009
  %v5218 = vpack.c.b16 %v5018, %v5010
  %v5219 = vpack.c.b16 %v5019, %v5011
  %v5220 = vpack.c.b16 %v5020, %v5012
  %v5221 = vpack.c.b16 %v5029, %v5021
  %v5222 = vpack.c.b16 %v5030, %v5022
  %v5223 = vpack.c.b16 %v5031, %v5023
  %v5224 = vpack.c.b16 %v5032, %v5024
  %v5225 = vpack.c.b16 %v5033, %v5025
  %v5226 = vpack.c.b16 %v5034, %v5026
  %v5227 = vpack.c.b16 %v5035, %v5027
  %v5228 = vpack.c.b16 %v5036, %v5028
  %v5229 = vpack.c.b16 %v5045, %v5037
  %v5230 = vpack.c.b16 %v5046, %v5038
  %v5231 = vpack.c.b16 %v5047, %v5039
  %v5232 = vpack.c.b16 %v5048, %v5040
  %v5233 = vpack.c.b16 %v5049, %v5041
  %v5234 = vpack.c.b16 %v5050, %v5042
  %v5235 = vpack.c.b16 %v5051, %v5043
  %v5236 = vpack.c.b16 %v5052, %v5044
  %v5237 = vpack.c.b16 %v5061, %v5053
  %v5238 = vpack.c.b16 %v5062, %v5054
  %v5239 = vpack.c.b16 %v5063, %v5055
  %v5240 = vpack.c.b16 %v5064, %v5056
  %v5241 = vpack.c.b16 %v5065, %v5057
  %v5242 = vpack.c.b16 %v5066, %v5058
  %v5243 = vpack.c.b16 %v5067, %v5059
  %v5244 = vpack.c.b16 %v5068, %v5060
  %v5245 = vpack.c.b16 %v5077, %v5069
  %v5246 = vpack.c.b16 %v5078, %v5070
  %v5247 = vpack.c.b16 %v5079, %v5071
  %v5248 = vpack.c.b16 %v5080, %v5072
  %v5249 = vpack.c.b16 %v5081, %v5073
  %v5250 = vpack.c.b16 %v5082, %v5074
  %v5251 = vpack.c.b16 %v5083, %v5075
  %v5252 = vpack.c.b16 %v5084, %v5076
  %v5253 = vpack.c.b16 %v5093, %v5085
  %v5254 = vpack.c.b16 %v5094, %v5086
  %v5255 = vpack.c.b16 %v5095, %v5087
  %v5256 = vpack.c.b16 %v5096, %v5088
  %v5257 = vpack.c.b16 %v5097, %v5089
  %v5258 = vpack.c.b16 %v5098, %v5090
  %v5259 = vpack.c.b16 %v5099, %v5091
  %v5260 = vpack.c.b16 %v5100, %v5092
  %v5261 = vpack.c.b16 %v5109, %v5101
  %v5262 = vpack.c.b16 %v5110, %v5102
  %v5263 = vpack.c.b16 %v5111, %v5103
  %v5264 = vpack.c.b16 %v5112, %v5104
  %v5265 = vpack.c.b16 %v5113, %v5105
  %v5266 = vpack.c.b16 %v5114, %v5106
  %v5267 = vpack.c.b16 %v5115, %v5107
  %v5268 = vpack.c.b16 %v5116, %v5108
  %v5269 = vpack.c.b16 %v5125, %v5117
  %v5270 = vpack.c.b16 %v5126, %v5118
  %v5271 = vpack.c.b16 %v5127, %v5119
  %v5272 = vpack.c.b16 %v5128, %v5120
  %v5273 = vpack.c.b16 %v5129, %v5121
  %v5274 = vpack.c.b16 %v5130, %v5122
  %v5275 = vpack.c.b16 %v5131, %v5123
  %v5276 = vpack.c.b16 %v5132, %v5124
  %v5277 = vpack.c.b16 %v5141, %v5133
  %v5278 = vpack.c.b16 %v5142, %v5134
  %v5279 = vpack.c.b16 %v5143, %v5135
  %v5280 = vpack.c.b16 %v5144, %v5136
  %v5281 = vpack.c.b16 %v5145, %v5137
  %v5282 = vpack.c.b16 %v5146, %v5138
  %v5283 = vpack.c.b16 %v5147, %v5139
  %v5284 = vpack.c.b16 %v5148, %v5140
  %v5285 = vpack.c.b16 %v5157, %v5149
  %v5286 = vpack.c.b16 %v5158, %v5150
  %v5287 = vpack.c.b16 %v5159, %v5151
  %v5288 = vpack.c.b16 %v5160, %v5152
  %v5289 = vpack.c.b16 %v5161, %v5153
  %v5290 = vpack.c.b16 %v5162, %v5154
  %v5291 = vpack.c.b16 %v5163, %v5155
  %v5292 = vpack.c.b16 %v5164, %v5156
  %v5549 = vunpack.c.l.b16 %v4461
  %v5550 = vunpack.c.l.b16 %v4462
  %v5551 = vunpack.c.l.b16 %v4463
  %v5552 = vunpack.c.l.b16 %v4464
  %v5553 = vunpack.c.l.b16 %v4465
  %v5554 = vunpack.c.l.b16 %v4466
  %v5555 = vunpack.c.l.b16 %v4467
  %v5556 = vunpack.c.l.b16 %v4468
  %v5557 = vunpack.c.l.b16 %v4469
  %v5558 = vunpack.c.l.b16 %v4470
  %v5559 = vunpack.c.l.b16 %v4471
  %v5560 = vunpack.c.l.b16 %v4472
  %v5561 = vunpack.c.l.b16 %v4473
  %v5562 = vunpack.c.l.b16 %v4474
  %v5563 = vunpack.c.l.b16 %v4475
  %v5564 = vunpack.c.l.b16 %v4476
  %v5565 = vunpack.c.l.b16 %v4477
  %v5566 = vunpack.c.l.b16 %v4478
  %v5567 = vunpack.c.l.b16 %v4479
  %v5568 = vunpack.c.l.b16 %v4480
  %v5569 = vunpack.c.l.b16 %v4481
  %v5570 = vunpack.c.l.b16 %v4482
  %v5571 = vunpack.c.l.b16 %v4483
  %v5572 = vunpack.c.l.b16 %v4484
  %v5573 = vunpack.c.l.b16 %v4485
  %v5574 = vunpack.c.l.b16 %v4486
  %v5575 = vunpack.c.l.b16 %v4487
  %v5576 = vunpack.c.l.b16 %v4488
  %v5577 = vunpack.c.l.b16 %v4489
  %v5578 = vunpack.c.l.b16 %v4490
  %v5579 = vunpack.c.l.b16 %v4491
  %v5580 = vunpack.c.l.b16 %v4492
  %v5581 = vunpack.c.l.b16 %v4493
  %v5582 = vunpack.c.l.b16 %v4494
  %v5583 = vunpack.c.l.b16 %v4495
  %v5584 = vunpack.c.l.b16 %v4496
  %v5585 = vunpack.c.l.b16 %v4497
  %v5586 = vunpack.c.l.b16 %v4498
  %v5587 = vunpack.c.l.b16 %v4499
  %v5588 = vunpack.c.l.b16 %v4500
  %v5589 = vunpack.c.l.b16 %v4501
  %v5590 = vunpack.c.l.b16 %v4502
  %v5591 = vunpack.c.l.b16 %v4503
  %v5592 = vunpack.c.l.b16 %v4504
  %v5593 = vunpack.c.l.b16 %v4505
  %v5594 = vunpack.c.l.b16 %v4506
  %v5595 = vunpack.c.l.b16 %v4507
  %v5596 = vunpack.c.l.b16 %v4508
  %v5597 = vunpack.c.l.b16 %v4509
  %v5598 = vunpack.c.l.b16 %v4510
  %v5599 = vunpack.c.l.b16 %v4511
  %v5600 = vunpack.c.l.b16 %v4512
  %v5601 = vunpack.c.l.b16 %v4513
  %v5602 = vunpack.c.l.b16 %v4514
  %v5603 = vunpack.c.l.b16 %v4515
  %v5604 = vunpack.c.l.b16 %v4516
  %v5605 = vunpack.c.l.b16 %v4517
  %v5606 = vunpack.c.l.b16 %v4518
  %v5607 = vunpack.c.l.b16 %v4519
  %v5608 = vunpack.c.l.b16 %v4520
  %v5609 = vunpack.c.l.b16 %v4521
  %v5610 = vunpack.c.l.b16 %v4522
  %v5611 = vunpack.c.l.b16 %v4523
  %v5612 = vunpack.c.l.b16 %v4524
  %v5613 = vunpack.c.l.b16 %v4525
  %v5614 = vunpack.c.l.b16 %v4526
  %v5615 = vunpack.c.l.b16 %v4527
  %v5616 = vunpack.c.l.b16 %v4528
  %v5617 = vunpack.c.l.b16 %v4529
  %v5618 = vunpack.c.l.b16 %v4530
  %v5619 = vunpack.c.l.b16 %v4531
  %v5620 = vunpack.c.l.b16 %v4532
  %v5621 = vunpack.c.l.b16 %v4533
  %v5622 = vunpack.c.l.b16 %v4534
  %v5623 = vunpack.c.l.b16 %v4535
  %v5624 = vunpack.c.l.b16 %v4536
  %v5625 = vunpack.c.l.b16 %v4537
  %v5626 = vunpack.c.l.b16 %v4538
  %v5627 = vunpack.c.l.b16 %v4539
  %v5628 = vunpack.c.l.b16 %v4540
  %v5629 = vunpack.c.l.b16 %v4541
  %v5630 = vunpack.c.l.b16 %v4542
  %v5631 = vunpack.c.l.b16 %v4543
  %v5632 = vunpack.c.l.b16 %v4544
  %v5633 = vunpack.c.l.b16 %v4545
  %v5634 = vunpack.c.l.b16 %v4546
  %v5635 = vunpack.c.l.b16 %v4547
  %v5636 = vunpack.c.l.b16 %v4548
  %v5637 = vunpack.c.l.b16 %v4549
  %v5638 = vunpack.c.l.b16 %v4550
  %v5639 = vunpack.c.l.b16 %v4551
  %v5640 = vunpack.c.l.b16 %v4552
  %v5641 = vunpack.c.l.b16 %v4553
  %v5642 = vunpack.c.l.b16 %v4554
  %v5643 = vunpack.c.l.b16 %v4555
  %v5644 = vunpack.c.l.b16 %v4556
  %v5645 = vunpack.c.l.b16 %v4557
  %v5646 = vunpack.c.l.b16 %v4558
  %v5647 = vunpack.c.l.b16 %v4559
  %v5648 = vunpack.c.l.b16 %v4560
  %v5649 = vunpack.c.l.b16 %v4561
  %v5650 = vunpack.c.l.b16 %v4562
  %v5651 = vunpack.c.l.b16 %v4563
  %v5652 = vunpack.c.l.b16 %v4564
  %v5653 = vunpack.c.l.b16 %v4565
  %v5654 = vunpack.c.l.b16 %v4566
  %v5655 = vunpack.c.l.b16 %v4567
  %v5656 = vunpack.c.l.b16 %v4568
  %v5657 = vunpack.c.l.b16 %v4569
  %v5658 = vunpack.c.l.b16 %v4570
  %v5659 = vunpack.c.l.b16 %v4571
  %v5660 = vunpack.c.l.b16 %v4572
  %v5661 = vunpack.c.l.b16 %v4573
  %v5662 = vunpack.c.l.b16 %v4574
  %v5663 = vunpack.c.l.b16 %v4575
  %v5664 = vunpack.c.l.b16 %v4576
  %v5665 = vunpack.c.l.b16 %v4577
  %v5666 = vunpack.c.l.b16 %v4578
  %v5667 = vunpack.c.l.b16 %v4579
  %v5668 = vunpack.c.l.b16 %v4580
  %v5669 = vunpack.c.l.b16 %v4581
  %v5670 = vunpack.c.l.b16 %v4582
  %v5671 = vunpack.c.l.b16 %v4583
  %v5672 = vunpack.c.l.b16 %v4584
  %v5673 = vunpack.c.l.b16 %v4585
  %v5674 = vunpack.c.l.b16 %v4586
  %v5675 = vunpack.c.l.b16 %v4587
  %v5676 = vunpack.c.l.b16 %v4588
  %v5677 = vpack.c.b16 %v5550, %v5549
  %v5678 = vpack.c.b16 %v5552, %v5551
  %v5679 = vpack.c.b16 %v5554, %v5553
  %v5680 = vpack.c.b16 %v5556, %v5555
  %v5681 = vpack.c.b16 %v5558, %v5557
  %v5682 = vpack.c.b16 %v5560, %v5559
  %v5683 = vpack.c.b16 %v5562, %v5561
  %v5684 = vpack.c.b16 %v5564, %v5563
  %v5685 = vpack.c.b16 %v5566, %v5565
  %v5686 = vpack.c.b16 %v5568, %v5567
  %v5687 = vpack.c.b16 %v5570, %v5569
  %v5688 = vpack.c.b16 %v5572, %v5571
  %v5689 = vpack.c.b16 %v5574, %v5573
  %v5690 = vpack.c.b16 %v5576, %v5575
  %v5691 = vpack.c.b16 %v5578, %v5577
  %v5692 = vpack.c.b16 %v5580, %v5579
  %v5693 = vpack.c.b16 %v5582, %v5581
  %v5694 = vpack.c.b16 %v5584, %v5583
  %v5695 = vpack.c.b16 %v5586, %v5585
  %v5696 = vpack.c.b16 %v5588, %v5587
  %v5697 = vpack.c.b16 %v5590, %v5589
  %v5698 = vpack.c.b16 %v5592, %v5591
  %v5699 = vpack.c.b16 %v5594, %v5593
  %v5700 = vpack.c.b16 %v5596, %v5595
  %v5701 = vpack.c.b16 %v5598, %v5597
  %v5702 = vpack.c.b16 %v5600, %v5599
  %v5703 = vpack.c.b16 %v5602, %v5601
  %v5704 = vpack.c.b16 %v5604, %v5603
  %v5705 = vpack.c.b16 %v5606, %v5605
  %v5706 = vpack.c.b16 %v5608, %v5607
  %v5707 = vpack.c.b16 %v5610, %v5609
  %v5708 = vpack.c.b16 %v5612, %v5611
  %v5709 = vpack.c.b16 %v5614, %v5613
  %v5710 = vpack.c.b16 %v5616, %v5615
  %v5711 = vpack.c.b16 %v5618, %v5617
  %v5712 = vpack.c.b16 %v5620, %v5619
  %v5713 = vpack.c.b16 %v5622, %v5621
  %v5714 = vpack.c.b16 %v5624, %v5623
  %v5715 = vpack.c.b16 %v5626, %v5625
  %v5716 = vpack.c.b16 %v5628, %v5627
  %v5717 = vpack.c.b16 %v5630, %v5629
  %v5718 = vpack.c.b16 %v5632, %v5631
  %v5719 = vpack.c.b16 %v5634, %v5633
  %v5720 = vpack.c.b16 %v5636, %v5635
  %v5721 = vpack.c.b16 %v5638, %v5637
  %v5722 = vpack.c.b16 %v5640, %v5639
  %v5723 = vpack.c.b16 %v5642, %v5641
  %v5724 = vpack.c.b16 %v5644, %v5643
  %v5725 = vpack.c.b16 %v5646, %v5645
  %v5726 = vpack.c.b16 %v5648, %v5647
  %v5727 = vpack.c.b16 %v5650, %v5649
  %v5728 = vpack.c.b16 %v5652, %v5651
  %v5729 = vpack.c.b16 %v5654, %v5653
  %v5730 = vpack.c.b16 %v5656, %v5655
  %v5731 = vpack.c.b16 %v5658, %v5657
  %v5732 = vpack.c.b16 %v5660, %v5659
  %v5733 = vpack.c.b16 %v5662, %v5661
  %v5734 = vpack.c.b16 %v5664, %v5663
  %v5735 = vpack.c.b16 %v5666, %v5665
  %v5736 = vpack.c.b16 %v5668, %v5667
  %v5737 = vpack.c.b16 %v5670, %v5669
  %v5738 = vpack.c.b16 %v5672, %v5671
  %v5739 = vpack.c.b16 %v5674, %v5673
  %v5740 = vpack.c.b16 %v5676, %v5675
  %5805 = vmatprep.subr.bf16.mxu0 0
  %5806 = vmatpush1.bf16.msra.mxu0 %v5677
  %5807 = vmatprep.subr.bf16.mxu0 0
  %5808 = vmatpush1.bf16.msra.mxu0 %v5678
  %5809 = vmatprep.subr.bf16.mxu0 0
  %5810 = vmatpush1.bf16.msra.mxu0 %v5679
  %5811 = vmatprep.subr.bf16.mxu0 0
  %5812 = vmatpush1.bf16.msra.mxu0 %v5680
  %5813 = vmatprep.subr.bf16.mxu0 0
  %5814 = vmatpush1.bf16.msra.mxu0 %v5681
  %5815 = vmatprep.subr.bf16.mxu0 0
  %5816 = vmatpush1.bf16.msra.mxu0 %v5682
  %5817 = vmatprep.subr.bf16.mxu0 0
  %5818 = vmatpush1.bf16.msra.mxu0 %v5683
  %5819 = vmatprep.subr.bf16.mxu0 0
  %5820 = vmatpush1.bf16.msra.mxu0 %v5684
  %5821 = vmatprep.subr.bf16.mxu0 0
  %5822 = vmatpush1.bf16.msra.mxu0 %v5685
  %5823 = vmatprep.subr.bf16.mxu0 0
  %5824 = vmatpush1.bf16.msra.mxu0 %v5686
  %5825 = vmatprep.subr.bf16.mxu0 0
  %5826 = vmatpush1.bf16.msra.mxu0 %v5687
  %5827 = vmatprep.subr.bf16.mxu0 0
  %5828 = vmatpush1.bf16.msra.mxu0 %v5688
  %5829 = vmatprep.subr.bf16.mxu0 0
  %5830 = vmatpush1.bf16.msra.mxu0 %v5689
  %5831 = vmatprep.subr.bf16.mxu0 0
  %5832 = vmatpush1.bf16.msra.mxu0 %v5690
  %5833 = vmatprep.subr.bf16.mxu0 0
  %5834 = vmatpush1.bf16.msra.mxu0 %v5691
  %5835 = vmatprep.subr.bf16.mxu0 0
  %5836 = vmatpush1.bf16.msra.mxu0 %v5692
  %5837 = vmatprep.mubr.bf16.mxu0 %v5166
  %5838 = vmatmul.mubr.bf16.gmra.mrb[0].mxu0 %v5165
  %v5839 = vpop.f32.mrb[0].mxu0
  %v5840 = vadd.f32 %v4624, %v5839
  %v5841 = vpop.f32.mrb[0].mxu0
  %v5842 = vpop.f32.mrb[0].mxu0
  %v5843 = vadd.f32 %v4629, %v5842
  %v5844 = vpop.f32.mrb[0].mxu0
  %5845 = vmatprep.mubr.bf16.mxu0 %v5174
  %5846 = vmatmul.mubr.bf16.gmra.mrb[0].mxu0 %v5173
  %v5847 = vpop.f32.mrb[0].mxu0
  %v5848 = vadd.f32 %v4634, %v5847
  %v5849 = vpop.f32.mrb[0].mxu0
  %v5850 = vpop.f32.mrb[0].mxu0
  %v5851 = vadd.f32 %v4639, %v5850
  %v5852 = vpop.f32.mrb[0].mxu0
  %5853 = vmatprep.mubr.bf16.mxu0 %v5182
  %5854 = vmatmul.mubr.bf16.gmra.mrb[0].mxu0 %v5181
  %v5855 = vpop.f32.mrb[0].mxu0
  %v5856 = vadd.f32 %v4644, %v5855
  %v5857 = vpop.f32.mrb[0].mxu0
  %v5858 = vpop.f32.mrb[0].mxu0
  %v5859 = vadd.f32 %v4649, %v5858
  %v5860 = vpop.f32.mrb[0].mxu0
  %5861 = vmatprep.mubr.bf16.mxu0 %v5190
  %5862 = vmatmul.mubr.bf16.gmra.mrb[0].mxu0 %v5189
  %v5863 = vpop.f32.mrb[0].mxu0
  %v5864 = vadd.f32 %v4654, %v5863
  %v5865 = vpop.f32.mrb[0].mxu0
  %v5866 = vpop.f32.mrb[0].mxu0
  %v5867 = vadd.f32 %v4659, %v5866
  %v5868 = vpop.f32.mrb[0].mxu0
  %5869 = vmatprep.mubr.bf16.mxu0 %v5198
  %5870 = vmatmul.mubr.bf16.gmra.mrb[0].mxu0 %v5197
  %v5871 = vpop.f32.mrb[0].mxu0
  %v5872 = vadd.f32 %v4664, %v5871
  %v5873 = vpop.f32.mrb[0].mxu0
  %v5874 = vpop.f32.mrb[0].mxu0
  %v5875 = vadd.f32 %v4669, %v5874
  %v5876 = vpop.f32.mrb[0].mxu0
  %5877 = vmatprep.mubr.bf16.mxu0 %v5206
  %5878 = vmatmul.mubr.bf16.gmra.mrb[0].mxu0 %v5205
  %v5879 = vpop.f32.mrb[0].mxu0
  %v5880 = vadd.f32 %v4674, %v5879
  %v5881 = vpop.f32.mrb[0].mxu0
  %v5882 = vpop.f32.mrb[0].mxu0
  %v5883 = vadd.f32 %v4679, %v5882
  %v5884 = vpop.f32.mrb[0].mxu0
  %5885 = vmatprep.mubr.bf16.mxu0 %v5214
  %5886 = vmatmul.mubr.bf16.gmra.mrb[0].mxu0 %v5213
  %v5887 = vpop.f32.mrb[0].mxu0
  %v5888 = vadd.f32 %v4684, %v5887
  %v5889 = vpop.f32.mrb[0].mxu0
  %v5890 = vpop.f32.mrb[0].mxu0
  %v5891 = vadd.f32 %v4689, %v5890
  %v5892 = vpop.f32.mrb[0].mxu0
  %5893 = vmatprep.mubr.bf16.mxu0 %v5222
  %5894 = vmatmul.mubr.bf16.gmra.mrb[0].mxu0 %v5221
  %v5895 = vpop.f32.mrb[0].mxu0
  %v5896 = vadd.f32 %v4694, %v5895
  %v5897 = vpop.f32.mrb[0].mxu0
  %v5898 = vpop.f32.mrb[0].mxu0
  %v5899 = vadd.f32 %v4699, %v5898
  %v5900 = vpop.f32.mrb[0].mxu0
  %5901 = vmatprep.mubr.bf16.mxu0 %v5230
  %5902 = vmatmul.mubr.bf16.gmra.mrb[0].mxu0 %v5229
  %v5903 = vpop.f32.mrb[0].mxu0
  %v5904 = vadd.f32 %v4704, %v5903
  %v5905 = vpop.f32.mrb[0].mxu0
  %v5906 = vpop.f32.mrb[0].mxu0
  %v5907 = vadd.f32 %v4709, %v5906
  %v5908 = vpop.f32.mrb[0].mxu0
  %5909 = vmatprep.mubr.bf16.mxu0 %v5238
  %5910 = vmatmul.mubr.bf16.gmra.mrb[0].mxu0 %v5237
  %v5911 = vpop.f32.mrb[0].mxu0
  %v5912 = vadd.f32 %v4714, %v5911
  %v5913 = vpop.f32.mrb[0].mxu0
  %v5914 = vpop.f32.mrb[0].mxu0
  %v5915 = vadd.f32 %v4719, %v5914
  %v5916 = vpop.f32.mrb[0].mxu0
  %5917 = vmatprep.mubr.bf16.mxu0 %v5246
  %5918 = vmatmul.mubr.bf16.gmra.mrb[0].mxu0 %v5245
  %v5919 = vpop.f32.mrb[0].mxu0
  %v5920 = vadd.f32 %v4724, %v5919
  %v5921 = vpop.f32.mrb[0].mxu0
  %v5922 = vpop.f32.mrb[0].mxu0
  %v5923 = vadd.f32 %v4729, %v5922
  %v5924 = vpop.f32.mrb[0].mxu0
  %5925 = vmatprep.mubr.bf16.mxu0 %v5254
  %5926 = vmatmul.mubr.bf16.gmra.mrb[0].mxu0 %v5253
  %v5927 = vpop.f32.mrb[0].mxu0
  %v5928 = vadd.f32 %v4734, %v5927
  %v5929 = vpop.f32.mrb[0].mxu0
  %v5930 = vpop.f32.mrb[0].mxu0
  %v5931 = vadd.f32 %v4739, %v5930
  %v5932 = vpop.f32.mrb[0].mxu0
  %5933 = vmatprep.mubr.bf16.mxu0 %v5262
  %5934 = vmatmul.mubr.bf16.gmra.mrb[0].mxu0 %v5261
  %v5935 = vpop.f32.mrb[0].mxu0
  %v5936 = vadd.f32 %v4744, %v5935
  %v5937 = vpop.f32.mrb[0].mxu0
  %v5938 = vpop.f32.mrb[0].mxu0
  %v5939 = vadd.f32 %v4749, %v5938
  %v5940 = vpop.f32.mrb[0].mxu0
  %5941 = vmatprep.mubr.bf16.mxu0 %v5270
  %5942 = vmatmul.mubr.bf16.gmra.mrb[0].mxu0 %v5269
  %v5943 = vpop.f32.mrb[0].mxu0
  %v5944 = vadd.f32 %v4754, %v5943
  %v5945 = vpop.f32.mrb[0].mxu0
  %v5946 = vpop.f32.mrb[0].mxu0
  %v5947 = vadd.f32 %v4759, %v5946
  %v5948 = vpop.f32.mrb[0].mxu0
  %5949 = vmatprep.mubr.bf16.mxu0 %v5278
  %5950 = vmatmul.mubr.bf16.gmra.mrb[0].mxu0 %v5277
  %v5951 = vpop.f32.mrb[0].mxu0
  %v5952 = vadd.f32 %v4764, %v5951
  %v5953 = vpop.f32.mrb[0].mxu0
  %v5954 = vpop.f32.mrb[0].mxu0
  %v5955 = vadd.f32 %v4769, %v5954
  %v5956 = vpop.f32.mrb[0].mxu0
  %5957 = vmatprep.mubr.bf16.mxu0 %v5286
  %5958 = vmatmul.mubr.bf16.gmra.mrb[0].mxu0 %v5285
  %v5959 = vpop.f32.mrb[0].mxu0
  %v5960 = vadd.f32 %v4774, %v5959
  %v5961 = vpop.f32.mrb[0].mxu0
  %v5962 = vpop.f32.mrb[0].mxu0
  %v5963 = vadd.f32 %v4779, %v5962
  %v5964 = vpop.f32.mrb[0].mxu0
  %5965 = vdwg.mxu0
  %5966 = vmatprep.subr.bf16.mxu0 0
  %5967 = vmatpush1.bf16.msra.mxu0 %v5693
  %5968 = vmatprep.subr.bf16.mxu0 0
  %5969 = vmatpush1.bf16.msra.mxu0 %v5694
  %5970 = vmatprep.subr.bf16.mxu0 0
  %5971 = vmatpush1.bf16.msra.mxu0 %v5695
  %5972 = vmatprep.subr.bf16.mxu0 0
  %5973 = vmatpush1.bf16.msra.mxu0 %v5696
  %5974 = vmatprep.subr.bf16.mxu0 0
  %5975 = vmatpush1.bf16.msra.mxu0 %v5697
  %5976 = vmatprep.subr.bf16.mxu0 0
  %5977 = vmatpush1.bf16.msra.mxu0 %v5698
  %5978 = vmatprep.subr.bf16.mxu0 0
  %5979 = vmatpush1.bf16.msra.mxu0 %v5699
  %5980 = vmatprep.subr.bf16.mxu0 0
  %5981 = vmatpush1.bf16.msra.mxu0 %v5700
  %5982 = vmatprep.subr.bf16.mxu0 0
  %5983 = vmatpush1.bf16.msra.mxu0 %v5701
  %5984 = vmatprep.subr.bf16.mxu0 0
  %5985 = vmatpush1.bf16.msra.mxu0 %v5702
  %5986 = vmatprep.subr.bf16.mxu0 0
  %5987 = vmatpush1.bf16.msra.mxu0 %v5703
  %5988 = vmatprep.subr.bf16.mxu0 0
  %5989 = vmatpush1.bf16.msra.mxu0 %v5704
  %5990 = vmatprep.subr.bf16.mxu0 0
  %5991 = vmatpush1.bf16.msra.mxu0 %v5705
  %5992 = vmatprep.subr.bf16.mxu0 0
  %5993 = vmatpush1.bf16.msra.mxu0 %v5706
  %5994 = vmatprep.subr.bf16.mxu0 0
  %5995 = vmatpush1.bf16.msra.mxu0 %v5707
  %5996 = vmatprep.subr.bf16.mxu0 0
  %5997 = vmatpush1.bf16.msra.mxu0 %v5708
  %5998 = vmatprep.mubr.bf16.mxu0 %v5168
  %5999 = vmatmul.mubr.bf16.gmra.mrb[0].mxu0 %v5167
  %v6000 = vpop.f32.mrb[0].mxu0
  %v6001 = vadd.f32 %v5840, %v6000
  %v6002 = vpop.f32.mrb[0].mxu0
  %v6003 = vpop.f32.mrb[0].mxu0
  %v6004 = vadd.f32 %v5843, %v6003
  %v6005 = vpop.f32.mrb[0].mxu0
  %6006 = vmatprep.mubr.bf16.mxu0 %v5176
  %6007 = vmatmul.mubr.bf16.gmra.mrb[0].mxu0 %v5175
  %v6008 = vpop.f32.mrb[0].mxu0
  %v6009 = vadd.f32 %v5848, %v6008
  %v6010 = vpop.f32.mrb[0].mxu0
  %v6011 = vpop.f32.mrb[0].mxu0
  %v6012 = vadd.f32 %v5851, %v6011
  %v6013 = vpop.f32.mrb[0].mxu0
  %6014 = vmatprep.mubr.bf16.mxu0 %v5184
  %6015 = vmatmul.mubr.bf16.gmra.mrb[0].mxu0 %v5183
  %v6016 = vpop.f32.mrb[0].mxu0
  %v6017 = vadd.f32 %v5856, %v6016
  %v6018 = vpop.f32.mrb[0].mxu0
  %v6019 = vpop.f32.mrb[0].mxu0
  %v6020 = vadd.f32 %v5859, %v6019
  %v6021 = vpop.f32.mrb[0].mxu0
  %6022 = vmatprep.mubr.bf16.mxu0 %v5192
  %6023 = vmatmul.mubr.bf16.gmra.mrb[0].mxu0 %v5191
  %v6024 = vpop.f32.mrb[0].mxu0
  %v6025 = vadd.f32 %v5864, %v6024
  %v6026 = vpop.f32.mrb[0].mxu0
  %v6027 = vpop.f32.mrb[0].mxu0
  %v6028 = vadd.f32 %v5867, %v6027
  %v6029 = vpop.f32.mrb[0].mxu0
  %6030 = vmatprep.mubr.bf16.mxu0 %v5200
  %6031 = vmatmul.mubr.bf16.gmra.mrb[0].mxu0 %v5199
  %v6032 = vpop.f32.mrb[0].mxu0
  %v6033 = vadd.f32 %v5872, %v6032
  %v6034 = vpop.f32.mrb[0].mxu0
  %v6035 = vpop.f32.mrb[0].mxu0
  %v6036 = vadd.f32 %v5875, %v6035
  %v6037 = vpop.f32.mrb[0].mxu0
  %6038 = vmatprep.mubr.bf16.mxu0 %v5208
  %6039 = vmatmul.mubr.bf16.gmra.mrb[0].mxu0 %v5207
  %v6040 = vpop.f32.mrb[0].mxu0
  %v6041 = vadd.f32 %v5880, %v6040
  %v6042 = vpop.f32.mrb[0].mxu0
  %v6043 = vpop.f32.mrb[0].mxu0
  %v6044 = vadd.f32 %v5883, %v6043
  %v6045 = vpop.f32.mrb[0].mxu0
  %6046 = vmatprep.mubr.bf16.mxu0 %v5216
  %6047 = vmatmul.mubr.bf16.gmra.mrb[0].mxu0 %v5215
  %v6048 = vpop.f32.mrb[0].mxu0
  %v6049 = vadd.f32 %v5888, %v6048
  %v6050 = vpop.f32.mrb[0].mxu0
  %v6051 = vpop.f32.mrb[0].mxu0
  %v6052 = vadd.f32 %v5891, %v6051
  %v6053 = vpop.f32.mrb[0].mxu0
  %6054 = vmatprep.mubr.bf16.mxu0 %v5224
  %6055 = vmatmul.mubr.bf16.gmra.mrb[0].mxu0 %v5223
  %v6056 = vpop.f32.mrb[0].mxu0
  %v6057 = vadd.f32 %v5896, %v6056
  %v6058 = vpop.f32.mrb[0].mxu0
  %v6059 = vpop.f32.mrb[0].mxu0
  %v6060 = vadd.f32 %v5899, %v6059
  %v6061 = vpop.f32.mrb[0].mxu0
  %6062 = vmatprep.mubr.bf16.mxu0 %v5232
  %6063 = vmatmul.mubr.bf16.gmra.mrb[0].mxu0 %v5231
  %v6064 = vpop.f32.mrb[0].mxu0
  %v6065 = vadd.f32 %v5904, %v6064
  %v6066 = vpop.f32.mrb[0].mxu0
  %v6067 = vpop.f32.mrb[0].mxu0
  %v6068 = vadd.f32 %v5907, %v6067
  %v6069 = vpop.f32.mrb[0].mxu0
  %6070 = vmatprep.mubr.bf16.mxu0 %v5240
  %6071 = vmatmul.mubr.bf16.gmra.mrb[0].mxu0 %v5239
  %v6072 = vpop.f32.mrb[0].mxu0
  %v6073 = vadd.f32 %v5912, %v6072
  %v6074 = vpop.f32.mrb[0].mxu0
  %v6075 = vpop.f32.mrb[0].mxu0
  %v6076 = vadd.f32 %v5915, %v6075
  %v6077 = vpop.f32.mrb[0].mxu0
  %6078 = vmatprep.mubr.bf16.mxu0 %v5248
  %6079 = vmatmul.mubr.bf16.gmra.mrb[0].mxu0 %v5247
  %v6080 = vpop.f32.mrb[0].mxu0
  %v6081 = vadd.f32 %v5920, %v6080
  %v6082 = vpop.f32.mrb[0].mxu0
  %v6083 = vpop.f32.mrb[0].mxu0
  %v6084 = vadd.f32 %v5923, %v6083
  %v6085 = vpop.f32.mrb[0].mxu0
  %6086 = vmatprep.mubr.bf16.mxu0 %v5256
  %6087 = vmatmul.mubr.bf16.gmra.mrb[0].mxu0 %v5255
  %v6088 = vpop.f32.mrb[0].mxu0
  %v6089 = vadd.f32 %v5928, %v6088
  %v6090 = vpop.f32.mrb[0].mxu0
  %v6091 = vpop.f32.mrb[0].mxu0
  %v6092 = vadd.f32 %v5931, %v6091
  %v6093 = vpop.f32.mrb[0].mxu0
  %6094 = vmatprep.mubr.bf16.mxu0 %v5264
  %6095 = vmatmul.mubr.bf16.gmra.mrb[0].mxu0 %v5263
  %v6096 = vpop.f32.mrb[0].mxu0
  %v6097 = vadd.f32 %v5936, %v6096
  %v6098 = vpop.f32.mrb[0].mxu0
  %v6099 = vpop.f32.mrb[0].mxu0
  %v6100 = vadd.f32 %v5939, %v6099
  %v6101 = vpop.f32.mrb[0].mxu0
  %6102 = vmatprep.mubr.bf16.mxu0 %v5272
  %6103 = vmatmul.mubr.bf16.gmra.mrb[0].mxu0 %v5271
  %v6104 = vpop.f32.mrb[0].mxu0
  %v6105 = vadd.f32 %v5944, %v6104
  %v6106 = vpop.f32.mrb[0].mxu0
  %v6107 = vpop.f32.mrb[0].mxu0
  %v6108 = vadd.f32 %v5947, %v6107
  %v6109 = vpop.f32.mrb[0].mxu0
  %6110 = vmatprep.mubr.bf16.mxu0 %v5280
  %6111 = vmatmul.mubr.bf16.gmra.mrb[0].mxu0 %v5279
  %v6112 = vpop.f32.mrb[0].mxu0
  %v6113 = vadd.f32 %v5952, %v6112
  %v6114 = vpop.f32.mrb[0].mxu0
  %v6115 = vpop.f32.mrb[0].mxu0
  %v6116 = vadd.f32 %v5955, %v6115
  %v6117 = vpop.f32.mrb[0].mxu0
  %6118 = vmatprep.mubr.bf16.mxu0 %v5288
  %6119 = vmatmul.mubr.bf16.gmra.mrb[0].mxu0 %v5287
  %v6120 = vpop.f32.mrb[0].mxu0
  %v6121 = vadd.f32 %v5960, %v6120
  %v6122 = vpop.f32.mrb[0].mxu0
  %v6123 = vpop.f32.mrb[0].mxu0
  %v6124 = vadd.f32 %v5963, %v6123
  %v6125 = vpop.f32.mrb[0].mxu0
  %6126 = vdwg.mxu0
  %6127 = vmatprep.subr.bf16.mxu0 0
  %6128 = vmatpush1.bf16.msra.mxu0 %v5709
  %6129 = vmatprep.subr.bf16.mxu0 0
  %6130 = vmatpush1.bf16.msra.mxu0 %v5710
  %6131 = vmatprep.subr.bf16.mxu0 0
  %6132 = vmatpush1.bf16.msra.mxu0 %v5711
  %6133 = vmatprep.subr.bf16.mxu0 0
  %6134 = vmatpush1.bf16.msra.mxu0 %v5712
  %6135 = vmatprep.subr.bf16.mxu0 0
  %6136 = vmatpush1.bf16.msra.mxu0 %v5713
  %6137 = vmatprep.subr.bf16.mxu0 0
  %6138 = vmatpush1.bf16.msra.mxu0 %v5714
  %6139 = vmatprep.subr.bf16.mxu0 0
  %6140 = vmatpush1.bf16.msra.mxu0 %v5715
  %6141 = vmatprep.subr.bf16.mxu0 0
  %6142 = vmatpush1.bf16.msra.mxu0 %v5716
  %6143 = vmatprep.subr.bf16.mxu0 0
  %6144 = vmatpush1.bf16.msra.mxu0 %v5717
  %6145 = vmatprep.subr.bf16.mxu0 0
  %6146 = vmatpush1.bf16.msra.mxu0 %v5718
  %6147 = vmatprep.subr.bf16.mxu0 0
  %6148 = vmatpush1.bf16.msra.mxu0 %v5719
  %6149 = vmatprep.subr.bf16.mxu0 0
  %6150 = vmatpush1.bf16.msra.mxu0 %v5720
  %6151 = vmatprep.subr.bf16.mxu0 0
  %6152 = vmatpush1.bf16.msra.mxu0 %v5721
  %6153 = vmatprep.subr.bf16.mxu0 0
  %6154 = vmatpush1.bf16.msra.mxu0 %v5722
  %6155 = vmatprep.subr.bf16.mxu0 0
  %6156 = vmatpush1.bf16.msra.mxu0 %v5723
  %6157 = vmatprep.subr.bf16.mxu0 0
  %6158 = vmatpush1.bf16.msra.mxu0 %v5724
  %6159 = vmatprep.mubr.bf16.mxu0 %v5170
  %6160 = vmatmul.mubr.bf16.gmra.mrb[0].mxu0 %v5169
  %v6161 = vpop.f32.mrb[0].mxu0
  %v6162 = vadd.f32 %v6001, %v6161
  %v6163 = vpop.f32.mrb[0].mxu0
  %v6164 = vpop.f32.mrb[0].mxu0
  %v6165 = vadd.f32 %v6004, %v6164
  %v6166 = vpop.f32.mrb[0].mxu0
  %6167 = vmatprep.mubr.bf16.mxu0 %v5178
  %6168 = vmatmul.mubr.bf16.gmra.mrb[0].mxu0 %v5177
  %v6169 = vpop.f32.mrb[0].mxu0
  %v6170 = vadd.f32 %v6009, %v6169
  %v6171 = vpop.f32.mrb[0].mxu0
  %v6172 = vpop.f32.mrb[0].mxu0
  %v6173 = vadd.f32 %v6012, %v6172
  %v6174 = vpop.f32.mrb[0].mxu0
  %6175 = vmatprep.mubr.bf16.mxu0 %v5186
  %6176 = vmatmul.mubr.bf16.gmra.mrb[0].mxu0 %v5185
  %v6177 = vpop.f32.mrb[0].mxu0
  %v6178 = vadd.f32 %v6017, %v6177
  %v6179 = vpop.f32.mrb[0].mxu0
  %v6180 = vpop.f32.mrb[0].mxu0
  %v6181 = vadd.f32 %v6020, %v6180
  %v6182 = vpop.f32.mrb[0].mxu0
  %6183 = vmatprep.mubr.bf16.mxu0 %v5194
  %6184 = vmatmul.mubr.bf16.gmra.mrb[0].mxu0 %v5193
  %v6185 = vpop.f32.mrb[0].mxu0
  %v6186 = vadd.f32 %v6025, %v6185
  %v6187 = vpop.f32.mrb[0].mxu0
  %v6188 = vpop.f32.mrb[0].mxu0
  %v6189 = vadd.f32 %v6028, %v6188
  %v6190 = vpop.f32.mrb[0].mxu0
  %6191 = vmatprep.mubr.bf16.mxu0 %v5202
  %6192 = vmatmul.mubr.bf16.gmra.mrb[0].mxu0 %v5201
  %v6193 = vpop.f32.mrb[0].mxu0
  %v6194 = vadd.f32 %v6033, %v6193
  %v6195 = vpop.f32.mrb[0].mxu0
  %v6196 = vpop.f32.mrb[0].mxu0
  %v6197 = vadd.f32 %v6036, %v6196
  %v6198 = vpop.f32.mrb[0].mxu0
  %6199 = vmatprep.mubr.bf16.mxu0 %v5210
  %6200 = vmatmul.mubr.bf16.gmra.mrb[0].mxu0 %v5209
  %v6201 = vpop.f32.mrb[0].mxu0
  %v6202 = vadd.f32 %v6041, %v6201
  %v6203 = vpop.f32.mrb[0].mxu0
  %v6204 = vpop.f32.mrb[0].mxu0
  %v6205 = vadd.f32 %v6044, %v6204
  %v6206 = vpop.f32.mrb[0].mxu0
  %6207 = vmatprep.mubr.bf16.mxu0 %v5218
  %6208 = vmatmul.mubr.bf16.gmra.mrb[0].mxu0 %v5217
  %v6209 = vpop.f32.mrb[0].mxu0
  %v6210 = vadd.f32 %v6049, %v6209
  %v6211 = vpop.f32.mrb[0].mxu0
  %v6212 = vpop.f32.mrb[0].mxu0
  %v6213 = vadd.f32 %v6052, %v6212
  %v6214 = vpop.f32.mrb[0].mxu0
  %6215 = vmatprep.mubr.bf16.mxu0 %v5226
  %6216 = vmatmul.mubr.bf16.gmra.mrb[0].mxu0 %v5225
  %v6217 = vpop.f32.mrb[0].mxu0
  %v6218 = vadd.f32 %v6057, %v6217
  %v6219 = vpop.f32.mrb[0].mxu0
  %v6220 = vpop.f32.mrb[0].mxu0
  %v6221 = vadd.f32 %v6060, %v6220
  %v6222 = vpop.f32.mrb[0].mxu0
  %6223 = vmatprep.mubr.bf16.mxu0 %v5234
  %6224 = vmatmul.mubr.bf16.gmra.mrb[0].mxu0 %v5233
  %v6225 = vpop.f32.mrb[0].mxu0
  %v6226 = vadd.f32 %v6065, %v6225
  %v6227 = vpop.f32.mrb[0].mxu0
  %v6228 = vpop.f32.mrb[0].mxu0
  %v6229 = vadd.f32 %v6068, %v6228
  %v6230 = vpop.f32.mrb[0].mxu0
  %6231 = vmatprep.mubr.bf16.mxu0 %v5242
  %6232 = vmatmul.mubr.bf16.gmra.mrb[0].mxu0 %v5241
  %v6233 = vpop.f32.mrb[0].mxu0
  %v6234 = vadd.f32 %v6073, %v6233
  %v6235 = vpop.f32.mrb[0].mxu0
  %v6236 = vpop.f32.mrb[0].mxu0
  %v6237 = vadd.f32 %v6076, %v6236
  %v6238 = vpop.f32.mrb[0].mxu0
  %6239 = vmatprep.mubr.bf16.mxu0 %v5250
  %6240 = vmatmul.mubr.bf16.gmra.mrb[0].mxu0 %v5249
  %v6241 = vpop.f32.mrb[0].mxu0
  %v6242 = vadd.f32 %v6081, %v6241
  %v6243 = vpop.f32.mrb[0].mxu0
  %v6244 = vpop.f32.mrb[0].mxu0
  %v6245 = vadd.f32 %v6084, %v6244
  %v6246 = vpop.f32.mrb[0].mxu0
  %6247 = vmatprep.mubr.bf16.mxu0 %v5258
  %6248 = vmatmul.mubr.bf16.gmra.mrb[0].mxu0 %v5257
  %v6249 = vpop.f32.mrb[0].mxu0
  %v6250 = vadd.f32 %v6089, %v6249
  %v6251 = vpop.f32.mrb[0].mxu0
  %v6252 = vpop.f32.mrb[0].mxu0
  %v6253 = vadd.f32 %v6092, %v6252
  %v6254 = vpop.f32.mrb[0].mxu0
  %6255 = vmatprep.mubr.bf16.mxu0 %v5266
  %6256 = vmatmul.mubr.bf16.gmra.mrb[0].mxu0 %v5265
  %v6257 = vpop.f32.mrb[0].mxu0
  %v6258 = vadd.f32 %v6097, %v6257
  %v6259 = vpop.f32.mrb[0].mxu0
  %v6260 = vpop.f32.mrb[0].mxu0
  %v6261 = vadd.f32 %v6100, %v6260
  %v6262 = vpop.f32.mrb[0].mxu0
  %6263 = vmatprep.mubr.bf16.mxu0 %v5274
  %6264 = vmatmul.mubr.bf16.gmra.mrb[0].mxu0 %v5273
  %v6265 = vpop.f32.mrb[0].mxu0
  %v6266 = vadd.f32 %v6105, %v6265
  %v6267 = vpop.f32.mrb[0].mxu0
  %v6268 = vpop.f32.mrb[0].mxu0
  %v6269 = vadd.f32 %v6108, %v6268
  %v6270 = vpop.f32.mrb[0].mxu0
  %6271 = vmatprep.mubr.bf16.mxu0 %v5282
  %6272 = vmatmul.mubr.bf16.gmra.mrb[0].mxu0 %v5281
  %v6273 = vpop.f32.mrb[0].mxu0
  %v6274 = vadd.f32 %v6113, %v6273
  %v6275 = vpop.f32.mrb[0].mxu0
  %v6276 = vpop.f32.mrb[0].mxu0
  %v6277 = vadd.f32 %v6116, %v6276
  %v6278 = vpop.f32.mrb[0].mxu0
  %6279 = vmatprep.mubr.bf16.mxu0 %v5290
  %6280 = vmatmul.mubr.bf16.gmra.mrb[0].mxu0 %v5289
  %v6281 = vpop.f32.mrb[0].mxu0
  %v6282 = vadd.f32 %v6121, %v6281
  %v6283 = vpop.f32.mrb[0].mxu0
  %v6284 = vpop.f32.mrb[0].mxu0
  %v6285 = vadd.f32 %v6124, %v6284
  %v6286 = vpop.f32.mrb[0].mxu0
  %6287 = vdwg.mxu0
  %6288 = vmatprep.subr.bf16.mxu0 0
  %6289 = vmatpush1.bf16.msra.mxu0 %v5725
  %6290 = vmatprep.subr.bf16.mxu0 0
  %6291 = vmatpush1.bf16.msra.mxu0 %v5726
  %6292 = vmatprep.subr.bf16.mxu0 0
  %6293 = vmatpush1.bf16.msra.mxu0 %v5727
  %6294 = vmatprep.subr.bf16.mxu0 0
  %6295 = vmatpush1.bf16.msra.mxu0 %v5728
  %6296 = vmatprep.subr.bf16.mxu0 0
  %6297 = vmatpush1.bf16.msra.mxu0 %v5729
  %6298 = vmatprep.subr.bf16.mxu0 0
  %6299 = vmatpush1.bf16.msra.mxu0 %v5730
  %6300 = vmatprep.subr.bf16.mxu0 0
  %6301 = vmatpush1.bf16.msra.mxu0 %v5731
  %6302 = vmatprep.subr.bf16.mxu0 0
  %6303 = vmatpush1.bf16.msra.mxu0 %v5732
  %6304 = vmatprep.subr.bf16.mxu0 0
  %6305 = vmatpush1.bf16.msra.mxu0 %v5733
  %6306 = vmatprep.subr.bf16.mxu0 0
  %6307 = vmatpush1.bf16.msra.mxu0 %v5734
  %6308 = vmatprep.subr.bf16.mxu0 0
  %6309 = vmatpush1.bf16.msra.mxu0 %v5735
  %6310 = vmatprep.subr.bf16.mxu0 0
  %6311 = vmatpush1.bf16.msra.mxu0 %v5736
  %6312 = vmatprep.subr.bf16.mxu0 0
  %6313 = vmatpush1.bf16.msra.mxu0 %v5737
  %6314 = vmatprep.subr.bf16.mxu0 0
  %6315 = vmatpush1.bf16.msra.mxu0 %v5738
  %6316 = vmatprep.subr.bf16.mxu0 0
  %6317 = vmatpush1.bf16.msra.mxu0 %v5739
  %6318 = vmatprep.subr.bf16.mxu0 0
  %6319 = vmatpush1.bf16.msra.mxu0 %v5740
  %6320 = vmatprep.mubr.bf16.mxu0 %v5172
  %6321 = vmatmul.mubr.bf16.gmra.mrb[0].mxu0 %v5171
  %v6322 = vpop.f32.mrb[0].mxu0
  %v6323 = vadd.f32 %v6162, %v6322
  %v6324 = vpop.f32.mrb[0].mxu0
  %v6325 = vpop.f32.mrb[0].mxu0
  %v6326 = vadd.f32 %v6165, %v6325
  %v6327 = vpop.f32.mrb[0].mxu0
  %6328 = vmatprep.mubr.bf16.mxu0 %v5180
  %6329 = vmatmul.mubr.bf16.gmra.mrb[0].mxu0 %v5179
  %v6330 = vpop.f32.mrb[0].mxu0
  %v6331 = vadd.f32 %v6170, %v6330
  %v6332 = vpop.f32.mrb[0].mxu0
  %v6333 = vpop.f32.mrb[0].mxu0
  %v6334 = vadd.f32 %v6173, %v6333
  %v6335 = vpop.f32.mrb[0].mxu0
  %6336 = vmatprep.mubr.bf16.mxu0 %v5188
  %6337 = vmatmul.mubr.bf16.gmra.mrb[0].mxu0 %v5187
  %v6338 = vpop.f32.mrb[0].mxu0
  %v6339 = vadd.f32 %v6178, %v6338
  %v6340 = vpop.f32.mrb[0].mxu0
  %v6341 = vpop.f32.mrb[0].mxu0
  %v6342 = vadd.f32 %v6181, %v6341
  %v6343 = vpop.f32.mrb[0].mxu0
  %6344 = vmatprep.mubr.bf16.mxu0 %v5196
  %6345 = vmatmul.mubr.bf16.gmra.mrb[0].mxu0 %v5195
  %v6346 = vpop.f32.mrb[0].mxu0
  %v6347 = vadd.f32 %v6186, %v6346
  %v6348 = vpop.f32.mrb[0].mxu0
  %v6349 = vpop.f32.mrb[0].mxu0
  %v6350 = vadd.f32 %v6189, %v6349
  %v6351 = vpop.f32.mrb[0].mxu0
  %6352 = vmatprep.mubr.bf16.mxu0 %v5204
  %6353 = vmatmul.mubr.bf16.gmra.mrb[0].mxu0 %v5203
  %v6354 = vpop.f32.mrb[0].mxu0
  %v6355 = vadd.f32 %v6194, %v6354
  %v6356 = vpop.f32.mrb[0].mxu0
  %v6357 = vpop.f32.mrb[0].mxu0
  %v6358 = vadd.f32 %v6197, %v6357
  %v6359 = vpop.f32.mrb[0].mxu0
  %6360 = vmatprep.mubr.bf16.mxu0 %v5212
  %6361 = vmatmul.mubr.bf16.gmra.mrb[0].mxu0 %v5211
  %v6362 = vpop.f32.mrb[0].mxu0
  %v6363 = vadd.f32 %v6202, %v6362
  %v6364 = vpop.f32.mrb[0].mxu0
  %v6365 = vpop.f32.mrb[0].mxu0
  %v6366 = vadd.f32 %v6205, %v6365
  %v6367 = vpop.f32.mrb[0].mxu0
  %6368 = vmatprep.mubr.bf16.mxu0 %v5220
  %6369 = vmatmul.mubr.bf16.gmra.mrb[0].mxu0 %v5219
  %v6370 = vpop.f32.mrb[0].mxu0
  %v6371 = vadd.f32 %v6210, %v6370
  %v6372 = vpop.f32.mrb[0].mxu0
  %v6373 = vpop.f32.mrb[0].mxu0
  %v6374 = vadd.f32 %v6213, %v6373
  %v6375 = vpop.f32.mrb[0].mxu0
  %6376 = vmatprep.mubr.bf16.mxu0 %v5228
  %6377 = vmatmul.mubr.bf16.gmra.mrb[0].mxu0 %v5227
  %v6378 = vpop.f32.mrb[0].mxu0
  %v6379 = vadd.f32 %v6218, %v6378
  %v6380 = vpop.f32.mrb[0].mxu0
  %v6381 = vpop.f32.mrb[0].mxu0
  %v6382 = vadd.f32 %v6221, %v6381
  %v6383 = vpop.f32.mrb[0].mxu0
  %6384 = vmatprep.mubr.bf16.mxu0 %v5236
  %6385 = vmatmul.mubr.bf16.gmra.mrb[0].mxu0 %v5235
  %v6386 = vpop.f32.mrb[0].mxu0
  %v6387 = vadd.f32 %v6226, %v6386
  %v6388 = vpop.f32.mrb[0].mxu0
  %v6389 = vpop.f32.mrb[0].mxu0
  %v6390 = vadd.f32 %v6229, %v6389
  %v6391 = vpop.f32.mrb[0].mxu0
  %6392 = vmatprep.mubr.bf16.mxu0 %v5244
  %6393 = vmatmul.mubr.bf16.gmra.mrb[0].mxu0 %v5243
  %v6394 = vpop.f32.mrb[0].mxu0
  %v6395 = vadd.f32 %v6234, %v6394
  %v6396 = vpop.f32.mrb[0].mxu0
  %v6397 = vpop.f32.mrb[0].mxu0
  %v6398 = vadd.f32 %v6237, %v6397
  %v6399 = vpop.f32.mrb[0].mxu0
  %6400 = vmatprep.mubr.bf16.mxu0 %v5252
  %6401 = vmatmul.mubr.bf16.gmra.mrb[0].mxu0 %v5251
  %v6402 = vpop.f32.mrb[0].mxu0
  %v6403 = vadd.f32 %v6242, %v6402
  %v6404 = vpop.f32.mrb[0].mxu0
  %v6405 = vpop.f32.mrb[0].mxu0
  %v6406 = vadd.f32 %v6245, %v6405
  %v6407 = vpop.f32.mrb[0].mxu0
  %6408 = vmatprep.mubr.bf16.mxu0 %v5260
  %6409 = vmatmul.mubr.bf16.gmra.mrb[0].mxu0 %v5259
  %v6410 = vpop.f32.mrb[0].mxu0
  %v6411 = vadd.f32 %v6250, %v6410
  %v6412 = vpop.f32.mrb[0].mxu0
  %v6413 = vpop.f32.mrb[0].mxu0
  %v6414 = vadd.f32 %v6253, %v6413
  %v6415 = vpop.f32.mrb[0].mxu0
  %6416 = vmatprep.mubr.bf16.mxu0 %v5268
  %6417 = vmatmul.mubr.bf16.gmra.mrb[0].mxu0 %v5267
  %v6418 = vpop.f32.mrb[0].mxu0
  %v6419 = vadd.f32 %v6258, %v6418
  %v6420 = vpop.f32.mrb[0].mxu0
  %v6421 = vpop.f32.mrb[0].mxu0
  %v6422 = vadd.f32 %v6261, %v6421
  %v6423 = vpop.f32.mrb[0].mxu0
  %6424 = vmatprep.mubr.bf16.mxu0 %v5276
  %6425 = vmatmul.mubr.bf16.gmra.mrb[0].mxu0 %v5275
  %v6426 = vpop.f32.mrb[0].mxu0
  %v6427 = vadd.f32 %v6266, %v6426
  %v6428 = vpop.f32.mrb[0].mxu0
  %v6429 = vpop.f32.mrb[0].mxu0
  %v6430 = vadd.f32 %v6269, %v6429
  %v6431 = vpop.f32.mrb[0].mxu0
  %6432 = vmatprep.mubr.bf16.mxu0 %v5284
  %6433 = vmatmul.mubr.bf16.gmra.mrb[0].mxu0 %v5283
  %v6434 = vpop.f32.mrb[0].mxu0
  %v6435 = vadd.f32 %v6274, %v6434
  %v6436 = vpop.f32.mrb[0].mxu0
  %v6437 = vpop.f32.mrb[0].mxu0
  %v6438 = vadd.f32 %v6277, %v6437
  %v6439 = vpop.f32.mrb[0].mxu0
  %6440 = vmatprep.mubr.bf16.mxu0 %v5292
  %6441 = vmatmul.mubr.bf16.gmra.mrb[0].mxu0 %v5291
  %v6442 = vpop.f32.mrb[0].mxu0
  %v6443 = vadd.f32 %v6282, %v6442
  %v6444 = vpop.f32.mrb[0].mxu0
  %v6445 = vpop.f32.mrb[0].mxu0
  %v6446 = vadd.f32 %v6285, %v6445
  %v6447 = vpop.f32.mrb[0].mxu0
  %6448 = vdwg.mxu0
  %6449 = vst.msk [vmem:[%s11] sm:$0xff] %vm2152, %v6323
  %6450 = vst.msk [vmem:[%s11 + $0x8] sm:$0xff] %vm2152, %v6326
  %6451 = vst.msk [vmem:[%s11 + $0x10] sm:$0xff] %vm2152, %v6331
  %6452 = vst.msk [vmem:[%s11 + $0x18] sm:$0xff] %vm2152, %v6334
  %6453 = vst.msk [vmem:[%s11 + $0x20] sm:$0xff] %vm2152, %v6339
  %6454 = vst.msk [vmem:[%s11 + $0x28] sm:$0xff] %vm2152, %v6342
  %6455 = vst.msk [vmem:[%s11 + $0x30] sm:$0xff] %vm2152, %v6347
  %6456 = vst.msk [vmem:[%s11 + $0x38] sm:$0xff] %vm2152, %v6350
  %6457 = vst.msk [vmem:[%s11 + $0x40] sm:$0xff] %vm2152, %v6355
  %6458 = vst.msk [vmem:[%s11 + $0x48] sm:$0xff] %vm2152, %v6358
  %6459 = vst.msk [vmem:[%s11 + $0x50] sm:$0xff] %vm2152, %v6363
  %6460 = vst.msk [vmem:[%s11 + $0x58] sm:$0xff] %vm2152, %v6366
  %6461 = vst.msk [vmem:[%s11 + $0x60] sm:$0xff] %vm2152, %v6371
  %6462 = vst.msk [vmem:[%s11 + $0x68] sm:$0xff] %vm2152, %v6374
  %6463 = vst.msk [vmem:[%s11 + $0x70] sm:$0xff] %vm2152, %v6379
  %6464 = vst.msk [vmem:[%s11 + $0x78] sm:$0xff] %vm2152, %v6382
  %6465 = vst.msk [vmem:[%s11 + $0x80] sm:$0xff] %vm2152, %v6387
  %6466 = vst.msk [vmem:[%s11 + $0x88] sm:$0xff] %vm2152, %v6390
  %6467 = vst.msk [vmem:[%s11 + $0x90] sm:$0xff] %vm2152, %v6395
  %6468 = vst.msk [vmem:[%s11 + $0x98] sm:$0xff] %vm2152, %v6398
  %6469 = vst.msk [vmem:[%s11 + $0xa0] sm:$0xff] %vm2152, %v6403
  %6470 = vst.msk [vmem:[%s11 + $0xa8] sm:$0xff] %vm2152, %v6406
  %6471 = vst.msk [vmem:[%s11 + $0xb0] sm:$0xff] %vm2152, %v6411
  %6472 = vst.msk [vmem:[%s11 + $0xb8] sm:$0xff] %vm2152, %v6414
  %6473 = vst.msk [vmem:[%s11 + $0xc0] sm:$0xff] %vm2152, %v6419
  %6474 = vst.msk [vmem:[%s11 + $0xc8] sm:$0xff] %vm2152, %v6422
  %6475 = vst.msk [vmem:[%s11 + $0xd0] sm:$0xff] %vm2152, %v6427
  %6476 = vst.msk [vmem:[%s11 + $0xd8] sm:$0xff] %vm2152, %v6430
  %6477 = vst.msk [vmem:[%s11 + $0xe0] sm:$0xff] %vm2152, %v6435
  %6478 = vst.msk [vmem:[%s11 + $0xe8] sm:$0xff] %vm2152, %v6438
  %6479 = vst.msk [vmem:[%s11 + $0xf0] sm:$0xff] %vm2152, %v6443
  %6480 = vst.msk [vmem:[%s11 + $0xf8] sm:$0xff] %vm2152, %v6446
  // Predicated region
  $region38: #{fused_change_channels.1} parent=0 // pred_check
    _
  $region39: #{fused_change_channels.1} parent=0 // pred_check_branch
    %6482 = sbr.rel (0) target = $region41
  $region40: #{fused_change_channels.1} parent=0 // pred_region
    _
  $region41: #{fused_change_channels.1} parent=0 // pred_fallthru
    _
  // Predicated region
  $region42: #{fused_change_channels.1} parent=0 // pred_check
    _
  $region43: #{fused_change_channels.1} parent=0 // pred_check_branch
    %6484 = sbr.rel (0) target = $region45
  $region44: #{fused_change_channels.1} parent=0 // pred_region
    _
  $region45: #{fused_change_channels.1} parent=0 // pred_fallthru
    _
  // Predicated region
  $region46: #{fused_change_channels.1} parent=0 // pred_check
    _
  $region47: #{fused_change_channels.1} parent=0 // pred_check_branch
    %6486 = sbr.rel (0) target = $region49
  $region48: #{fused_change_channels.1} parent=0 // pred_region
    _
  $region49: #{fused_change_channels.1} parent=0 // pred_fallthru
    _
  // Predicated region
  $region50: #{fused_change_channels.1} parent=0 // pred_check
    _
  $region51: #{fused_change_channels.1} parent=0 // pred_check_branch
    %6488 = sbr.rel (0) target = $region53
  $region52: #{fused_change_channels.1} parent=0 // pred_region
    _
  $region53: #{fused_change_channels.1} parent=0 // pred_fallthru
    _
  // Predicated region
  $region54: #{fused_change_channels.1} parent=0 // pred_check
    _
  $region55: #{fused_change_channels.1} parent=0 // pred_check_branch
    %6490 = sbr.rel (0) target = $region57
  $region56: #{fused_change_channels.1} parent=0 // pred_region
    _
  $region57: #{fused_change_channels.1} parent=0 // pred_fallthru
    _
  // Predicated region
  $region58: #{fused_change_channels.1} parent=0 // pred_check
    _
  $region59: #{fused_change_channels.1} parent=0 // pred_check_branch
    %6492 = sbr.rel (0) target = $region61
  $region60: #{fused_change_channels.1} parent=0 // pred_region
    _
  $region61: #{fused_change_channels.1} parent=0 // pred_fallthru
    _

</llo_original>
